<compile_context>
chip_gen: v5e
topology: v5e:2x2
jax: 0.10.0
libtpu: 0.0.40
codegen_flags: <defaults>
</compile_context>

<pallas_src>
import jax
import jax.numpy as jnp
from jax.experimental import pallas as pl
from jax.experimental.pallas import tpu as pltpu

THRESH = 0.5
DECAY = 0.2


def _make_fused_kernel(tc, bt, mh, mo, time_window):
    """Fused encode + fc1 + hidden/output membrane recurrence + fc2 kernel.

    tc : fused time steps per grid iteration (even)
    bt : batch-tile rows
    mh : multiplexed hidden width (30)
    mo : multiplexed output width (5)
    """

    def kernel(x_ref, u_ref, w1_ref, b1_ref, w2_ref, b2_ref, mot_ref, out_ref,
               h_mem, o_mem, o_acc, h_sp):
        ti = pl.program_id(1)          # time-chunk index (sequential axis)

        @pl.when(ti == 0)
        def _():
            h_mem[...] = jnp.zeros_like(h_mem)
            o_mem[...] = jnp.zeros_like(o_mem)
            o_acc[...] = jnp.zeros_like(o_acc)

        # ---- Bernoulli encode + fc1, batched over all tc time steps --------
        x = x_ref[...]                                     # (bt, 784) f32
        u = u_ref[...]                                     # (tc, bt, 784) f32
        spikes = (x[None, :, :] > u).astype(jnp.float32)   # (tc, bt, 784)
        spikes2d = spikes.reshape(tc * bt, -1).astype(jnp.bfloat16)
        # RHS columns: [0:mh] = even hidden units, [mh:2mh] = odd hidden units
        y_all = (jnp.dot(spikes2d, w1_ref[...],
                         preferred_element_type=jnp.float32)
                 + b1_ref[...])                            # (tc*bt, 60) f32

        # ---- hidden membrane recurrence (VPU only, statically unrolled) ----
        # Reference: mem = mem*decay*(1 - spike@mask) + y_sel.  The reset term
        # spike@mask is identically zero (the previous step's spikes live in
        # the opposite parity's columns), so it is dropped exactly.
        for j in range(tc):
            p = j % 2                                      # static parity
            y_sel = y_all[j * bt:(j + 1) * bt, p * mh:(p + 1) * mh]
            m = h_mem[...] * DECAY + y_sel                 # (bt, mh)
            h_mem[...] = m
            h_sp[pl.ds(j * bt, bt), :] = (m > THRESH).astype(jnp.float32)

        # ---- fc2, batched over all tc time steps ---------------------------
        # RHS columns: [0:mo] = even-step folded weights, [mo:2mo] = odd-step.
        yo_all = (jnp.dot(h_sp[...].astype(jnp.bfloat16), w2_ref[...],
                          preferred_element_type=jnp.float32)
                  + b2_ref[...])                           # (tc*bt, 10) f32

        # ---- output membrane recurrence + parity-compact spike counting ----
        for j in range(tc):
            p = j % 2
            yo_sel = yo_all[j * bt:(j + 1) * bt, p * mo:(p + 1) * mo]
            m = o_mem[...] * DECAY + yo_sel                # (bt, mo)
            o_mem[...] = m
            o_acc[p] = o_acc[p] + (m > THRESH).astype(jnp.float32)

        @pl.when(ti == pl.num_programs(1) - 1)
        def _():
            # Single deferred 5 -> 10 scatter of both parity accumulators.
            scat = (jnp.dot(o_acc[0], mot_ref[0],
                            preferred_element_type=jnp.float32)
                    + jnp.dot(o_acc[1], mot_ref[1],
                              preferred_element_type=jnp.float32))
            out_ref[...] = scat / float(time_window)

    return kernel


def snn_forward(x, noise, w1_t, b1, w2_t, b2, *, time_window=20,
                time_chunk=None, batch_tile=None):
    """Forward pass of the spiking MLP (matches SNN.forward semantics).

    x     : (B, 784) f32    input rates in [0, 1)
    noise : (T, B, 784) f32 uniform[0,1) noise for the Bernoulli encoding
    w1_t  : (784, 60) f32   fc1 weight, transposed
    b1    : (1, 60)  f32
    w2_t  : (60, 10) f32    fc2 weight, transposed
    b2    : (1, 10)  f32
    """
    B, d_in = x.shape
    hid = w1_t.shape[1]
    out_dim = w2_t.shape[1]
    assert hid % 2 == 0 and out_dim % 2 == 0
    mh, mo = hid // 2, out_dim // 2
    T = int(time_window)
    assert noise.shape == (T, B, d_in)

    tc = T if time_chunk is None else int(time_chunk)
    bt = B if batch_tile is None else int(batch_tile)
    assert T % tc == 0 and tc % 2 == 0, "time chunk must divide T and be even"
    assert B % bt == 0 and (bt == B or bt % 8 == 0)
    # VMEM note: per grid step the kernel holds ~2*(bt*784 + tc*bt*784)*4 B of
    # pipelined input blocks plus the (tc*bt, 60/30) activations.  For
    # production batches pick bt so this stays well under v7x's 64 MiB
    # (bt ~ 4096 at tc = 20 with vmem_limit_bytes raised); the constant-index
    # weight blocks could additionally use pipeline_mode=pl.Buffered(1).

    # ---- parity-folded / concatenated parameters (done once, outside) ------
    # fc1 RHS: [even columns | odd columns], bf16 for the MXU.
    w1_cat = jnp.concatenate([w1_t[:, 0::2], w1_t[:, 1::2]],
                             axis=1).astype(jnp.bfloat16)          # (784, 60)
    b1_cat = jnp.concatenate([b1[:, 0::2], b1[:, 1::2]], axis=1)   # (1, 60)
    # fc2 RHS with both parity masks folded: [W2t[0::2,0::2] | W2t[1::2,1::2]]
    w2_cat = jnp.concatenate([w2_t[0::2, 0::2], w2_t[1::2, 1::2]],
                             axis=1).astype(jnp.bfloat16)          # (30, 10)
    b2_cat = jnp.concatenate([b2[:, 0::2], b2[:, 1::2]], axis=1)   # (1, 10)
    # 5 -> 10 scatter matrices (mask_out_even.T / mask_out_odd.T), used once.
    eye_o = jnp.eye(mo, dtype=jnp.float32)
    mot = jnp.stack([
        jnp.zeros((mo, out_dim), jnp.float32).at[:, 0::2].set(eye_o),
        jnp.zeros((mo, out_dim), jnp.float32).at[:, 1::2].set(eye_o),
    ])                                                             # (2, 5, 10)

    kernel = _make_fused_kernel(tc=tc, bt=bt, mh=mh, mo=mo, time_window=T)

    return pl.pallas_call(
        kernel,
        out_shape=jax.ShapeDtypeStruct((B, out_dim), jnp.float32),
        grid_spec=pltpu.PrefetchScalarGridSpec(
            num_scalar_prefetch=0,
            grid=(B // bt, T // tc),          # (parallel batch, sequential time)
            in_specs=[
                pl.BlockSpec((bt, d_in), lambda bi, ti: (bi, 0)),          # x
                pl.BlockSpec((tc, bt, d_in), lambda bi, ti: (ti, bi, 0)),  # noise
                pl.BlockSpec((d_in, hid), lambda bi, ti: (0, 0)),          # w1_cat
                pl.BlockSpec((1, hid), lambda bi, ti: (0, 0)),             # b1_cat
                pl.BlockSpec((mh, out_dim), lambda bi, ti: (0, 0)),        # w2_cat
                pl.BlockSpec((1, out_dim), lambda bi, ti: (0, 0)),         # b2_cat
                pl.BlockSpec((2, mo, out_dim), lambda bi, ti: (0, 0, 0)),  # scatter
            ],
            out_specs=pl.BlockSpec((bt, out_dim), lambda bi, ti: (bi, 0)),
            scratch_shapes=[
                pltpu.VMEM((bt, mh), jnp.float32),        # h_mem
                pltpu.VMEM((bt, mo), jnp.float32),        # o_mem
                pltpu.VMEM((2, bt, mo), jnp.float32),     # per-parity spike sums
                pltpu.VMEM((tc * bt, mh), jnp.float32),   # stacked hidden spikes
            ],
        ),
        compiler_params=pltpu.CompilerParams(
            dimension_semantics=("parallel", "arbitrary")),
    )(x, noise, w1_cat, b1_cat, w2_cat, b2_cat, mot)


def snn_reference(x, noise, w1_t, b1, w2_t, b2, time_window=20):
    """Direct pure-JAX transcription of the original torch SNN.forward using
    the same encoding noise.  The parity-mask matmuls are written as the exact
    column selects / scatters they compute; Linear inputs are cast to bf16
    (f32 accumulation) to match the kernel's MXU dtype choice, so both paths
    agree to accumulation-order ulps."""
    B = x.shape[0]
    hid, out_dim = w1_t.shape[1], w2_t.shape[1]
    mh, mo = hid // 2, out_dim // 2
    w1b, w2b = w1_t.astype(jnp.bfloat16), w2_t.astype(jnp.bfloat16)

    h_spike = jnp.zeros((B, hid), jnp.float32)
    o_spike = jnp.zeros((B, out_dim), jnp.float32)
    o_sum = jnp.zeros((B, out_dim), jnp.float32)
    h_mem = jnp.zeros((B, mh), jnp.float32)
    o_mem = jnp.zeros((B, mo), jnp.float32)

    for step in range(time_window):
        p = step % 2
        xs = (x > noise[step]).astype(jnp.bfloat16)
        yh = jnp.dot(xs, w1b, preferred_element_type=jnp.float32) + b1
        # mem_update(yh @ mask_hidden_p, h_mem, h_spike @ mask_hidden_p)
        h_mem = h_mem * DECAY * (1.0 - h_spike[:, p::2]) + yh[:, p::2]
        h_sp_sel = (h_mem > THRESH).astype(jnp.float32)
        h_spike = jnp.zeros((B, hid), jnp.float32).at[:, p::2].set(h_sp_sel)
        yo = jnp.dot(h_spike.astype(jnp.bfloat16), w2b,
                     preferred_element_type=jnp.float32) + b2
        # mem_update(yo @ mask_out_p, o_mem, o_spike @ mask_out_p)
        o_mem = o_mem * DECAY * (1.0 - o_spike[:, p::2]) + yo[:, p::2]
        o_sp_sel = (o_mem > THRESH).astype(jnp.float32)
        o_spike = jnp.zeros((B, out_dim), jnp.float32).at[:, p::2].set(o_sp_sel)
        o_sum = o_sum + o_spike
    return o_sum / float(time_window)


if __name__ == "__main__":
    # Small shapes consistent with the module: batch=8 instead of 100,
    # feature dims exactly as in SNN.__init__, time_window=20.
    B, IN, HID, OUT = 8, 784, 60, 10
    TIME_WINDOW = 20

    key = jax.random.PRNGKey(0)
    k_x, k_w1, k_b1, k_w2, k_b2, k_u = jax.random.split(key, 6)

    # deterministic "MNIST-like" rates in [0, 1)
    x = jax.random.uniform(k_x, (B, IN), dtype=jnp.float32)
    # deterministic Linear params (PyTorch-style uniform(-1/sqrt(fan_in), .))
    lim1 = 1.0 / (IN ** 0.5)
    w1_t = jax.random.uniform(k_w1, (IN, HID), jnp.float32, -lim1, lim1)
    b1 = jax.random.uniform(k_b1, (1, HID), jnp.float32, -lim1, lim1)
    lim2 = 1.0 / (HID ** 0.5)
    w2_t = jax.random.uniform(k_w2, (HID, OUT), jnp.float32, -lim2, lim2)
    b2 = jax.random.uniform(k_b2, (1, OUT), jnp.float32, -lim2, lim2)
    # Bernoulli-encoding noise (torch.rand equivalent), shared by kernel & ref.
    noise = jax.random.uniform(k_u, (TIME_WINDOW, B, IN), dtype=jnp.float32)

    out = snn_forward(x, noise, w1_t, b1, w2_t, b2, time_window=TIME_WINDOW)
    out = jax.block_until_ready(out)

    assert out.shape == (B, OUT) and out.dtype == jnp.float32
    assert bool(jnp.all(jnp.isfinite(out)))
    assert bool(jnp.all((out >= 0.0) & (out <= 1.0)))   # averaged spike counts

    ref = snn_reference(x, noise, w1_t, b1, w2_t, b2, time_window=TIME_WINDOW)
    # Expected to match to accumulation-order ulps; the loose bound tolerates a
    # rare spike flip exactly at a threshold crossing while still catching any
    # algorithmic mismatch (which would move spike counts wholesale).
    mean_diff = float(jnp.mean(jnp.abs(out - ref)))
    assert mean_diff < 0.02, f"kernel vs reference mean|diff| = {mean_diff}"

    print("KERNEL_OK")
</pallas_src>

<mosaic_0001>
module attributes {stable_mosaic.version = 11 : i64} {
  func.func @kernel(%arg0: i32, %arg1: i32, %arg2: memref<8x784xf32, #tpu.memory_space<vmem>>, %arg3: memref<20x8x784xf32, #tpu.memory_space<vmem>>, %arg4: memref<784x60xbf16, #tpu.memory_space<vmem>>, %arg5: memref<1x60xf32, #tpu.memory_space<vmem>>, %arg6: memref<30x10xbf16, #tpu.memory_space<vmem>>, %arg7: memref<1x10xf32, #tpu.memory_space<vmem>>, %arg8: memref<2x5x10xf32, #tpu.memory_space<vmem>>, %arg9: memref<8x10xf32, #tpu.memory_space<vmem>>, %arg10: memref<8x30xf32, #tpu.memory_space<vmem>>, %arg11: memref<8x5xf32, #tpu.memory_space<vmem>>, %arg12: memref<2x8x5xf32, #tpu.memory_space<vmem>>, %arg13: memref<160x30xf32, #tpu.memory_space<vmem>>) attributes {dimension_semantics = [#tpu.dimension_semantics<parallel>, #tpu.dimension_semantics<arbitrary>], iteration_bounds = array<i64: 1, 1>, scalar_prefetch = 0 : i64, scratch_operands = 4 : i64, tpu.core_type = #tpu.core_type<tc>, window_params = [{transform_indices = @transform_0, window_bounds = array<i64: 8, 784>}, {transform_indices = @transform_1, window_bounds = array<i64: 20, 8, 784>}, {pipeline_mode = #tpu.pipeline_mode<synchronous>, transform_indices = @transform_2, window_bounds = array<i64: 784, 60>}, {pipeline_mode = #tpu.pipeline_mode<synchronous>, transform_indices = @transform_3, window_bounds = array<i64: 1, 60>}, {pipeline_mode = #tpu.pipeline_mode<synchronous>, transform_indices = @transform_4, window_bounds = array<i64: 30, 10>}, {pipeline_mode = #tpu.pipeline_mode<synchronous>, transform_indices = @transform_5, window_bounds = array<i64: 1, 10>}, {pipeline_mode = #tpu.pipeline_mode<synchronous>, transform_indices = @transform_6, window_bounds = array<i64: 2, 5, 10>}, {transform_indices = @transform_7, window_bounds = array<i64: 8, 10>}]} {
    %c0_i32 = arith.constant 0 : i32
    %0 = arith.cmpi eq, %arg1, %c0_i32 : i32
    %1 = arith.extui %0 : i1 to i32
    %c0_i32_0 = arith.constant 0 : i32
    %2 = arith.cmpi ne, %1, %c0_i32_0 : i32
    scf.if %2 {
      %cst_398 = arith.constant 0.000000e+00 : f32
      %567 = vector.broadcast %cst_398 : f32 to vector<8x30xf32>
      %c0_399 = arith.constant 0 : index
      %c0_400 = arith.constant 0 : index
      %568 = vector.load %arg10[%c0_399, %c0_400] : memref<8x30xf32, #tpu.memory_space<vmem>>, vector<8x30xf32>
      tpu.vector_store %arg10[%c0_399, %c0_400], %567 {strides = array<i32>} : memref<8x30xf32, #tpu.memory_space<vmem>>, vector<8x30xf32>,
      %cst_401 = arith.constant 0.000000e+00 : f32
      %569 = vector.broadcast %cst_401 : f32 to vector<8x5xf32>
      %c0_402 = arith.constant 0 : index
      %c0_403 = arith.constant 0 : index
      %570 = vector.load %arg11[%c0_402, %c0_403] : memref<8x5xf32, #tpu.memory_space<vmem>>, vector<8x5xf32>
      tpu.vector_store %arg11[%c0_402, %c0_403], %569 {strides = array<i32>} : memref<8x5xf32, #tpu.memory_space<vmem>>, vector<8x5xf32>,
      %cst_404 = arith.constant 0.000000e+00 : f32
      %571 = vector.broadcast %cst_404 : f32 to vector<2x8x5xf32>
      %c0_405 = arith.constant 0 : index
      %c0_406 = arith.constant 0 : index
      %c0_407 = arith.constant 0 : index
      %572 = vector.load %arg12[%c0_405, %c0_406, %c0_407] : memref<2x8x5xf32, #tpu.memory_space<vmem>>, vector<2x8x5xf32>
      tpu.vector_store %arg12[%c0_405, %c0_406, %c0_407], %571 {strides = array<i32>} : memref<2x8x5xf32, #tpu.memory_space<vmem>>, vector<2x8x5xf32>,
    } else {
    }
    %c0 = arith.constant 0 : index
    %c0_1 = arith.constant 0 : index
    %3 = vector.load %arg2[%c0, %c0_1] : memref<8x784xf32, #tpu.memory_space<vmem>>, vector<8x784xf32>
    %c0_2 = arith.constant 0 : index
    %c0_3 = arith.constant 0 : index
    %c0_4 = arith.constant 0 : index
    %4 = vector.load %arg3[%c0_2, %c0_3, %c0_4] : memref<20x8x784xf32, #tpu.memory_space<vmem>>, vector<20x8x784xf32>
    %5 = vector.shape_cast %3 : vector<8x784xf32> to vector<1x8x784xf32>
    %6 = vector.broadcast %5 : vector<1x8x784xf32> to vector<20x8x784xf32>
    %7 = arith.cmpf ogt, %6, %4 : vector<20x8x784xf32>
    %8 = arith.extui %7 : vector<20x8x784xi1> to vector<20x8x784xi32>
    %9 = arith.sitofp %8 : vector<20x8x784xi32> to vector<20x8x784xf32>
    %10 = vector.shape_cast %9 : vector<20x8x784xf32> to vector<160x784xf32>
    %11 = arith.truncf %10 : vector<160x784xf32> to vector<160x784xbf16>
    %c0_5 = arith.constant 0 : index
    %c0_6 = arith.constant 0 : index
    %12 = vector.load %arg4[%c0_5, %c0_6] : memref<784x60xbf16, #tpu.memory_space<vmem>>, vector<784x60xbf16>
    %cst = arith.constant dense<0.000000e+00> : vector<160x60xf32>
    %13 = tpu.matmul %11, %12, %cst {dimension_numbers = #tpu.dot_dimension_numbers<[1], [0], [0], [1], [0, 0, 1, 1], [], []>} : vector<160x784xbf16>, vector<784x60xbf16>, vector<160x60xf32> -> vector<160x60xf32>
    %c0_7 = arith.constant 0 : index
    %c0_8 = arith.constant 0 : index
    %14 = vector.load %arg5[%c0_7, %c0_8] : memref<1x60xf32, #tpu.memory_space<vmem>>, vector<1x60xf32>
    %15 = vector.broadcast %14 : vector<1x60xf32> to vector<160x60xf32>
    %16 = arith.addf %13, %15 : vector<160x60xf32>
    %17 = vector.extract_strided_slice %16 {offsets = [0, 0], sizes = [8, 30], strides = [1, 1]} : vector<160x60xf32> to vector<8x30xf32>
    %c0_9 = arith.constant 0 : index
    %c0_10 = arith.constant 0 : index
    %18 = vector.load %arg10[%c0_9, %c0_10] : memref<8x30xf32, #tpu.memory_space<vmem>>, vector<8x30xf32>
    %cst_11 = arith.constant 2.000000e-01 : f32
    %19 = vector.broadcast %cst_11 : f32 to vector<8x30xf32>
    %20 = arith.mulf %18, %19 : vector<8x30xf32>
    %21 = arith.addf %20, %17 : vector<8x30xf32>
    %c0_12 = arith.constant 0 : index
    %c0_13 = arith.constant 0 : index
    %22 = vector.load %arg10[%c0_12, %c0_13] : memref<8x30xf32, #tpu.memory_space<vmem>>, vector<8x30xf32>
    tpu.vector_store %arg10[%c0_12, %c0_13], %21 {strides = array<i32>} : memref<8x30xf32, #tpu.memory_space<vmem>>, vector<8x30xf32>,
    %cst_14 = arith.constant 5.000000e-01 : f32
    %23 = vector.broadcast %cst_14 : f32 to vector<8x30xf32>
    %24 = arith.cmpf ogt, %21, %23 : vector<8x30xf32>
    %25 = arith.extui %24 : vector<8x30xi1> to vector<8x30xi32>
    %26 = arith.sitofp %25 : vector<8x30xi32> to vector<8x30xf32>
    %c0_15 = arith.constant 0 : index
    %c0_16 = arith.constant 0 : index
    %27 = vector.load %arg13[%c0_15, %c0_16] : memref<160x30xf32, #tpu.memory_space<vmem>>, vector<8x30xf32>
    tpu.vector_store %arg13[%c0_15, %c0_16], %26 {strides = array<i32>} : memref<160x30xf32, #tpu.memory_space<vmem>>, vector<8x30xf32>,
    %28 = vector.extract_strided_slice %16 {offsets = [8, 30], sizes = [8, 30], strides = [1, 1]} : vector<160x60xf32> to vector<8x30xf32>
    %c0_17 = arith.constant 0 : index
    %c0_18 = arith.constant 0 : index
    %29 = vector.load %arg10[%c0_17, %c0_18] : memref<8x30xf32, #tpu.memory_space<vmem>>, vector<8x30xf32>
    %cst_19 = arith.constant 2.000000e-01 : f32
    %30 = vector.broadcast %cst_19 : f32 to vector<8x30xf32>
    %31 = arith.mulf %29, %30 : vector<8x30xf32>
    %32 = arith.addf %31, %28 : vector<8x30xf32>
    %c0_20 = arith.constant 0 : index
    %c0_21 = arith.constant 0 : index
    %33 = vector.load %arg10[%c0_20, %c0_21] : memref<8x30xf32, #tpu.memory_space<vmem>>, vector<8x30xf32>
    tpu.vector_store %arg10[%c0_20, %c0_21], %32 {strides = array<i32>} : memref<8x30xf32, #tpu.memory_space<vmem>>, vector<8x30xf32>,
    %cst_22 = arith.constant 5.000000e-01 : f32
    %34 = vector.broadcast %cst_22 : f32 to vector<8x30xf32>
    %35 = arith.cmpf ogt, %32, %34 : vector<8x30xf32>
    %36 = arith.extui %35 : vector<8x30xi1> to vector<8x30xi32>
    %37 = arith.sitofp %36 : vector<8x30xi32> to vector<8x30xf32>
    %c8 = arith.constant 8 : index
    %c0_23 = arith.constant 0 : index
    %38 = vector.load %arg13[%c8, %c0_23] : memref<160x30xf32, #tpu.memory_space<vmem>>, vector<8x30xf32>
    tpu.vector_store %arg13[%c8, %c0_23], %37 {strides = array<i32>} : memref<160x30xf32, #tpu.memory_space<vmem>>, vector<8x30xf32>,
    %39 = vector.extract_strided_slice %16 {offsets = [16, 0], sizes = [8, 30], strides = [1, 1]} : vector<160x60xf32> to vector<8x30xf32>
    %c0_24 = arith.constant 0 : index
    %c0_25 = arith.constant 0 : index
    %40 = vector.load %arg10[%c0_24, %c0_25] : memref<8x30xf32, #tpu.memory_space<vmem>>, vector<8x30xf32>
    %cst_26 = arith.constant 2.000000e-01 : f32
    %41 = vector.broadcast %cst_26 : f32 to vector<8x30xf32>
    %42 = arith.mulf %40, %41 : vector<8x30xf32>
    %43 = arith.addf %42, %39 : vector<8x30xf32>
    %c0_27 = arith.constant 0 : index
    %c0_28 = arith.constant 0 : index
    %44 = vector.load %arg10[%c0_27, %c0_28] : memref<8x30xf32, #tpu.memory_space<vmem>>, vector<8x30xf32>
    tpu.vector_store %arg10[%c0_27, %c0_28], %43 {strides = array<i32>} : memref<8x30xf32, #tpu.memory_space<vmem>>, vector<8x30xf32>,
    %cst_29 = arith.constant 5.000000e-01 : f32
    %45 = vector.broadcast %cst_29 : f32 to vector<8x30xf32>
    %46 = arith.cmpf ogt, %43, %45 : vector<8x30xf32>
    %47 = arith.extui %46 : vector<8x30xi1> to vector<8x30xi32>
    %48 = arith.sitofp %47 : vector<8x30xi32> to vector<8x30xf32>
    %c16 = arith.constant 16 : index
    %c0_30 = arith.constant 0 : index
    %49 = vector.load %arg13[%c16, %c0_30] : memref<160x30xf32, #tpu.memory_space<vmem>>, vector<8x30xf32>
    tpu.vector_store %arg13[%c16, %c0_30], %48 {strides = array<i32>} : memref<160x30xf32, #tpu.memory_space<vmem>>, vector<8x30xf32>,
    %50 = vector.extract_strided_slice %16 {offsets = [24, 30], sizes = [8, 30], strides = [1, 1]} : vector<160x60xf32> to vector<8x30xf32>
    %c0_31 = arith.constant 0 : index
    %c0_32 = arith.constant 0 : index
    %51 = vector.load %arg10[%c0_31, %c0_32] : memref<8x30xf32, #tpu.memory_space<vmem>>, vector<8x30xf32>
    %cst_33 = arith.constant 2.000000e-01 : f32
    %52 = vector.broadcast %cst_33 : f32 to vector<8x30xf32>
    %53 = arith.mulf %51, %52 : vector<8x30xf32>
    %54 = arith.addf %53, %50 : vector<8x30xf32>
    %c0_34 = arith.constant 0 : index
    %c0_35 = arith.constant 0 : index
    %55 = vector.load %arg10[%c0_34, %c0_35] : memref<8x30xf32, #tpu.memory_space<vmem>>, vector<8x30xf32>
    tpu.vector_store %arg10[%c0_34, %c0_35], %54 {strides = array<i32>} : memref<8x30xf32, #tpu.memory_space<vmem>>, vector<8x30xf32>,
    %cst_36 = arith.constant 5.000000e-01 : f32
    %56 = vector.broadcast %cst_36 : f32 to vector<8x30xf32>
    %57 = arith.cmpf ogt, %54, %56 : vector<8x30xf32>
    %58 = arith.extui %57 : vector<8x30xi1> to vector<8x30xi32>
    %59 = arith.sitofp %58 : vector<8x30xi32> to vector<8x30xf32>
    %c24 = arith.constant 24 : index
    %c0_37 = arith.constant 0 : index
    %60 = vector.load %arg13[%c24, %c0_37] : memref<160x30xf32, #tpu.memory_space<vmem>>, vector<8x30xf32>
    tpu.vector_store %arg13[%c24, %c0_37], %59 {strides = array<i32>} : memref<160x30xf32, #tpu.memory_space<vmem>>, vector<8x30xf32>,
    %61 = vector.extract_strided_slice %16 {offsets = [32, 0], sizes = [8, 30], strides = [1, 1]} : vector<160x60xf32> to vector<8x30xf32>
    %c0_38 = arith.constant 0 : index
    %c0_39 = arith.constant 0 : index
    %62 = vector.load %arg10[%c0_38, %c0_39] : memref<8x30xf32, #tpu.memory_space<vmem>>, vector<8x30xf32>
    %cst_40 = arith.constant 2.000000e-01 : f32
    %63 = vector.broadcast %cst_40 : f32 to vector<8x30xf32>
    %64 = arith.mulf %62, %63 : vector<8x30xf32>
    %65 = arith.addf %64, %61 : vector<8x30xf32>
    %c0_41 = arith.constant 0 : index
    %c0_42 = arith.constant 0 : index
    %66 = vector.load %arg10[%c0_41, %c0_42] : memref<8x30xf32, #tpu.memory_space<vmem>>, vector<8x30xf32>
    tpu.vector_store %arg10[%c0_41, %c0_42], %65 {strides = array<i32>} : memref<8x30xf32, #tpu.memory_space<vmem>>, vector<8x30xf32>,
    %cst_43 = arith.constant 5.000000e-01 : f32
    %67 = vector.broadcast %cst_43 : f32 to vector<8x30xf32>
    %68 = arith.cmpf ogt, %65, %67 : vector<8x30xf32>
    %69 = arith.extui %68 : vector<8x30xi1> to vector<8x30xi32>
    %70 = arith.sitofp %69 : vector<8x30xi32> to vector<8x30xf32>
    %c32 = arith.constant 32 : index
    %c0_44 = arith.constant 0 : index
    %71 = vector.load %arg13[%c32, %c0_44] : memref<160x30xf32, #tpu.memory_space<vmem>>, vector<8x30xf32>
    tpu.vector_store %arg13[%c32, %c0_44], %70 {strides = array<i32>} : memref<160x30xf32, #tpu.memory_space<vmem>>, vector<8x30xf32>,
    %72 = vector.extract_strided_slice %16 {offsets = [40, 30], sizes = [8, 30], strides = [1, 1]} : vector<160x60xf32> to vector<8x30xf32>
    %c0_45 = arith.constant 0 : index
    %c0_46 = arith.constant 0 : index
    %73 = vector.load %arg10[%c0_45, %c0_46] : memref<8x30xf32, #tpu.memory_space<vmem>>, vector<8x30xf32>
    %cst_47 = arith.constant 2.000000e-01 : f32
    %74 = vector.broadcast %cst_47 : f32 to vector<8x30xf32>
    %75 = arith.mulf %73, %74 : vector<8x30xf32>
    %76 = arith.addf %75, %72 : vector<8x30xf32>
    %c0_48 = arith.constant 0 : index
    %c0_49 = arith.constant 0 : index
    %77 = vector.load %arg10[%c0_48, %c0_49] : memref<8x30xf32, #tpu.memory_space<vmem>>, vector<8x30xf32>
    tpu.vector_store %arg10[%c0_48, %c0_49], %76 {strides = array<i32>} : memref<8x30xf32, #tpu.memory_space<vmem>>, vector<8x30xf32>,
    %cst_50 = arith.constant 5.000000e-01 : f32
    %78 = vector.broadcast %cst_50 : f32 to vector<8x30xf32>
    %79 = arith.cmpf ogt, %76, %78 : vector<8x30xf32>
    %80 = arith.extui %79 : vector<8x30xi1> to vector<8x30xi32>
    %81 = arith.sitofp %80 : vector<8x30xi32> to vector<8x30xf32>
    %c40 = arith.constant 40 : index
    %c0_51 = arith.constant 0 : index
    %82 = vector.load %arg13[%c40, %c0_51] : memref<160x30xf32, #tpu.memory_space<vmem>>, vector<8x30xf32>
    tpu.vector_store %arg13[%c40, %c0_51], %81 {strides = array<i32>} : memref<160x30xf32, #tpu.memory_space<vmem>>, vector<8x30xf32>,
    %83 = vector.extract_strided_slice %16 {offsets = [48, 0], sizes = [8, 30], strides = [1, 1]} : vector<160x60xf32> to vector<8x30xf32>
    %c0_52 = arith.constant 0 : index
    %c0_53 = arith.constant 0 : index
    %84 = vector.load %arg10[%c0_52, %c0_53] : memref<8x30xf32, #tpu.memory_space<vmem>>, vector<8x30xf32>
    %cst_54 = arith.constant 2.000000e-01 : f32
    %85 = vector.broadcast %cst_54 : f32 to vector<8x30xf32>
    %86 = arith.mulf %84, %85 : vector<8x30xf32>
    %87 = arith.addf %86, %83 : vector<8x30xf32>
    %c0_55 = arith.constant 0 : index
    %c0_56 = arith.constant 0 : index
    %88 = vector.load %arg10[%c0_55, %c0_56] : memref<8x30xf32, #tpu.memory_space<vmem>>, vector<8x30xf32>
    tpu.vector_store %arg10[%c0_55, %c0_56], %87 {strides = array<i32>} : memref<8x30xf32, #tpu.memory_space<vmem>>, vector<8x30xf32>,
    %cst_57 = arith.constant 5.000000e-01 : f32
    %89 = vector.broadcast %cst_57 : f32 to vector<8x30xf32>
    %90 = arith.cmpf ogt, %87, %89 : vector<8x30xf32>
    %91 = arith.extui %90 : vector<8x30xi1> to vector<8x30xi32>
    %92 = arith.sitofp %91 : vector<8x30xi32> to vector<8x30xf32>
    %c48 = arith.constant 48 : index
    %c0_58 = arith.constant 0 : index
    %93 = vector.load %arg13[%c48, %c0_58] : memref<160x30xf32, #tpu.memory_space<vmem>>, vector<8x30xf32>
    tpu.vector_store %arg13[%c48, %c0_58], %92 {strides = array<i32>} : memref<160x30xf32, #tpu.memory_space<vmem>>, vector<8x30xf32>,
    %94 = vector.extract_strided_slice %16 {offsets = [56, 30], sizes = [8, 30], strides = [1, 1]} : vector<160x60xf32> to vector<8x30xf32>
    %c0_59 = arith.constant 0 : index
    %c0_60 = arith.constant 0 : index
    %95 = vector.load %arg10[%c0_59, %c0_60] : memref<8x30xf32, #tpu.memory_space<vmem>>, vector<8x30xf32>
    %cst_61 = arith.constant 2.000000e-01 : f32
    %96 = vector.broadcast %cst_61 : f32 to vector<8x30xf32>
    %97 = arith.mulf %95, %96 : vector<8x30xf32>
    %98 = arith.addf %97, %94 : vector<8x30xf32>
    %c0_62 = arith.constant 0 : index
    %c0_63 = arith.constant 0 : index
    %99 = vector.load %arg10[%c0_62, %c0_63] : memref<8x30xf32, #tpu.memory_space<vmem>>, vector<8x30xf32>
    tpu.vector_store %arg10[%c0_62, %c0_63], %98 {strides = array<i32>} : memref<8x30xf32, #tpu.memory_space<vmem>>, vector<8x30xf32>,
    %cst_64 = arith.constant 5.000000e-01 : f32
    %100 = vector.broadcast %cst_64 : f32 to vector<8x30xf32>
    %101 = arith.cmpf ogt, %98, %100 : vector<8x30xf32>
    %102 = arith.extui %101 : vector<8x30xi1> to vector<8x30xi32>
    %103 = arith.sitofp %102 : vector<8x30xi32> to vector<8x30xf32>
    %c56 = arith.constant 56 : index
    %c0_65 = arith.constant 0 : index
    %104 = vector.load %arg13[%c56, %c0_65] : memref<160x30xf32, #tpu.memory_space<vmem>>, vector<8x30xf32>
    tpu.vector_store %arg13[%c56, %c0_65], %103 {strides = array<i32>} : memref<160x30xf32, #tpu.memory_space<vmem>>, vector<8x30xf32>,
    %105 = vector.extract_strided_slice %16 {offsets = [64, 0], sizes = [8, 30], strides = [1, 1]} : vector<160x60xf32> to vector<8x30xf32>
    %c0_66 = arith.constant 0 : index
    %c0_67 = arith.constant 0 : index
    %106 = vector.load %arg10[%c0_66, %c0_67] : memref<8x30xf32, #tpu.memory_space<vmem>>, vector<8x30xf32>
    %cst_68 = arith.constant 2.000000e-01 : f32
    %107 = vector.broadcast %cst_68 : f32 to vector<8x30xf32>
    %108 = arith.mulf %106, %107 : vector<8x30xf32>
    %109 = arith.addf %108, %105 : vector<8x30xf32>
    %c0_69 = arith.constant 0 : index
    %c0_70 = arith.constant 0 : index
    %110 = vector.load %arg10[%c0_69, %c0_70] : memref<8x30xf32, #tpu.memory_space<vmem>>, vector<8x30xf32>
    tpu.vector_store %arg10[%c0_69, %c0_70], %109 {strides = array<i32>} : memref<8x30xf32, #tpu.memory_space<vmem>>, vector<8x30xf32>,
    %cst_71 = arith.constant 5.000000e-01 : f32
    %111 = vector.broadcast %cst_71 : f32 to vector<8x30xf32>
    %112 = arith.cmpf ogt, %109, %111 : vector<8x30xf32>
    %113 = arith.extui %112 : vector<8x30xi1> to vector<8x30xi32>
    %114 = arith.sitofp %113 : vector<8x30xi32> to vector<8x30xf32>
    %c64 = arith.constant 64 : index
    %c0_72 = arith.constant 0 : index
    %115 = vector.load %arg13[%c64, %c0_72] : memref<160x30xf32, #tpu.memory_space<vmem>>, vector<8x30xf32>
    tpu.vector_store %arg13[%c64, %c0_72], %114 {strides = array<i32>} : memref<160x30xf32, #tpu.memory_space<vmem>>, vector<8x30xf32>,
    %116 = vector.extract_strided_slice %16 {offsets = [72, 30], sizes = [8, 30], strides = [1, 1]} : vector<160x60xf32> to vector<8x30xf32>
    %c0_73 = arith.constant 0 : index
    %c0_74 = arith.constant 0 : index
    %117 = vector.load %arg10[%c0_73, %c0_74] : memref<8x30xf32, #tpu.memory_space<vmem>>, vector<8x30xf32>
    %cst_75 = arith.constant 2.000000e-01 : f32
    %118 = vector.broadcast %cst_75 : f32 to vector<8x30xf32>
    %119 = arith.mulf %117, %118 : vector<8x30xf32>
    %120 = arith.addf %119, %116 : vector<8x30xf32>
    %c0_76 = arith.constant 0 : index
    %c0_77 = arith.constant 0 : index
    %121 = vector.load %arg10[%c0_76, %c0_77] : memref<8x30xf32, #tpu.memory_space<vmem>>, vector<8x30xf32>
    tpu.vector_store %arg10[%c0_76, %c0_77], %120 {strides = array<i32>} : memref<8x30xf32, #tpu.memory_space<vmem>>, vector<8x30xf32>,
    %cst_78 = arith.constant 5.000000e-01 : f32
    %122 = vector.broadcast %cst_78 : f32 to vector<8x30xf32>
    %123 = arith.cmpf ogt, %120, %122 : vector<8x30xf32>
    %124 = arith.extui %123 : vector<8x30xi1> to vector<8x30xi32>
    %125 = arith.sitofp %124 : vector<8x30xi32> to vector<8x30xf32>
    %c72 = arith.constant 72 : index
    %c0_79 = arith.constant 0 : index
    %126 = vector.load %arg13[%c72, %c0_79] : memref<160x30xf32, #tpu.memory_space<vmem>>, vector<8x30xf32>
    tpu.vector_store %arg13[%c72, %c0_79], %125 {strides = array<i32>} : memref<160x30xf32, #tpu.memory_space<vmem>>, vector<8x30xf32>,
    %127 = vector.extract_strided_slice %16 {offsets = [80, 0], sizes = [8, 30], strides = [1, 1]} : vector<160x60xf32> to vector<8x30xf32>
    %c0_80 = arith.constant 0 : index
    %c0_81 = arith.constant 0 : index
    %128 = vector.load %arg10[%c0_80, %c0_81] : memref<8x30xf32, #tpu.memory_space<vmem>>, vector<8x30xf32>
    %cst_82 = arith.constant 2.000000e-01 : f32
    %129 = vector.broadcast %cst_82 : f32 to vector<8x30xf32>
    %130 = arith.mulf %128, %129 : vector<8x30xf32>
    %131 = arith.addf %130, %127 : vector<8x30xf32>
    %c0_83 = arith.constant 0 : index
    %c0_84 = arith.constant 0 : index
    %132 = vector.load %arg10[%c0_83, %c0_84] : memref<8x30xf32, #tpu.memory_space<vmem>>, vector<8x30xf32>
    tpu.vector_store %arg10[%c0_83, %c0_84], %131 {strides = array<i32>} : memref<8x30xf32, #tpu.memory_space<vmem>>, vector<8x30xf32>,
    %cst_85 = arith.constant 5.000000e-01 : f32
    %133 = vector.broadcast %cst_85 : f32 to vector<8x30xf32>
    %134 = arith.cmpf ogt, %131, %133 : vector<8x30xf32>
    %135 = arith.extui %134 : vector<8x30xi1> to vector<8x30xi32>
    %136 = arith.sitofp %135 : vector<8x30xi32> to vector<8x30xf32>
    %c80 = arith.constant 80 : index
    %c0_86 = arith.constant 0 : index
    %137 = vector.load %arg13[%c80, %c0_86] : memref<160x30xf32, #tpu.memory_space<vmem>>, vector<8x30xf32>
    tpu.vector_store %arg13[%c80, %c0_86], %136 {strides = array<i32>} : memref<160x30xf32, #tpu.memory_space<vmem>>, vector<8x30xf32>,
    %138 = vector.extract_strided_slice %16 {offsets = [88, 30], sizes = [8, 30], strides = [1, 1]} : vector<160x60xf32> to vector<8x30xf32>
    %c0_87 = arith.constant 0 : index
    %c0_88 = arith.constant 0 : index
    %139 = vector.load %arg10[%c0_87, %c0_88] : memref<8x30xf32, #tpu.memory_space<vmem>>, vector<8x30xf32>
    %cst_89 = arith.constant 2.000000e-01 : f32
    %140 = vector.broadcast %cst_89 : f32 to vector<8x30xf32>
    %141 = arith.mulf %139, %140 : vector<8x30xf32>
    %142 = arith.addf %141, %138 : vector<8x30xf32>
    %c0_90 = arith.constant 0 : index
    %c0_91 = arith.constant 0 : index
    %143 = vector.load %arg10[%c0_90, %c0_91] : memref<8x30xf32, #tpu.memory_space<vmem>>, vector<8x30xf32>
    tpu.vector_store %arg10[%c0_90, %c0_91], %142 {strides = array<i32>} : memref<8x30xf32, #tpu.memory_space<vmem>>, vector<8x30xf32>,
    %cst_92 = arith.constant 5.000000e-01 : f32
    %144 = vector.broadcast %cst_92 : f32 to vector<8x30xf32>
    %145 = arith.cmpf ogt, %142, %144 : vector<8x30xf32>
    %146 = arith.extui %145 : vector<8x30xi1> to vector<8x30xi32>
    %147 = arith.sitofp %146 : vector<8x30xi32> to vector<8x30xf32>
    %c88 = arith.constant 88 : index
    %c0_93 = arith.constant 0 : index
    %148 = vector.load %arg13[%c88, %c0_93] : memref<160x30xf32, #tpu.memory_space<vmem>>, vector<8x30xf32>
    tpu.vector_store %arg13[%c88, %c0_93], %147 {strides = array<i32>} : memref<160x30xf32, #tpu.memory_space<vmem>>, vector<8x30xf32>,
    %149 = vector.extract_strided_slice %16 {offsets = [96, 0], sizes = [8, 30], strides = [1, 1]} : vector<160x60xf32> to vector<8x30xf32>
    %c0_94 = arith.constant 0 : index
    %c0_95 = arith.constant 0 : index
    %150 = vector.load %arg10[%c0_94, %c0_95] : memref<8x30xf32, #tpu.memory_space<vmem>>, vector<8x30xf32>
    %cst_96 = arith.constant 2.000000e-01 : f32
    %151 = vector.broadcast %cst_96 : f32 to vector<8x30xf32>
    %152 = arith.mulf %150, %151 : vector<8x30xf32>
    %153 = arith.addf %152, %149 : vector<8x30xf32>
    %c0_97 = arith.constant 0 : index
    %c0_98 = arith.constant 0 : index
    %154 = vector.load %arg10[%c0_97, %c0_98] : memref<8x30xf32, #tpu.memory_space<vmem>>, vector<8x30xf32>
    tpu.vector_store %arg10[%c0_97, %c0_98], %153 {strides = array<i32>} : memref<8x30xf32, #tpu.memory_space<vmem>>, vector<8x30xf32>,
    %cst_99 = arith.constant 5.000000e-01 : f32
    %155 = vector.broadcast %cst_99 : f32 to vector<8x30xf32>
    %156 = arith.cmpf ogt, %153, %155 : vector<8x30xf32>
    %157 = arith.extui %156 : vector<8x30xi1> to vector<8x30xi32>
    %158 = arith.sitofp %157 : vector<8x30xi32> to vector<8x30xf32>
    %c96 = arith.constant 96 : index
    %c0_100 = arith.constant 0 : index
    %159 = vector.load %arg13[%c96, %c0_100] : memref<160x30xf32, #tpu.memory_space<vmem>>, vector<8x30xf32>
    tpu.vector_store %arg13[%c96, %c0_100], %158 {strides = array<i32>} : memref<160x30xf32, #tpu.memory_space<vmem>>, vector<8x30xf32>,
    %160 = vector.extract_strided_slice %16 {offsets = [104, 30], sizes = [8, 30], strides = [1, 1]} : vector<160x60xf32> to vector<8x30xf32>
    %c0_101 = arith.constant 0 : index
    %c0_102 = arith.constant 0 : index
    %161 = vector.load %arg10[%c0_101, %c0_102] : memref<8x30xf32, #tpu.memory_space<vmem>>, vector<8x30xf32>
    %cst_103 = arith.constant 2.000000e-01 : f32
    %162 = vector.broadcast %cst_103 : f32 to vector<8x30xf32>
    %163 = arith.mulf %161, %162 : vector<8x30xf32>
    %164 = arith.addf %163, %160 : vector<8x30xf32>
    %c0_104 = arith.constant 0 : index
    %c0_105 = arith.constant 0 : index
    %165 = vector.load %arg10[%c0_104, %c0_105] : memref<8x30xf32, #tpu.memory_space<vmem>>, vector<8x30xf32>
    tpu.vector_store %arg10[%c0_104, %c0_105], %164 {strides = array<i32>} : memref<8x30xf32, #tpu.memory_space<vmem>>, vector<8x30xf32>,
    %cst_106 = arith.constant 5.000000e-01 : f32
    %166 = vector.broadcast %cst_106 : f32 to vector<8x30xf32>
    %167 = arith.cmpf ogt, %164, %166 : vector<8x30xf32>
    %168 = arith.extui %167 : vector<8x30xi1> to vector<8x30xi32>
    %169 = arith.sitofp %168 : vector<8x30xi32> to vector<8x30xf32>
    %c104 = arith.constant 104 : index
    %c0_107 = arith.constant 0 : index
    %170 = vector.load %arg13[%c104, %c0_107] : memref<160x30xf32, #tpu.memory_space<vmem>>, vector<8x30xf32>
    tpu.vector_store %arg13[%c104, %c0_107], %169 {strides = array<i32>} : memref<160x30xf32, #tpu.memory_space<vmem>>, vector<8x30xf32>,
    %171 = vector.extract_strided_slice %16 {offsets = [112, 0], sizes = [8, 30], strides = [1, 1]} : vector<160x60xf32> to vector<8x30xf32>
    %c0_108 = arith.constant 0 : index
    %c0_109 = arith.constant 0 : index
    %172 = vector.load %arg10[%c0_108, %c0_109] : memref<8x30xf32, #tpu.memory_space<vmem>>, vector<8x30xf32>
    %cst_110 = arith.constant 2.000000e-01 : f32
    %173 = vector.broadcast %cst_110 : f32 to vector<8x30xf32>
    %174 = arith.mulf %172, %173 : vector<8x30xf32>
    %175 = arith.addf %174, %171 : vector<8x30xf32>
    %c0_111 = arith.constant 0 : index
    %c0_112 = arith.constant 0 : index
    %176 = vector.load %arg10[%c0_111, %c0_112] : memref<8x30xf32, #tpu.memory_space<vmem>>, vector<8x30xf32>
    tpu.vector_store %arg10[%c0_111, %c0_112], %175 {strides = array<i32>} : memref<8x30xf32, #tpu.memory_space<vmem>>, vector<8x30xf32>,
    %cst_113 = arith.constant 5.000000e-01 : f32
    %177 = vector.broadcast %cst_113 : f32 to vector<8x30xf32>
    %178 = arith.cmpf ogt, %175, %177 : vector<8x30xf32>
    %179 = arith.extui %178 : vector<8x30xi1> to vector<8x30xi32>
    %180 = arith.sitofp %179 : vector<8x30xi32> to vector<8x30xf32>
    %c112 = arith.constant 112 : index
    %c0_114 = arith.constant 0 : index
    %181 = vector.load %arg13[%c112, %c0_114] : memref<160x30xf32, #tpu.memory_space<vmem>>, vector<8x30xf32>
    tpu.vector_store %arg13[%c112, %c0_114], %180 {strides = array<i32>} : memref<160x30xf32, #tpu.memory_space<vmem>>, vector<8x30xf32>,
    %182 = vector.extract_strided_slice %16 {offsets = [120, 30], sizes = [8, 30], strides = [1, 1]} : vector<160x60xf32> to vector<8x30xf32>
    %c0_115 = arith.constant 0 : index
    %c0_116 = arith.constant 0 : index
    %183 = vector.load %arg10[%c0_115, %c0_116] : memref<8x30xf32, #tpu.memory_space<vmem>>, vector<8x30xf32>
    %cst_117 = arith.constant 2.000000e-01 : f32
    %184 = vector.broadcast %cst_117 : f32 to vector<8x30xf32>
    %185 = arith.mulf %183, %184 : vector<8x30xf32>
    %186 = arith.addf %185, %182 : vector<8x30xf32>
    %c0_118 = arith.constant 0 : index
    %c0_119 = arith.constant 0 : index
    %187 = vector.load %arg10[%c0_118, %c0_119] : memref<8x30xf32, #tpu.memory_space<vmem>>, vector<8x30xf32>
    tpu.vector_store %arg10[%c0_118, %c0_119], %186 {strides = array<i32>} : memref<8x30xf32, #tpu.memory_space<vmem>>, vector<8x30xf32>,
    %cst_120 = arith.constant 5.000000e-01 : f32
    %188 = vector.broadcast %cst_120 : f32 to vector<8x30xf32>
    %189 = arith.cmpf ogt, %186, %188 : vector<8x30xf32>
    %190 = arith.extui %189 : vector<8x30xi1> to vector<8x30xi32>
    %191 = arith.sitofp %190 : vector<8x30xi32> to vector<8x30xf32>
    %c120 = arith.constant 120 : index
    %c0_121 = arith.constant 0 : index
    %192 = vector.load %arg13[%c120, %c0_121] : memref<160x30xf32, #tpu.memory_space<vmem>>, vector<8x30xf32>
    tpu.vector_store %arg13[%c120, %c0_121], %191 {strides = array<i32>} : memref<160x30xf32, #tpu.memory_space<vmem>>, vector<8x30xf32>,
    %193 = vector.extract_strided_slice %16 {offsets = [128, 0], sizes = [8, 30], strides = [1, 1]} : vector<160x60xf32> to vector<8x30xf32>
    %c0_122 = arith.constant 0 : index
    %c0_123 = arith.constant 0 : index
    %194 = vector.load %arg10[%c0_122, %c0_123] : memref<8x30xf32, #tpu.memory_space<vmem>>, vector<8x30xf32>
    %cst_124 = arith.constant 2.000000e-01 : f32
    %195 = vector.broadcast %cst_124 : f32 to vector<8x30xf32>
    %196 = arith.mulf %194, %195 : vector<8x30xf32>
    %197 = arith.addf %196, %193 : vector<8x30xf32>
    %c0_125 = arith.constant 0 : index
    %c0_126 = arith.constant 0 : index
    %198 = vector.load %arg10[%c0_125, %c0_126] : memref<8x30xf32, #tpu.memory_space<vmem>>, vector<8x30xf32>
    tpu.vector_store %arg10[%c0_125, %c0_126], %197 {strides = array<i32>} : memref<8x30xf32, #tpu.memory_space<vmem>>, vector<8x30xf32>,
    %cst_127 = arith.constant 5.000000e-01 : f32
    %199 = vector.broadcast %cst_127 : f32 to vector<8x30xf32>
    %200 = arith.cmpf ogt, %197, %199 : vector<8x30xf32>
    %201 = arith.extui %200 : vector<8x30xi1> to vector<8x30xi32>
    %202 = arith.sitofp %201 : vector<8x30xi32> to vector<8x30xf32>
    %c128 = arith.constant 128 : index
    %c0_128 = arith.constant 0 : index
    %203 = vector.load %arg13[%c128, %c0_128] : memref<160x30xf32, #tpu.memory_space<vmem>>, vector<8x30xf32>
    tpu.vector_store %arg13[%c128, %c0_128], %202 {strides = array<i32>} : memref<160x30xf32, #tpu.memory_space<vmem>>, vector<8x30xf32>,
    %204 = vector.extract_strided_slice %16 {offsets = [136, 30], sizes = [8, 30], strides = [1, 1]} : vector<160x60xf32> to vector<8x30xf32>
    %c0_129 = arith.constant 0 : index
    %c0_130 = arith.constant 0 : index
    %205 = vector.load %arg10[%c0_129, %c0_130] : memref<8x30xf32, #tpu.memory_space<vmem>>, vector<8x30xf32>
    %cst_131 = arith.constant 2.000000e-01 : f32
    %206 = vector.broadcast %cst_131 : f32 to vector<8x30xf32>
    %207 = arith.mulf %205, %206 : vector<8x30xf32>
    %208 = arith.addf %207, %204 : vector<8x30xf32>
    %c0_132 = arith.constant 0 : index
    %c0_133 = arith.constant 0 : index
    %209 = vector.load %arg10[%c0_132, %c0_133] : memref<8x30xf32, #tpu.memory_space<vmem>>, vector<8x30xf32>
    tpu.vector_store %arg10[%c0_132, %c0_133], %208 {strides = array<i32>} : memref<8x30xf32, #tpu.memory_space<vmem>>, vector<8x30xf32>,
    %cst_134 = arith.constant 5.000000e-01 : f32
    %210 = vector.broadcast %cst_134 : f32 to vector<8x30xf32>
    %211 = arith.cmpf ogt, %208, %210 : vector<8x30xf32>
    %212 = arith.extui %211 : vector<8x30xi1> to vector<8x30xi32>
    %213 = arith.sitofp %212 : vector<8x30xi32> to vector<8x30xf32>
    %c136 = arith.constant 136 : index
    %c0_135 = arith.constant 0 : index
    %214 = vector.load %arg13[%c136, %c0_135] : memref<160x30xf32, #tpu.memory_space<vmem>>, vector<8x30xf32>
    tpu.vector_store %arg13[%c136, %c0_135], %213 {strides = array<i32>} : memref<160x30xf32, #tpu.memory_space<vmem>>, vector<8x30xf32>,
    %215 = vector.extract_strided_slice %16 {offsets = [144, 0], sizes = [8, 30], strides = [1, 1]} : vector<160x60xf32> to vector<8x30xf32>
    %c0_136 = arith.constant 0 : index
    %c0_137 = arith.constant 0 : index
    %216 = vector.load %arg10[%c0_136, %c0_137] : memref<8x30xf32, #tpu.memory_space<vmem>>, vector<8x30xf32>
    %cst_138 = arith.constant 2.000000e-01 : f32
    %217 = vector.broadcast %cst_138 : f32 to vector<8x30xf32>
    %218 = arith.mulf %216, %217 : vector<8x30xf32>
    %219 = arith.addf %218, %215 : vector<8x30xf32>
    %c0_139 = arith.constant 0 : index
    %c0_140 = arith.constant 0 : index
    %220 = vector.load %arg10[%c0_139, %c0_140] : memref<8x30xf32, #tpu.memory_space<vmem>>, vector<8x30xf32>
    tpu.vector_store %arg10[%c0_139, %c0_140], %219 {strides = array<i32>} : memref<8x30xf32, #tpu.memory_space<vmem>>, vector<8x30xf32>,
    %cst_141 = arith.constant 5.000000e-01 : f32
    %221 = vector.broadcast %cst_141 : f32 to vector<8x30xf32>
    %222 = arith.cmpf ogt, %219, %221 : vector<8x30xf32>
    %223 = arith.extui %222 : vector<8x30xi1> to vector<8x30xi32>
    %224 = arith.sitofp %223 : vector<8x30xi32> to vector<8x30xf32>
    %c144 = arith.constant 144 : index
    %c0_142 = arith.constant 0 : index
    %225 = vector.load %arg13[%c144, %c0_142] : memref<160x30xf32, #tpu.memory_space<vmem>>, vector<8x30xf32>
    tpu.vector_store %arg13[%c144, %c0_142], %224 {strides = array<i32>} : memref<160x30xf32, #tpu.memory_space<vmem>>, vector<8x30xf32>,
    %226 = vector.extract_strided_slice %16 {offsets = [152, 30], sizes = [8, 30], strides = [1, 1]} : vector<160x60xf32> to vector<8x30xf32>
    %c0_143 = arith.constant 0 : index
    %c0_144 = arith.constant 0 : index
    %227 = vector.load %arg10[%c0_143, %c0_144] : memref<8x30xf32, #tpu.memory_space<vmem>>, vector<8x30xf32>
    %cst_145 = arith.constant 2.000000e-01 : f32
    %228 = vector.broadcast %cst_145 : f32 to vector<8x30xf32>
    %229 = arith.mulf %227, %228 : vector<8x30xf32>
    %230 = arith.addf %229, %226 : vector<8x30xf32>
    %c0_146 = arith.constant 0 : index
    %c0_147 = arith.constant 0 : index
    %231 = vector.load %arg10[%c0_146, %c0_147] : memref<8x30xf32, #tpu.memory_space<vmem>>, vector<8x30xf32>
    tpu.vector_store %arg10[%c0_146, %c0_147], %230 {strides = array<i32>} : memref<8x30xf32, #tpu.memory_space<vmem>>, vector<8x30xf32>,
    %cst_148 = arith.constant 5.000000e-01 : f32
    %232 = vector.broadcast %cst_148 : f32 to vector<8x30xf32>
    %233 = arith.cmpf ogt, %230, %232 : vector<8x30xf32>
    %234 = arith.extui %233 : vector<8x30xi1> to vector<8x30xi32>
    %235 = arith.sitofp %234 : vector<8x30xi32> to vector<8x30xf32>
    %c152 = arith.constant 152 : index
    %c0_149 = arith.constant 0 : index
    %236 = vector.load %arg13[%c152, %c0_149] : memref<160x30xf32, #tpu.memory_space<vmem>>, vector<8x30xf32>
    tpu.vector_store %arg13[%c152, %c0_149], %235 {strides = array<i32>} : memref<160x30xf32, #tpu.memory_space<vmem>>, vector<8x30xf32>,
    %c0_150 = arith.constant 0 : index
    %c0_151 = arith.constant 0 : index
    %237 = vector.load %arg13[%c0_150, %c0_151] : memref<160x30xf32, #tpu.memory_space<vmem>>, vector<160x30xf32>
    %238 = arith.truncf %237 : vector<160x30xf32> to vector<160x30xbf16>
    %c0_152 = arith.constant 0 : index
    %c0_153 = arith.constant 0 : index
    %239 = vector.load %arg6[%c0_152, %c0_153] : memref<30x10xbf16, #tpu.memory_space<vmem>>, vector<30x10xbf16>
    %cst_154 = arith.constant dense<0.000000e+00> : vector<160x10xf32>
    %240 = tpu.matmul %238, %239, %cst_154 {dimension_numbers = #tpu.dot_dimension_numbers<[1], [0], [0], [1], [0, 0, 1, 1], [], []>} : vector<160x30xbf16>, vector<30x10xbf16>, vector<160x10xf32> -> vector<160x10xf32>
    %c0_155 = arith.constant 0 : index
    %c0_156 = arith.constant 0 : index
    %241 = vector.load %arg7[%c0_155, %c0_156] : memref<1x10xf32, #tpu.memory_space<vmem>>, vector<1x10xf32>
    %242 = vector.broadcast %241 : vector<1x10xf32> to vector<160x10xf32>
    %243 = arith.addf %240, %242 : vector<160x10xf32>
    %244 = vector.extract_strided_slice %243 {offsets = [0, 0], sizes = [8, 5], strides = [1, 1]} : vector<160x10xf32> to vector<8x5xf32>
    %c0_157 = arith.constant 0 : index
    %c0_158 = arith.constant 0 : index
    %245 = vector.load %arg11[%c0_157, %c0_158] : memref<8x5xf32, #tpu.memory_space<vmem>>, vector<8x5xf32>
    %cst_159 = arith.constant 2.000000e-01 : f32
    %246 = vector.broadcast %cst_159 : f32 to vector<8x5xf32>
    %247 = arith.mulf %245, %246 : vector<8x5xf32>
    %248 = arith.addf %247, %244 : vector<8x5xf32>
    %c0_160 = arith.constant 0 : index
    %c0_161 = arith.constant 0 : index
    %249 = vector.load %arg11[%c0_160, %c0_161] : memref<8x5xf32, #tpu.memory_space<vmem>>, vector<8x5xf32>
    tpu.vector_store %arg11[%c0_160, %c0_161], %248 {strides = array<i32>} : memref<8x5xf32, #tpu.memory_space<vmem>>, vector<8x5xf32>,
    %c0_162 = arith.constant 0 : index
    %c0_163 = arith.constant 0 : index
    %c0_164 = arith.constant 0 : index
    %250 = vector.load %arg12[%c0_162, %c0_163, %c0_164] : memref<2x8x5xf32, #tpu.memory_space<vmem>>, vector<1x8x5xf32>
    %251 = vector.shape_cast %250 : vector<1x8x5xf32> to vector<8x5xf32>
    %cst_165 = arith.constant 5.000000e-01 : f32
    %252 = vector.broadcast %cst_165 : f32 to vector<8x5xf32>
    %253 = arith.cmpf ogt, %248, %252 : vector<8x5xf32>
    %254 = arith.extui %253 : vector<8x5xi1> to vector<8x5xi32>
    %255 = arith.sitofp %254 : vector<8x5xi32> to vector<8x5xf32>
    %256 = arith.addf %251, %255 : vector<8x5xf32>
    %c0_166 = arith.constant 0 : index
    %c0_167 = arith.constant 0 : index
    %c0_168 = arith.constant 0 : index
    %257 = vector.load %arg12[%c0_166, %c0_167, %c0_168] : memref<2x8x5xf32, #tpu.memory_space<vmem>>, vector<1x8x5xf32>
    %258 = vector.shape_cast %257 : vector<1x8x5xf32> to vector<8x5xf32>
    %259 = vector.shape_cast %256 : vector<8x5xf32> to vector<1x8x5xf32>
    tpu.vector_store %arg12[%c0_166, %c0_167, %c0_168], %259 {strides = array<i32>} : memref<2x8x5xf32, #tpu.memory_space<vmem>>, vector<1x8x5xf32>,
    %260 = vector.extract_strided_slice %243 {offsets = [8, 5], sizes = [8, 5], strides = [1, 1]} : vector<160x10xf32> to vector<8x5xf32>
    %c0_169 = arith.constant 0 : index
    %c0_170 = arith.constant 0 : index
    %261 = vector.load %arg11[%c0_169, %c0_170] : memref<8x5xf32, #tpu.memory_space<vmem>>, vector<8x5xf32>
    %cst_171 = arith.constant 2.000000e-01 : f32
    %262 = vector.broadcast %cst_171 : f32 to vector<8x5xf32>
    %263 = arith.mulf %261, %262 : vector<8x5xf32>
    %264 = arith.addf %263, %260 : vector<8x5xf32>
    %c0_172 = arith.constant 0 : index
    %c0_173 = arith.constant 0 : index
    %265 = vector.load %arg11[%c0_172, %c0_173] : memref<8x5xf32, #tpu.memory_space<vmem>>, vector<8x5xf32>
    tpu.vector_store %arg11[%c0_172, %c0_173], %264 {strides = array<i32>} : memref<8x5xf32, #tpu.memory_space<vmem>>, vector<8x5xf32>,
    %c1 = arith.constant 1 : index
    %c0_174 = arith.constant 0 : index
    %c0_175 = arith.constant 0 : index
    %266 = vector.load %arg12[%c1, %c0_174, %c0_175] : memref<2x8x5xf32, #tpu.memory_space<vmem>>, vector<1x8x5xf32>
    %267 = vector.shape_cast %266 : vector<1x8x5xf32> to vector<8x5xf32>
    %cst_176 = arith.constant 5.000000e-01 : f32
    %268 = vector.broadcast %cst_176 : f32 to vector<8x5xf32>
    %269 = arith.cmpf ogt, %264, %268 : vector<8x5xf32>
    %270 = arith.extui %269 : vector<8x5xi1> to vector<8x5xi32>
    %271 = arith.sitofp %270 : vector<8x5xi32> to vector<8x5xf32>
    %272 = arith.addf %267, %271 : vector<8x5xf32>
    %c1_177 = arith.constant 1 : index
    %c0_178 = arith.constant 0 : index
    %c0_179 = arith.constant 0 : index
    %273 = vector.load %arg12[%c1_177, %c0_178, %c0_179] : memref<2x8x5xf32, #tpu.memory_space<vmem>>, vector<1x8x5xf32>
    %274 = vector.shape_cast %273 : vector<1x8x5xf32> to vector<8x5xf32>
    %275 = vector.shape_cast %272 : vector<8x5xf32> to vector<1x8x5xf32>
    tpu.vector_store %arg12[%c1_177, %c0_178, %c0_179], %275 {strides = array<i32>} : memref<2x8x5xf32, #tpu.memory_space<vmem>>, vector<1x8x5xf32>,
    %276 = vector.extract_strided_slice %243 {offsets = [16, 0], sizes = [8, 5], strides = [1, 1]} : vector<160x10xf32> to vector<8x5xf32>
    %c0_180 = arith.constant 0 : index
    %c0_181 = arith.constant 0 : index
    %277 = vector.load %arg11[%c0_180, %c0_181] : memref<8x5xf32, #tpu.memory_space<vmem>>, vector<8x5xf32>
    %cst_182 = arith.constant 2.000000e-01 : f32
    %278 = vector.broadcast %cst_182 : f32 to vector<8x5xf32>
    %279 = arith.mulf %277, %278 : vector<8x5xf32>
    %280 = arith.addf %279, %276 : vector<8x5xf32>
    %c0_183 = arith.constant 0 : index
    %c0_184 = arith.constant 0 : index
    %281 = vector.load %arg11[%c0_183, %c0_184] : memref<8x5xf32, #tpu.memory_space<vmem>>, vector<8x5xf32>
    tpu.vector_store %arg11[%c0_183, %c0_184], %280 {strides = array<i32>} : memref<8x5xf32, #tpu.memory_space<vmem>>, vector<8x5xf32>,
    %c0_185 = arith.constant 0 : index
    %c0_186 = arith.constant 0 : index
    %c0_187 = arith.constant 0 : index
    %282 = vector.load %arg12[%c0_185, %c0_186, %c0_187] : memref<2x8x5xf32, #tpu.memory_space<vmem>>, vector<1x8x5xf32>
    %283 = vector.shape_cast %282 : vector<1x8x5xf32> to vector<8x5xf32>
    %cst_188 = arith.constant 5.000000e-01 : f32
    %284 = vector.broadcast %cst_188 : f32 to vector<8x5xf32>
    %285 = arith.cmpf ogt, %280, %284 : vector<8x5xf32>
    %286 = arith.extui %285 : vector<8x5xi1> to vector<8x5xi32>
    %287 = arith.sitofp %286 : vector<8x5xi32> to vector<8x5xf32>
    %288 = arith.addf %283, %287 : vector<8x5xf32>
    %c0_189 = arith.constant 0 : index
    %c0_190 = arith.constant 0 : index
    %c0_191 = arith.constant 0 : index
    %289 = vector.load %arg12[%c0_189, %c0_190, %c0_191] : memref<2x8x5xf32, #tpu.memory_space<vmem>>, vector<1x8x5xf32>
    %290 = vector.shape_cast %289 : vector<1x8x5xf32> to vector<8x5xf32>
    %291 = vector.shape_cast %288 : vector<8x5xf32> to vector<1x8x5xf32>
    tpu.vector_store %arg12[%c0_189, %c0_190, %c0_191], %291 {strides = array<i32>} : memref<2x8x5xf32, #tpu.memory_space<vmem>>, vector<1x8x5xf32>,
    %292 = vector.extract_strided_slice %243 {offsets = [24, 5], sizes = [8, 5], strides = [1, 1]} : vector<160x10xf32> to vector<8x5xf32>
    %c0_192 = arith.constant 0 : index
    %c0_193 = arith.constant 0 : index
    %293 = vector.load %arg11[%c0_192, %c0_193] : memref<8x5xf32, #tpu.memory_space<vmem>>, vector<8x5xf32>
    %cst_194 = arith.constant 2.000000e-01 : f32
    %294 = vector.broadcast %cst_194 : f32 to vector<8x5xf32>
    %295 = arith.mulf %293, %294 : vector<8x5xf32>
    %296 = arith.addf %295, %292 : vector<8x5xf32>
    %c0_195 = arith.constant 0 : index
    %c0_196 = arith.constant 0 : index
    %297 = vector.load %arg11[%c0_195, %c0_196] : memref<8x5xf32, #tpu.memory_space<vmem>>, vector<8x5xf32>
    tpu.vector_store %arg11[%c0_195, %c0_196], %296 {strides = array<i32>} : memref<8x5xf32, #tpu.memory_space<vmem>>, vector<8x5xf32>,
    %c1_197 = arith.constant 1 : index
    %c0_198 = arith.constant 0 : index
    %c0_199 = arith.constant 0 : index
    %298 = vector.load %arg12[%c1_197, %c0_198, %c0_199] : memref<2x8x5xf32, #tpu.memory_space<vmem>>, vector<1x8x5xf32>
    %299 = vector.shape_cast %298 : vector<1x8x5xf32> to vector<8x5xf32>
    %cst_200 = arith.constant 5.000000e-01 : f32
    %300 = vector.broadcast %cst_200 : f32 to vector<8x5xf32>
    %301 = arith.cmpf ogt, %296, %300 : vector<8x5xf32>
    %302 = arith.extui %301 : vector<8x5xi1> to vector<8x5xi32>
    %303 = arith.sitofp %302 : vector<8x5xi32> to vector<8x5xf32>
    %304 = arith.addf %299, %303 : vector<8x5xf32>
    %c1_201 = arith.constant 1 : index
    %c0_202 = arith.constant 0 : index
    %c0_203 = arith.constant 0 : index
    %305 = vector.load %arg12[%c1_201, %c0_202, %c0_203] : memref<2x8x5xf32, #tpu.memory_space<vmem>>, vector<1x8x5xf32>
    %306 = vector.shape_cast %305 : vector<1x8x5xf32> to vector<8x5xf32>
    %307 = vector.shape_cast %304 : vector<8x5xf32> to vector<1x8x5xf32>
    tpu.vector_store %arg12[%c1_201, %c0_202, %c0_203], %307 {strides = array<i32>} : memref<2x8x5xf32, #tpu.memory_space<vmem>>, vector<1x8x5xf32>,
    %308 = vector.extract_strided_slice %243 {offsets = [32, 0], sizes = [8, 5], strides = [1, 1]} : vector<160x10xf32> to vector<8x5xf32>
    %c0_204 = arith.constant 0 : index
    %c0_205 = arith.constant 0 : index
    %309 = vector.load %arg11[%c0_204, %c0_205] : memref<8x5xf32, #tpu.memory_space<vmem>>, vector<8x5xf32>
    %cst_206 = arith.constant 2.000000e-01 : f32
    %310 = vector.broadcast %cst_206 : f32 to vector<8x5xf32>
    %311 = arith.mulf %309, %310 : vector<8x5xf32>
    %312 = arith.addf %311, %308 : vector<8x5xf32>
    %c0_207 = arith.constant 0 : index
    %c0_208 = arith.constant 0 : index
    %313 = vector.load %arg11[%c0_207, %c0_208] : memref<8x5xf32, #tpu.memory_space<vmem>>, vector<8x5xf32>
    tpu.vector_store %arg11[%c0_207, %c0_208], %312 {strides = array<i32>} : memref<8x5xf32, #tpu.memory_space<vmem>>, vector<8x5xf32>,
    %c0_209 = arith.constant 0 : index
    %c0_210 = arith.constant 0 : index
    %c0_211 = arith.constant 0 : index
    %314 = vector.load %arg12[%c0_209, %c0_210, %c0_211] : memref<2x8x5xf32, #tpu.memory_space<vmem>>, vector<1x8x5xf32>
    %315 = vector.shape_cast %314 : vector<1x8x5xf32> to vector<8x5xf32>
    %cst_212 = arith.constant 5.000000e-01 : f32
    %316 = vector.broadcast %cst_212 : f32 to vector<8x5xf32>
    %317 = arith.cmpf ogt, %312, %316 : vector<8x5xf32>
    %318 = arith.extui %317 : vector<8x5xi1> to vector<8x5xi32>
    %319 = arith.sitofp %318 : vector<8x5xi32> to vector<8x5xf32>
    %320 = arith.addf %315, %319 : vector<8x5xf32>
    %c0_213 = arith.constant 0 : index
    %c0_214 = arith.constant 0 : index
    %c0_215 = arith.constant 0 : index
    %321 = vector.load %arg12[%c0_213, %c0_214, %c0_215] : memref<2x8x5xf32, #tpu.memory_space<vmem>>, vector<1x8x5xf32>
    %322 = vector.shape_cast %321 : vector<1x8x5xf32> to vector<8x5xf32>
    %323 = vector.shape_cast %320 : vector<8x5xf32> to vector<1x8x5xf32>
    tpu.vector_store %arg12[%c0_213, %c0_214, %c0_215], %323 {strides = array<i32>} : memref<2x8x5xf32, #tpu.memory_space<vmem>>, vector<1x8x5xf32>,
    %324 = vector.extract_strided_slice %243 {offsets = [40, 5], sizes = [8, 5], strides = [1, 1]} : vector<160x10xf32> to vector<8x5xf32>
    %c0_216 = arith.constant 0 : index
    %c0_217 = arith.constant 0 : index
    %325 = vector.load %arg11[%c0_216, %c0_217] : memref<8x5xf32, #tpu.memory_space<vmem>>, vector<8x5xf32>
    %cst_218 = arith.constant 2.000000e-01 : f32
    %326 = vector.broadcast %cst_218 : f32 to vector<8x5xf32>
    %327 = arith.mulf %325, %326 : vector<8x5xf32>
    %328 = arith.addf %327, %324 : vector<8x5xf32>
    %c0_219 = arith.constant 0 : index
    %c0_220 = arith.constant 0 : index
    %329 = vector.load %arg11[%c0_219, %c0_220] : memref<8x5xf32, #tpu.memory_space<vmem>>, vector<8x5xf32>
    tpu.vector_store %arg11[%c0_219, %c0_220], %328 {strides = array<i32>} : memref<8x5xf32, #tpu.memory_space<vmem>>, vector<8x5xf32>,
    %c1_221 = arith.constant 1 : index
    %c0_222 = arith.constant 0 : index
    %c0_223 = arith.constant 0 : index
    %330 = vector.load %arg12[%c1_221, %c0_222, %c0_223] : memref<2x8x5xf32, #tpu.memory_space<vmem>>, vector<1x8x5xf32>
    %331 = vector.shape_cast %330 : vector<1x8x5xf32> to vector<8x5xf32>
    %cst_224 = arith.constant 5.000000e-01 : f32
    %332 = vector.broadcast %cst_224 : f32 to vector<8x5xf32>
    %333 = arith.cmpf ogt, %328, %332 : vector<8x5xf32>
    %334 = arith.extui %333 : vector<8x5xi1> to vector<8x5xi32>
    %335 = arith.sitofp %334 : vector<8x5xi32> to vector<8x5xf32>
    %336 = arith.addf %331, %335 : vector<8x5xf32>
    %c1_225 = arith.constant 1 : index
    %c0_226 = arith.constant 0 : index
    %c0_227 = arith.constant 0 : index
    %337 = vector.load %arg12[%c1_225, %c0_226, %c0_227] : memref<2x8x5xf32, #tpu.memory_space<vmem>>, vector<1x8x5xf32>
    %338 = vector.shape_cast %337 : vector<1x8x5xf32> to vector<8x5xf32>
    %339 = vector.shape_cast %336 : vector<8x5xf32> to vector<1x8x5xf32>
    tpu.vector_store %arg12[%c1_225, %c0_226, %c0_227], %339 {strides = array<i32>} : memref<2x8x5xf32, #tpu.memory_space<vmem>>, vector<1x8x5xf32>,
    %340 = vector.extract_strided_slice %243 {offsets = [48, 0], sizes = [8, 5], strides = [1, 1]} : vector<160x10xf32> to vector<8x5xf32>
    %c0_228 = arith.constant 0 : index
    %c0_229 = arith.constant 0 : index
    %341 = vector.load %arg11[%c0_228, %c0_229] : memref<8x5xf32, #tpu.memory_space<vmem>>, vector<8x5xf32>
    %cst_230 = arith.constant 2.000000e-01 : f32
    %342 = vector.broadcast %cst_230 : f32 to vector<8x5xf32>
    %343 = arith.mulf %341, %342 : vector<8x5xf32>
    %344 = arith.addf %343, %340 : vector<8x5xf32>
    %c0_231 = arith.constant 0 : index
    %c0_232 = arith.constant 0 : index
    %345 = vector.load %arg11[%c0_231, %c0_232] : memref<8x5xf32, #tpu.memory_space<vmem>>, vector<8x5xf32>
    tpu.vector_store %arg11[%c0_231, %c0_232], %344 {strides = array<i32>} : memref<8x5xf32, #tpu.memory_space<vmem>>, vector<8x5xf32>,
    %c0_233 = arith.constant 0 : index
    %c0_234 = arith.constant 0 : index
    %c0_235 = arith.constant 0 : index
    %346 = vector.load %arg12[%c0_233, %c0_234, %c0_235] : memref<2x8x5xf32, #tpu.memory_space<vmem>>, vector<1x8x5xf32>
    %347 = vector.shape_cast %346 : vector<1x8x5xf32> to vector<8x5xf32>
    %cst_236 = arith.constant 5.000000e-01 : f32
    %348 = vector.broadcast %cst_236 : f32 to vector<8x5xf32>
    %349 = arith.cmpf ogt, %344, %348 : vector<8x5xf32>
    %350 = arith.extui %349 : vector<8x5xi1> to vector<8x5xi32>
    %351 = arith.sitofp %350 : vector<8x5xi32> to vector<8x5xf32>
    %352 = arith.addf %347, %351 : vector<8x5xf32>
    %c0_237 = arith.constant 0 : index
    %c0_238 = arith.constant 0 : index
    %c0_239 = arith.constant 0 : index
    %353 = vector.load %arg12[%c0_237, %c0_238, %c0_239] : memref<2x8x5xf32, #tpu.memory_space<vmem>>, vector<1x8x5xf32>
    %354 = vector.shape_cast %353 : vector<1x8x5xf32> to vector<8x5xf32>
    %355 = vector.shape_cast %352 : vector<8x5xf32> to vector<1x8x5xf32>
    tpu.vector_store %arg12[%c0_237, %c0_238, %c0_239], %355 {strides = array<i32>} : memref<2x8x5xf32, #tpu.memory_space<vmem>>, vector<1x8x5xf32>,
    %356 = vector.extract_strided_slice %243 {offsets = [56, 5], sizes = [8, 5], strides = [1, 1]} : vector<160x10xf32> to vector<8x5xf32>
    %c0_240 = arith.constant 0 : index
    %c0_241 = arith.constant 0 : index
    %357 = vector.load %arg11[%c0_240, %c0_241] : memref<8x5xf32, #tpu.memory_space<vmem>>, vector<8x5xf32>
    %cst_242 = arith.constant 2.000000e-01 : f32
    %358 = vector.broadcast %cst_242 : f32 to vector<8x5xf32>
    %359 = arith.mulf %357, %358 : vector<8x5xf32>
    %360 = arith.addf %359, %356 : vector<8x5xf32>
    %c0_243 = arith.constant 0 : index
    %c0_244 = arith.constant 0 : index
    %361 = vector.load %arg11[%c0_243, %c0_244] : memref<8x5xf32, #tpu.memory_space<vmem>>, vector<8x5xf32>
    tpu.vector_store %arg11[%c0_243, %c0_244], %360 {strides = array<i32>} : memref<8x5xf32, #tpu.memory_space<vmem>>, vector<8x5xf32>,
    %c1_245 = arith.constant 1 : index
    %c0_246 = arith.constant 0 : index
    %c0_247 = arith.constant 0 : index
    %362 = vector.load %arg12[%c1_245, %c0_246, %c0_247] : memref<2x8x5xf32, #tpu.memory_space<vmem>>, vector<1x8x5xf32>
    %363 = vector.shape_cast %362 : vector<1x8x5xf32> to vector<8x5xf32>
    %cst_248 = arith.constant 5.000000e-01 : f32
    %364 = vector.broadcast %cst_248 : f32 to vector<8x5xf32>
    %365 = arith.cmpf ogt, %360, %364 : vector<8x5xf32>
    %366 = arith.extui %365 : vector<8x5xi1> to vector<8x5xi32>
    %367 = arith.sitofp %366 : vector<8x5xi32> to vector<8x5xf32>
    %368 = arith.addf %363, %367 : vector<8x5xf32>
    %c1_249 = arith.constant 1 : index
    %c0_250 = arith.constant 0 : index
    %c0_251 = arith.constant 0 : index
    %369 = vector.load %arg12[%c1_249, %c0_250, %c0_251] : memref<2x8x5xf32, #tpu.memory_space<vmem>>, vector<1x8x5xf32>
    %370 = vector.shape_cast %369 : vector<1x8x5xf32> to vector<8x5xf32>
    %371 = vector.shape_cast %368 : vector<8x5xf32> to vector<1x8x5xf32>
    tpu.vector_store %arg12[%c1_249, %c0_250, %c0_251], %371 {strides = array<i32>} : memref<2x8x5xf32, #tpu.memory_space<vmem>>, vector<1x8x5xf32>,
    %372 = vector.extract_strided_slice %243 {offsets = [64, 0], sizes = [8, 5], strides = [1, 1]} : vector<160x10xf32> to vector<8x5xf32>
    %c0_252 = arith.constant 0 : index
    %c0_253 = arith.constant 0 : index
    %373 = vector.load %arg11[%c0_252, %c0_253] : memref<8x5xf32, #tpu.memory_space<vmem>>, vector<8x5xf32>
    %cst_254 = arith.constant 2.000000e-01 : f32
    %374 = vector.broadcast %cst_254 : f32 to vector<8x5xf32>
    %375 = arith.mulf %373, %374 : vector<8x5xf32>
    %376 = arith.addf %375, %372 : vector<8x5xf32>
    %c0_255 = arith.constant 0 : index
    %c0_256 = arith.constant 0 : index
    %377 = vector.load %arg11[%c0_255, %c0_256] : memref<8x5xf32, #tpu.memory_space<vmem>>, vector<8x5xf32>
    tpu.vector_store %arg11[%c0_255, %c0_256], %376 {strides = array<i32>} : memref<8x5xf32, #tpu.memory_space<vmem>>, vector<8x5xf32>,
    %c0_257 = arith.constant 0 : index
    %c0_258 = arith.constant 0 : index
    %c0_259 = arith.constant 0 : index
    %378 = vector.load %arg12[%c0_257, %c0_258, %c0_259] : memref<2x8x5xf32, #tpu.memory_space<vmem>>, vector<1x8x5xf32>
    %379 = vector.shape_cast %378 : vector<1x8x5xf32> to vector<8x5xf32>
    %cst_260 = arith.constant 5.000000e-01 : f32
    %380 = vector.broadcast %cst_260 : f32 to vector<8x5xf32>
    %381 = arith.cmpf ogt, %376, %380 : vector<8x5xf32>
    %382 = arith.extui %381 : vector<8x5xi1> to vector<8x5xi32>
    %383 = arith.sitofp %382 : vector<8x5xi32> to vector<8x5xf32>
    %384 = arith.addf %379, %383 : vector<8x5xf32>
    %c0_261 = arith.constant 0 : index
    %c0_262 = arith.constant 0 : index
    %c0_263 = arith.constant 0 : index
    %385 = vector.load %arg12[%c0_261, %c0_262, %c0_263] : memref<2x8x5xf32, #tpu.memory_space<vmem>>, vector<1x8x5xf32>
    %386 = vector.shape_cast %385 : vector<1x8x5xf32> to vector<8x5xf32>
    %387 = vector.shape_cast %384 : vector<8x5xf32> to vector<1x8x5xf32>
    tpu.vector_store %arg12[%c0_261, %c0_262, %c0_263], %387 {strides = array<i32>} : memref<2x8x5xf32, #tpu.memory_space<vmem>>, vector<1x8x5xf32>,
    %388 = vector.extract_strided_slice %243 {offsets = [72, 5], sizes = [8, 5], strides = [1, 1]} : vector<160x10xf32> to vector<8x5xf32>
    %c0_264 = arith.constant 0 : index
    %c0_265 = arith.constant 0 : index
    %389 = vector.load %arg11[%c0_264, %c0_265] : memref<8x5xf32, #tpu.memory_space<vmem>>, vector<8x5xf32>
    %cst_266 = arith.constant 2.000000e-01 : f32
    %390 = vector.broadcast %cst_266 : f32 to vector<8x5xf32>
    %391 = arith.mulf %389, %390 : vector<8x5xf32>
    %392 = arith.addf %391, %388 : vector<8x5xf32>
    %c0_267 = arith.constant 0 : index
    %c0_268 = arith.constant 0 : index
    %393 = vector.load %arg11[%c0_267, %c0_268] : memref<8x5xf32, #tpu.memory_space<vmem>>, vector<8x5xf32>
    tpu.vector_store %arg11[%c0_267, %c0_268], %392 {strides = array<i32>} : memref<8x5xf32, #tpu.memory_space<vmem>>, vector<8x5xf32>,
    %c1_269 = arith.constant 1 : index
    %c0_270 = arith.constant 0 : index
    %c0_271 = arith.constant 0 : index
    %394 = vector.load %arg12[%c1_269, %c0_270, %c0_271] : memref<2x8x5xf32, #tpu.memory_space<vmem>>, vector<1x8x5xf32>
    %395 = vector.shape_cast %394 : vector<1x8x5xf32> to vector<8x5xf32>
    %cst_272 = arith.constant 5.000000e-01 : f32
    %396 = vector.broadcast %cst_272 : f32 to vector<8x5xf32>
    %397 = arith.cmpf ogt, %392, %396 : vector<8x5xf32>
    %398 = arith.extui %397 : vector<8x5xi1> to vector<8x5xi32>
    %399 = arith.sitofp %398 : vector<8x5xi32> to vector<8x5xf32>
    %400 = arith.addf %395, %399 : vector<8x5xf32>
    %c1_273 = arith.constant 1 : index
    %c0_274 = arith.constant 0 : index
    %c0_275 = arith.constant 0 : index
    %401 = vector.load %arg12[%c1_273, %c0_274, %c0_275] : memref<2x8x5xf32, #tpu.memory_space<vmem>>, vector<1x8x5xf32>
    %402 = vector.shape_cast %401 : vector<1x8x5xf32> to vector<8x5xf32>
    %403 = vector.shape_cast %400 : vector<8x5xf32> to vector<1x8x5xf32>
    tpu.vector_store %arg12[%c1_273, %c0_274, %c0_275], %403 {strides = array<i32>} : memref<2x8x5xf32, #tpu.memory_space<vmem>>, vector<1x8x5xf32>,
    %404 = vector.extract_strided_slice %243 {offsets = [80, 0], sizes = [8, 5], strides = [1, 1]} : vector<160x10xf32> to vector<8x5xf32>
    %c0_276 = arith.constant 0 : index
    %c0_277 = arith.constant 0 : index
    %405 = vector.load %arg11[%c0_276, %c0_277] : memref<8x5xf32, #tpu.memory_space<vmem>>, vector<8x5xf32>
    %cst_278 = arith.constant 2.000000e-01 : f32
    %406 = vector.broadcast %cst_278 : f32 to vector<8x5xf32>
    %407 = arith.mulf %405, %406 : vector<8x5xf32>
    %408 = arith.addf %407, %404 : vector<8x5xf32>
    %c0_279 = arith.constant 0 : index
    %c0_280 = arith.constant 0 : index
    %409 = vector.load %arg11[%c0_279, %c0_280] : memref<8x5xf32, #tpu.memory_space<vmem>>, vector<8x5xf32>
    tpu.vector_store %arg11[%c0_279, %c0_280], %408 {strides = array<i32>} : memref<8x5xf32, #tpu.memory_space<vmem>>, vector<8x5xf32>,
    %c0_281 = arith.constant 0 : index
    %c0_282 = arith.constant 0 : index
    %c0_283 = arith.constant 0 : index
    %410 = vector.load %arg12[%c0_281, %c0_282, %c0_283] : memref<2x8x5xf32, #tpu.memory_space<vmem>>, vector<1x8x5xf32>
    %411 = vector.shape_cast %410 : vector<1x8x5xf32> to vector<8x5xf32>
    %cst_284 = arith.constant 5.000000e-01 : f32
    %412 = vector.broadcast %cst_284 : f32 to vector<8x5xf32>
    %413 = arith.cmpf ogt, %408, %412 : vector<8x5xf32>
    %414 = arith.extui %413 : vector<8x5xi1> to vector<8x5xi32>
    %415 = arith.sitofp %414 : vector<8x5xi32> to vector<8x5xf32>
    %416 = arith.addf %411, %415 : vector<8x5xf32>
    %c0_285 = arith.constant 0 : index
    %c0_286 = arith.constant 0 : index
    %c0_287 = arith.constant 0 : index
    %417 = vector.load %arg12[%c0_285, %c0_286, %c0_287] : memref<2x8x5xf32, #tpu.memory_space<vmem>>, vector<1x8x5xf32>
    %418 = vector.shape_cast %417 : vector<1x8x5xf32> to vector<8x5xf32>
    %419 = vector.shape_cast %416 : vector<8x5xf32> to vector<1x8x5xf32>
    tpu.vector_store %arg12[%c0_285, %c0_286, %c0_287], %419 {strides = array<i32>} : memref<2x8x5xf32, #tpu.memory_space<vmem>>, vector<1x8x5xf32>,
    %420 = vector.extract_strided_slice %243 {offsets = [88, 5], sizes = [8, 5], strides = [1, 1]} : vector<160x10xf32> to vector<8x5xf32>
    %c0_288 = arith.constant 0 : index
    %c0_289 = arith.constant 0 : index
    %421 = vector.load %arg11[%c0_288, %c0_289] : memref<8x5xf32, #tpu.memory_space<vmem>>, vector<8x5xf32>
    %cst_290 = arith.constant 2.000000e-01 : f32
    %422 = vector.broadcast %cst_290 : f32 to vector<8x5xf32>
    %423 = arith.mulf %421, %422 : vector<8x5xf32>
    %424 = arith.addf %423, %420 : vector<8x5xf32>
    %c0_291 = arith.constant 0 : index
    %c0_292 = arith.constant 0 : index
    %425 = vector.load %arg11[%c0_291, %c0_292] : memref<8x5xf32, #tpu.memory_space<vmem>>, vector<8x5xf32>
    tpu.vector_store %arg11[%c0_291, %c0_292], %424 {strides = array<i32>} : memref<8x5xf32, #tpu.memory_space<vmem>>, vector<8x5xf32>,
    %c1_293 = arith.constant 1 : index
    %c0_294 = arith.constant 0 : index
    %c0_295 = arith.constant 0 : index
    %426 = vector.load %arg12[%c1_293, %c0_294, %c0_295] : memref<2x8x5xf32, #tpu.memory_space<vmem>>, vector<1x8x5xf32>
    %427 = vector.shape_cast %426 : vector<1x8x5xf32> to vector<8x5xf32>
    %cst_296 = arith.constant 5.000000e-01 : f32
    %428 = vector.broadcast %cst_296 : f32 to vector<8x5xf32>
    %429 = arith.cmpf ogt, %424, %428 : vector<8x5xf32>
    %430 = arith.extui %429 : vector<8x5xi1> to vector<8x5xi32>
    %431 = arith.sitofp %430 : vector<8x5xi32> to vector<8x5xf32>
    %432 = arith.addf %427, %431 : vector<8x5xf32>
    %c1_297 = arith.constant 1 : index
    %c0_298 = arith.constant 0 : index
    %c0_299 = arith.constant 0 : index
    %433 = vector.load %arg12[%c1_297, %c0_298, %c0_299] : memref<2x8x5xf32, #tpu.memory_space<vmem>>, vector<1x8x5xf32>
    %434 = vector.shape_cast %433 : vector<1x8x5xf32> to vector<8x5xf32>
    %435 = vector.shape_cast %432 : vector<8x5xf32> to vector<1x8x5xf32>
    tpu.vector_store %arg12[%c1_297, %c0_298, %c0_299], %435 {strides = array<i32>} : memref<2x8x5xf32, #tpu.memory_space<vmem>>, vector<1x8x5xf32>,
    %436 = vector.extract_strided_slice %243 {offsets = [96, 0], sizes = [8, 5], strides = [1, 1]} : vector<160x10xf32> to vector<8x5xf32>
    %c0_300 = arith.constant 0 : index
    %c0_301 = arith.constant 0 : index
    %437 = vector.load %arg11[%c0_300, %c0_301] : memref<8x5xf32, #tpu.memory_space<vmem>>, vector<8x5xf32>
    %cst_302 = arith.constant 2.000000e-01 : f32
    %438 = vector.broadcast %cst_302 : f32 to vector<8x5xf32>
    %439 = arith.mulf %437, %438 : vector<8x5xf32>
    %440 = arith.addf %439, %436 : vector<8x5xf32>
    %c0_303 = arith.constant 0 : index
    %c0_304 = arith.constant 0 : index
    %441 = vector.load %arg11[%c0_303, %c0_304] : memref<8x5xf32, #tpu.memory_space<vmem>>, vector<8x5xf32>
    tpu.vector_store %arg11[%c0_303, %c0_304], %440 {strides = array<i32>} : memref<8x5xf32, #tpu.memory_space<vmem>>, vector<8x5xf32>,
    %c0_305 = arith.constant 0 : index
    %c0_306 = arith.constant 0 : index
    %c0_307 = arith.constant 0 : index
    %442 = vector.load %arg12[%c0_305, %c0_306, %c0_307] : memref<2x8x5xf32, #tpu.memory_space<vmem>>, vector<1x8x5xf32>
    %443 = vector.shape_cast %442 : vector<1x8x5xf32> to vector<8x5xf32>
    %cst_308 = arith.constant 5.000000e-01 : f32
    %444 = vector.broadcast %cst_308 : f32 to vector<8x5xf32>
    %445 = arith.cmpf ogt, %440, %444 : vector<8x5xf32>
    %446 = arith.extui %445 : vector<8x5xi1> to vector<8x5xi32>
    %447 = arith.sitofp %446 : vector<8x5xi32> to vector<8x5xf32>
    %448 = arith.addf %443, %447 : vector<8x5xf32>
    %c0_309 = arith.constant 0 : index
    %c0_310 = arith.constant 0 : index
    %c0_311 = arith.constant 0 : index
    %449 = vector.load %arg12[%c0_309, %c0_310, %c0_311] : memref<2x8x5xf32, #tpu.memory_space<vmem>>, vector<1x8x5xf32>
    %450 = vector.shape_cast %449 : vector<1x8x5xf32> to vector<8x5xf32>
    %451 = vector.shape_cast %448 : vector<8x5xf32> to vector<1x8x5xf32>
    tpu.vector_store %arg12[%c0_309, %c0_310, %c0_311], %451 {strides = array<i32>} : memref<2x8x5xf32, #tpu.memory_space<vmem>>, vector<1x8x5xf32>,
    %452 = vector.extract_strided_slice %243 {offsets = [104, 5], sizes = [8, 5], strides = [1, 1]} : vector<160x10xf32> to vector<8x5xf32>
    %c0_312 = arith.constant 0 : index
    %c0_313 = arith.constant 0 : index
    %453 = vector.load %arg11[%c0_312, %c0_313] : memref<8x5xf32, #tpu.memory_space<vmem>>, vector<8x5xf32>
    %cst_314 = arith.constant 2.000000e-01 : f32
    %454 = vector.broadcast %cst_314 : f32 to vector<8x5xf32>
    %455 = arith.mulf %453, %454 : vector<8x5xf32>
    %456 = arith.addf %455, %452 : vector<8x5xf32>
    %c0_315 = arith.constant 0 : index
    %c0_316 = arith.constant 0 : index
    %457 = vector.load %arg11[%c0_315, %c0_316] : memref<8x5xf32, #tpu.memory_space<vmem>>, vector<8x5xf32>
    tpu.vector_store %arg11[%c0_315, %c0_316], %456 {strides = array<i32>} : memref<8x5xf32, #tpu.memory_space<vmem>>, vector<8x5xf32>,
    %c1_317 = arith.constant 1 : index
    %c0_318 = arith.constant 0 : index
    %c0_319 = arith.constant 0 : index
    %458 = vector.load %arg12[%c1_317, %c0_318, %c0_319] : memref<2x8x5xf32, #tpu.memory_space<vmem>>, vector<1x8x5xf32>
    %459 = vector.shape_cast %458 : vector<1x8x5xf32> to vector<8x5xf32>
    %cst_320 = arith.constant 5.000000e-01 : f32
    %460 = vector.broadcast %cst_320 : f32 to vector<8x5xf32>
    %461 = arith.cmpf ogt, %456, %460 : vector<8x5xf32>
    %462 = arith.extui %461 : vector<8x5xi1> to vector<8x5xi32>
    %463 = arith.sitofp %462 : vector<8x5xi32> to vector<8x5xf32>
    %464 = arith.addf %459, %463 : vector<8x5xf32>
    %c1_321 = arith.constant 1 : index
    %c0_322 = arith.constant 0 : index
    %c0_323 = arith.constant 0 : index
    %465 = vector.load %arg12[%c1_321, %c0_322, %c0_323] : memref<2x8x5xf32, #tpu.memory_space<vmem>>, vector<1x8x5xf32>
    %466 = vector.shape_cast %465 : vector<1x8x5xf32> to vector<8x5xf32>
    %467 = vector.shape_cast %464 : vector<8x5xf32> to vector<1x8x5xf32>
    tpu.vector_store %arg12[%c1_321, %c0_322, %c0_323], %467 {strides = array<i32>} : memref<2x8x5xf32, #tpu.memory_space<vmem>>, vector<1x8x5xf32>,
    %468 = vector.extract_strided_slice %243 {offsets = [112, 0], sizes = [8, 5], strides = [1, 1]} : vector<160x10xf32> to vector<8x5xf32>
    %c0_324 = arith.constant 0 : index
    %c0_325 = arith.constant 0 : index
    %469 = vector.load %arg11[%c0_324, %c0_325] : memref<8x5xf32, #tpu.memory_space<vmem>>, vector<8x5xf32>
    %cst_326 = arith.constant 2.000000e-01 : f32
    %470 = vector.broadcast %cst_326 : f32 to vector<8x5xf32>
    %471 = arith.mulf %469, %470 : vector<8x5xf32>
    %472 = arith.addf %471, %468 : vector<8x5xf32>
    %c0_327 = arith.constant 0 : index
    %c0_328 = arith.constant 0 : index
    %473 = vector.load %arg11[%c0_327, %c0_328] : memref<8x5xf32, #tpu.memory_space<vmem>>, vector<8x5xf32>
    tpu.vector_store %arg11[%c0_327, %c0_328], %472 {strides = array<i32>} : memref<8x5xf32, #tpu.memory_space<vmem>>, vector<8x5xf32>,
    %c0_329 = arith.constant 0 : index
    %c0_330 = arith.constant 0 : index
    %c0_331 = arith.constant 0 : index
    %474 = vector.load %arg12[%c0_329, %c0_330, %c0_331] : memref<2x8x5xf32, #tpu.memory_space<vmem>>, vector<1x8x5xf32>
    %475 = vector.shape_cast %474 : vector<1x8x5xf32> to vector<8x5xf32>
    %cst_332 = arith.constant 5.000000e-01 : f32
    %476 = vector.broadcast %cst_332 : f32 to vector<8x5xf32>
    %477 = arith.cmpf ogt, %472, %476 : vector<8x5xf32>
    %478 = arith.extui %477 : vector<8x5xi1> to vector<8x5xi32>
    %479 = arith.sitofp %478 : vector<8x5xi32> to vector<8x5xf32>
    %480 = arith.addf %475, %479 : vector<8x5xf32>
    %c0_333 = arith.constant 0 : index
    %c0_334 = arith.constant 0 : index
    %c0_335 = arith.constant 0 : index
    %481 = vector.load %arg12[%c0_333, %c0_334, %c0_335] : memref<2x8x5xf32, #tpu.memory_space<vmem>>, vector<1x8x5xf32>
    %482 = vector.shape_cast %481 : vector<1x8x5xf32> to vector<8x5xf32>
    %483 = vector.shape_cast %480 : vector<8x5xf32> to vector<1x8x5xf32>
    tpu.vector_store %arg12[%c0_333, %c0_334, %c0_335], %483 {strides = array<i32>} : memref<2x8x5xf32, #tpu.memory_space<vmem>>, vector<1x8x5xf32>,
    %484 = vector.extract_strided_slice %243 {offsets = [120, 5], sizes = [8, 5], strides = [1, 1]} : vector<160x10xf32> to vector<8x5xf32>
    %c0_336 = arith.constant 0 : index
    %c0_337 = arith.constant 0 : index
    %485 = vector.load %arg11[%c0_336, %c0_337] : memref<8x5xf32, #tpu.memory_space<vmem>>, vector<8x5xf32>
    %cst_338 = arith.constant 2.000000e-01 : f32
    %486 = vector.broadcast %cst_338 : f32 to vector<8x5xf32>
    %487 = arith.mulf %485, %486 : vector<8x5xf32>
    %488 = arith.addf %487, %484 : vector<8x5xf32>
    %c0_339 = arith.constant 0 : index
    %c0_340 = arith.constant 0 : index
    %489 = vector.load %arg11[%c0_339, %c0_340] : memref<8x5xf32, #tpu.memory_space<vmem>>, vector<8x5xf32>
    tpu.vector_store %arg11[%c0_339, %c0_340], %488 {strides = array<i32>} : memref<8x5xf32, #tpu.memory_space<vmem>>, vector<8x5xf32>,
    %c1_341 = arith.constant 1 : index
    %c0_342 = arith.constant 0 : index
    %c0_343 = arith.constant 0 : index
    %490 = vector.load %arg12[%c1_341, %c0_342, %c0_343] : memref<2x8x5xf32, #tpu.memory_space<vmem>>, vector<1x8x5xf32>
    %491 = vector.shape_cast %490 : vector<1x8x5xf32> to vector<8x5xf32>
    %cst_344 = arith.constant 5.000000e-01 : f32
    %492 = vector.broadcast %cst_344 : f32 to vector<8x5xf32>
    %493 = arith.cmpf ogt, %488, %492 : vector<8x5xf32>
    %494 = arith.extui %493 : vector<8x5xi1> to vector<8x5xi32>
    %495 = arith.sitofp %494 : vector<8x5xi32> to vector<8x5xf32>
    %496 = arith.addf %491, %495 : vector<8x5xf32>
    %c1_345 = arith.constant 1 : index
    %c0_346 = arith.constant 0 : index
    %c0_347 = arith.constant 0 : index
    %497 = vector.load %arg12[%c1_345, %c0_346, %c0_347] : memref<2x8x5xf32, #tpu.memory_space<vmem>>, vector<1x8x5xf32>
    %498 = vector.shape_cast %497 : vector<1x8x5xf32> to vector<8x5xf32>
    %499 = vector.shape_cast %496 : vector<8x5xf32> to vector<1x8x5xf32>
    tpu.vector_store %arg12[%c1_345, %c0_346, %c0_347], %499 {strides = array<i32>} : memref<2x8x5xf32, #tpu.memory_space<vmem>>, vector<1x8x5xf32>,
    %500 = vector.extract_strided_slice %243 {offsets = [128, 0], sizes = [8, 5], strides = [1, 1]} : vector<160x10xf32> to vector<8x5xf32>
    %c0_348 = arith.constant 0 : index
    %c0_349 = arith.constant 0 : index
    %501 = vector.load %arg11[%c0_348, %c0_349] : memref<8x5xf32, #tpu.memory_space<vmem>>, vector<8x5xf32>
    %cst_350 = arith.constant 2.000000e-01 : f32
    %502 = vector.broadcast %cst_350 : f32 to vector<8x5xf32>
    %503 = arith.mulf %501, %502 : vector<8x5xf32>
    %504 = arith.addf %503, %500 : vector<8x5xf32>
    %c0_351 = arith.constant 0 : index
    %c0_352 = arith.constant 0 : index
    %505 = vector.load %arg11[%c0_351, %c0_352] : memref<8x5xf32, #tpu.memory_space<vmem>>, vector<8x5xf32>
    tpu.vector_store %arg11[%c0_351, %c0_352], %504 {strides = array<i32>} : memref<8x5xf32, #tpu.memory_space<vmem>>, vector<8x5xf32>,
    %c0_353 = arith.constant 0 : index
    %c0_354 = arith.constant 0 : index
    %c0_355 = arith.constant 0 : index
    %506 = vector.load %arg12[%c0_353, %c0_354, %c0_355] : memref<2x8x5xf32, #tpu.memory_space<vmem>>, vector<1x8x5xf32>
    %507 = vector.shape_cast %506 : vector<1x8x5xf32> to vector<8x5xf32>
    %cst_356 = arith.constant 5.000000e-01 : f32
    %508 = vector.broadcast %cst_356 : f32 to vector<8x5xf32>
    %509 = arith.cmpf ogt, %504, %508 : vector<8x5xf32>
    %510 = arith.extui %509 : vector<8x5xi1> to vector<8x5xi32>
    %511 = arith.sitofp %510 : vector<8x5xi32> to vector<8x5xf32>
    %512 = arith.addf %507, %511 : vector<8x5xf32>
    %c0_357 = arith.constant 0 : index
    %c0_358 = arith.constant 0 : index
    %c0_359 = arith.constant 0 : index
    %513 = vector.load %arg12[%c0_357, %c0_358, %c0_359] : memref<2x8x5xf32, #tpu.memory_space<vmem>>, vector<1x8x5xf32>
    %514 = vector.shape_cast %513 : vector<1x8x5xf32> to vector<8x5xf32>
    %515 = vector.shape_cast %512 : vector<8x5xf32> to vector<1x8x5xf32>
    tpu.vector_store %arg12[%c0_357, %c0_358, %c0_359], %515 {strides = array<i32>} : memref<2x8x5xf32, #tpu.memory_space<vmem>>, vector<1x8x5xf32>,
    %516 = vector.extract_strided_slice %243 {offsets = [136, 5], sizes = [8, 5], strides = [1, 1]} : vector<160x10xf32> to vector<8x5xf32>
    %c0_360 = arith.constant 0 : index
    %c0_361 = arith.constant 0 : index
    %517 = vector.load %arg11[%c0_360, %c0_361] : memref<8x5xf32, #tpu.memory_space<vmem>>, vector<8x5xf32>
    %cst_362 = arith.constant 2.000000e-01 : f32
    %518 = vector.broadcast %cst_362 : f32 to vector<8x5xf32>
    %519 = arith.mulf %517, %518 : vector<8x5xf32>
    %520 = arith.addf %519, %516 : vector<8x5xf32>
    %c0_363 = arith.constant 0 : index
    %c0_364 = arith.constant 0 : index
    %521 = vector.load %arg11[%c0_363, %c0_364] : memref<8x5xf32, #tpu.memory_space<vmem>>, vector<8x5xf32>
    tpu.vector_store %arg11[%c0_363, %c0_364], %520 {strides = array<i32>} : memref<8x5xf32, #tpu.memory_space<vmem>>, vector<8x5xf32>,
    %c1_365 = arith.constant 1 : index
    %c0_366 = arith.constant 0 : index
    %c0_367 = arith.constant 0 : index
    %522 = vector.load %arg12[%c1_365, %c0_366, %c0_367] : memref<2x8x5xf32, #tpu.memory_space<vmem>>, vector<1x8x5xf32>
    %523 = vector.shape_cast %522 : vector<1x8x5xf32> to vector<8x5xf32>
    %cst_368 = arith.constant 5.000000e-01 : f32
    %524 = vector.broadcast %cst_368 : f32 to vector<8x5xf32>
    %525 = arith.cmpf ogt, %520, %524 : vector<8x5xf32>
    %526 = arith.extui %525 : vector<8x5xi1> to vector<8x5xi32>
    %527 = arith.sitofp %526 : vector<8x5xi32> to vector<8x5xf32>
    %528 = arith.addf %523, %527 : vector<8x5xf32>
    %c1_369 = arith.constant 1 : index
    %c0_370 = arith.constant 0 : index
    %c0_371 = arith.constant 0 : index
    %529 = vector.load %arg12[%c1_369, %c0_370, %c0_371] : memref<2x8x5xf32, #tpu.memory_space<vmem>>, vector<1x8x5xf32>
    %530 = vector.shape_cast %529 : vector<1x8x5xf32> to vector<8x5xf32>
    %531 = vector.shape_cast %528 : vector<8x5xf32> to vector<1x8x5xf32>
    tpu.vector_store %arg12[%c1_369, %c0_370, %c0_371], %531 {strides = array<i32>} : memref<2x8x5xf32, #tpu.memory_space<vmem>>, vector<1x8x5xf32>,
    %532 = vector.extract_strided_slice %243 {offsets = [144, 0], sizes = [8, 5], strides = [1, 1]} : vector<160x10xf32> to vector<8x5xf32>
    %c0_372 = arith.constant 0 : index
    %c0_373 = arith.constant 0 : index
    %533 = vector.load %arg11[%c0_372, %c0_373] : memref<8x5xf32, #tpu.memory_space<vmem>>, vector<8x5xf32>
    %cst_374 = arith.constant 2.000000e-01 : f32
    %534 = vector.broadcast %cst_374 : f32 to vector<8x5xf32>
    %535 = arith.mulf %533, %534 : vector<8x5xf32>
    %536 = arith.addf %535, %532 : vector<8x5xf32>
    %c0_375 = arith.constant 0 : index
    %c0_376 = arith.constant 0 : index
    %537 = vector.load %arg11[%c0_375, %c0_376] : memref<8x5xf32, #tpu.memory_space<vmem>>, vector<8x5xf32>
    tpu.vector_store %arg11[%c0_375, %c0_376], %536 {strides = array<i32>} : memref<8x5xf32, #tpu.memory_space<vmem>>, vector<8x5xf32>,
    %c0_377 = arith.constant 0 : index
    %c0_378 = arith.constant 0 : index
    %c0_379 = arith.constant 0 : index
    %538 = vector.load %arg12[%c0_377, %c0_378, %c0_379] : memref<2x8x5xf32, #tpu.memory_space<vmem>>, vector<1x8x5xf32>
    %539 = vector.shape_cast %538 : vector<1x8x5xf32> to vector<8x5xf32>
    %cst_380 = arith.constant 5.000000e-01 : f32
    %540 = vector.broadcast %cst_380 : f32 to vector<8x5xf32>
    %541 = arith.cmpf ogt, %536, %540 : vector<8x5xf32>
    %542 = arith.extui %541 : vector<8x5xi1> to vector<8x5xi32>
    %543 = arith.sitofp %542 : vector<8x5xi32> to vector<8x5xf32>
    %544 = arith.addf %539, %543 : vector<8x5xf32>
    %c0_381 = arith.constant 0 : index
    %c0_382 = arith.constant 0 : index
    %c0_383 = arith.constant 0 : index
    %545 = vector.load %arg12[%c0_381, %c0_382, %c0_383] : memref<2x8x5xf32, #tpu.memory_space<vmem>>, vector<1x8x5xf32>
    %546 = vector.shape_cast %545 : vector<1x8x5xf32> to vector<8x5xf32>
    %547 = vector.shape_cast %544 : vector<8x5xf32> to vector<1x8x5xf32>
    tpu.vector_store %arg12[%c0_381, %c0_382, %c0_383], %547 {strides = array<i32>} : memref<2x8x5xf32, #tpu.memory_space<vmem>>, vector<1x8x5xf32>,
    %548 = vector.extract_strided_slice %243 {offsets = [152, 5], sizes = [8, 5], strides = [1, 1]} : vector<160x10xf32> to vector<8x5xf32>
    %c0_384 = arith.constant 0 : index
    %c0_385 = arith.constant 0 : index
    %549 = vector.load %arg11[%c0_384, %c0_385] : memref<8x5xf32, #tpu.memory_space<vmem>>, vector<8x5xf32>
    %cst_386 = arith.constant 2.000000e-01 : f32
    %550 = vector.broadcast %cst_386 : f32 to vector<8x5xf32>
    %551 = arith.mulf %549, %550 : vector<8x5xf32>
    %552 = arith.addf %551, %548 : vector<8x5xf32>
    %c0_387 = arith.constant 0 : index
    %c0_388 = arith.constant 0 : index
    %553 = vector.load %arg11[%c0_387, %c0_388] : memref<8x5xf32, #tpu.memory_space<vmem>>, vector<8x5xf32>
    tpu.vector_store %arg11[%c0_387, %c0_388], %552 {strides = array<i32>} : memref<8x5xf32, #tpu.memory_space<vmem>>, vector<8x5xf32>,
    %c1_389 = arith.constant 1 : index
    %c0_390 = arith.constant 0 : index
    %c0_391 = arith.constant 0 : index
    %554 = vector.load %arg12[%c1_389, %c0_390, %c0_391] : memref<2x8x5xf32, #tpu.memory_space<vmem>>, vector<1x8x5xf32>
    %555 = vector.shape_cast %554 : vector<1x8x5xf32> to vector<8x5xf32>
    %cst_392 = arith.constant 5.000000e-01 : f32
    %556 = vector.broadcast %cst_392 : f32 to vector<8x5xf32>
    %557 = arith.cmpf ogt, %552, %556 : vector<8x5xf32>
    %558 = arith.extui %557 : vector<8x5xi1> to vector<8x5xi32>
    %559 = arith.sitofp %558 : vector<8x5xi32> to vector<8x5xf32>
    %560 = arith.addf %555, %559 : vector<8x5xf32>
    %c1_393 = arith.constant 1 : index
    %c0_394 = arith.constant 0 : index
    %c0_395 = arith.constant 0 : index
    %561 = vector.load %arg12[%c1_393, %c0_394, %c0_395] : memref<2x8x5xf32, #tpu.memory_space<vmem>>, vector<1x8x5xf32>
    %562 = vector.shape_cast %561 : vector<1x8x5xf32> to vector<8x5xf32>
    %563 = vector.shape_cast %560 : vector<8x5xf32> to vector<1x8x5xf32>
    tpu.vector_store %arg12[%c1_393, %c0_394, %c0_395], %563 {strides = array<i32>} : memref<2x8x5xf32, #tpu.memory_space<vmem>>, vector<1x8x5xf32>,
    %c0_i32_396 = arith.constant 0 : i32
    %564 = arith.cmpi eq, %arg1, %c0_i32_396 : i32
    %565 = arith.extui %564 : i1 to i32
    %c0_i32_397 = arith.constant 0 : i32
    %566 = arith.cmpi ne, %565, %c0_i32_397 : i32
    scf.if %566 {
      %c0_398 = arith.constant 0 : index
      %c0_399 = arith.constant 0 : index
      %c0_400 = arith.constant 0 : index
      %567 = vector.load %arg12[%c0_398, %c0_399, %c0_400] : memref<2x8x5xf32, #tpu.memory_space<vmem>>, vector<1x8x5xf32>
      %568 = vector.shape_cast %567 : vector<1x8x5xf32> to vector<8x5xf32>
      %c0_401 = arith.constant 0 : index
      %c0_402 = arith.constant 0 : index
      %c0_403 = arith.constant 0 : index
      %569 = vector.load %arg8[%c0_401, %c0_402, %c0_403] : memref<2x5x10xf32, #tpu.memory_space<vmem>>, vector<1x5x10xf32>
      %570 = vector.shape_cast %569 : vector<1x5x10xf32> to vector<5x10xf32>
      %cst_404 = arith.constant dense<0.000000e+00> : vector<8x10xf32>
      %571 = tpu.matmul %568, %570, %cst_404 {dimension_numbers = #tpu.dot_dimension_numbers<[1], [0], [0], [1], [0, 0, 1, 1], [], []>} : vector<8x5xf32>, vector<5x10xf32>, vector<8x10xf32> -> vector<8x10xf32>
      %c1_405 = arith.constant 1 : index
      %c0_406 = arith.constant 0 : index
      %c0_407 = arith.constant 0 : index
      %572 = vector.load %arg12[%c1_405, %c0_406, %c0_407] : memref<2x8x5xf32, #tpu.memory_space<vmem>>, vector<1x8x5xf32>
      %573 = vector.shape_cast %572 : vector<1x8x5xf32> to vector<8x5xf32>
      %c1_408 = arith.constant 1 : index
      %c0_409 = arith.constant 0 : index
      %c0_410 = arith.constant 0 : index
      %574 = vector.load %arg8[%c1_408, %c0_409, %c0_410] : memref<2x5x10xf32, #tpu.memory_space<vmem>>, vector<1x5x10xf32>
      %575 = vector.shape_cast %574 : vector<1x5x10xf32> to vector<5x10xf32>
      %cst_411 = arith.constant dense<0.000000e+00> : vector<8x10xf32>
      %576 = tpu.matmul %573, %575, %cst_411 {dimension_numbers = #tpu.dot_dimension_numbers<[1], [0], [0], [1], [0, 0, 1, 1], [], []>} : vector<8x5xf32>, vector<5x10xf32>, vector<8x10xf32> -> vector<8x10xf32>
      %577 = arith.addf %571, %576 : vector<8x10xf32>
      %cst_412 = arith.constant 2.000000e+01 : f32
      %578 = vector.broadcast %cst_412 : f32 to vector<8x10xf32>
      %579 = arith.divf %577, %578 : vector<8x10xf32>
      %c0_413 = arith.constant 0 : index
      %c0_414 = arith.constant 0 : index
      %580 = vector.load %arg9[%c0_413, %c0_414] : memref<8x10xf32, #tpu.memory_space<vmem>>, vector<8x10xf32>
      tpu.vector_store %arg9[%c0_413, %c0_414], %579 {strides = array<i32>} : memref<8x10xf32, #tpu.memory_space<vmem>>, vector<8x10xf32>,
    } else {
    }
    return
  }
  func.func @transform_0(%arg0: i32, %arg1: i32) -> (i32, i32) {
    %c0_i32 = arith.constant 0 : i32
    %c0_i32_0 = arith.constant 0 : i32
    return %arg0, %c0_i32 : i32, i32
  }
  func.func @transform_1(%arg0: i32, %arg1: i32) -> (i32, i32, i32) {
    %c0_i32 = arith.constant 0 : i32
    %c0_i32_0 = arith.constant 0 : i32
    return %arg1, %arg0, %c0_i32 : i32, i32, i32
  }
  func.func @transform_2(%arg0: i32, %arg1: i32) -> (i32, i32) {
    %c0_i32 = arith.constant 0 : i32
    %c0_i32_0 = arith.constant 0 : i32
    %c0_i32_1 = arith.constant 0 : i32
    return %c0_i32, %c0_i32_0 : i32, i32
  }
  func.func @transform_3(%arg0: i32, %arg1: i32) -> (i32, i32) {
    %c0_i32 = arith.constant 0 : i32
    %c0_i32_0 = arith.constant 0 : i32
    %c0_i32_1 = arith.constant 0 : i32
    return %c0_i32, %c0_i32_0 : i32, i32
  }
  func.func @transform_4(%arg0: i32, %arg1: i32) -> (i32, i32) {
    %c0_i32 = arith.constant 0 : i32
    %c0_i32_0 = arith.constant 0 : i32
    %c0_i32_1 = arith.constant 0 : i32
    return %c0_i32, %c0_i32_0 : i32, i32
  }
  func.func @transform_5(%arg0: i32, %arg1: i32) -> (i32, i32) {
    %c0_i32 = arith.constant 0 : i32
    %c0_i32_0 = arith.constant 0 : i32
    %c0_i32_1 = arith.constant 0 : i32
    return %c0_i32, %c0_i32_0 : i32, i32
  }
  func.func @transform_6(%arg0: i32, %arg1: i32) -> (i32, i32, i32) {
    %c0_i32 = arith.constant 0 : i32
    %c0_i32_0 = arith.constant 0 : i32
    %c0_i32_1 = arith.constant 0 : i32
    %c0_i32_2 = arith.constant 0 : i32
    return %c0_i32, %c0_i32_0, %c0_i32_1 : i32, i32, i32
  }
  func.func @transform_7(%arg0: i32, %arg1: i32) -> (i32, i32) {
    %c0_i32 = arith.constant 0 : i32
    %c0_i32_0 = arith.constant 0 : i32
    return %arg0, %c0_i32 : i32, i32
  }
}

</mosaic_0001>

<llo_original>
// kernel: tpu_custom_call.1
$region0: #{tpu_custom_call.1}
  #allocation0 [shape = 'u32[]', space=smem, size = 0x4, offset = 0x4, fixed_abs, tag = 'smem constant byte address 0x4 - core index']
  #allocation1 [shape = 'u32[72,128]{1,0:T(1,128)}', space=vmem, size = 0x9000, scoped, tag = 'internal scratch']
  #allocation2 [shape = 'f32[8,30]{1,0:T(8,128)}', space=vmem, size = 0x1000, scoped, tag = 'scratch operand']
  #allocation3 [shape = 'f32[8,5]{1,0:T(8,128)}', space=vmem, size = 0x1000, scoped, tag = 'scratch operand']
  #allocation4 [shape = 'f32[2,8,5]{2,1,0:T(8,128)}', space=vmem, size = 0x2000, scoped, tag = 'scratch operand']
  #allocation5 [shape = 'f32[160,30]{1,0:T(8,128)}', space=vmem, size = 0x14000, scoped, tag = 'scratch operand']
  %s0 = inlined_call_operand.vmem [shape: f32[8,784], index: 0, kind: input, shape index: {}]
  %s1 = inlined_call_operand.hbm [shape: f32[20,8,784], index: 1, kind: input, shape index: {}]
  %s2 = inlined_call_operand.vmem [shape: bf16[784,60], index: 2, kind: input, shape index: {}]
  %s3 = inlined_call_operand.vmem [shape: f32[1,60], index: 3, kind: input, shape index: {}]
  %s4 = inlined_call_operand.vmem [shape: bf16[30,10], index: 4, kind: input, shape index: {}]
  %s5 = inlined_call_operand.vmem [shape: f32[1,10], index: 5, kind: input, shape index: {}]
  %s6 = inlined_call_operand.vmem [shape: f32[2,5,10], index: 6, kind: input, shape index: {}]
  %s7 = inlined_call_operand.hbm [shape: f32[8,10], index: 7, kind: output, shape index: {}]
  %s8 = sld [smem:[#allocation0]]
  $region50: #{tpu_custom_call.1} parent=0
    _
  %s10 = ssub.s32 1, %s8
  %s11 = scalar_select 0, %s10, %s8
  $region1: #{tpu_custom_call.1} parent=0
    #allocation6 [shape = 'u8[573440]{0}', space=vmem, size = 0x8c000, scoped, tag = 'input window, operand 1, single buffered']
    #allocation7 [shape = 's32[1]{0}', space=sflag, size = 0x4, scoped, tag = 'scoped memory for tpu_custom_call.1']
    #allocation8 [shape = 's32[1]{0}', space=sflag, size = 0x4, scoped, tag = 'scoped memory for tpu_custom_call.1']
    #allocation9 [shape = 'u8[4096]{0}', space=vmem, size = 0x1000, scoped, tag = 'output window, operand 0, single buffered']
    %12 = vsyncpa [#allocation7], 0
    %13 = vsyncpa [#allocation8], 0
    // Predicated region
    $region2: #{tpu_custom_call.1} parent=1 // pred_check
      _
    $region3: #{tpu_custom_call.1} parent=1 // pred_check_branch
      %15 = sbr.rel (0) target = $region5
    $region4: #{tpu_custom_call.1} parent=1 // pred_region
      _
    $region5: #{tpu_custom_call.1} parent=1 // pred_fallthru
      _
    // Predicated region
    $region6: #{tpu_custom_call.1} parent=1 // pred_check
      _
    $region7: #{tpu_custom_call.1} parent=1 // pred_check_branch
      %17 = sbr.rel (0) target = $region9
    $region8: #{tpu_custom_call.1} parent=1 // pred_region
      %19 = vsyncadd [#allocation7], 0
      %s20 = sshll.u32 %s1, 4
      %s21 = int_to_ptr.hbm [resolvable:$true] %s20
      %s22 = sshll.u32 [#allocation6], 4
      %s23 = int_to_ptr.vmem [resolvable:$true] %s22
      %28 = dma.hbm_to_vmem [thread:$0]  %s21, 17920, %s23, [#allocation7], 896, 896, 56
    $region9: #{tpu_custom_call.1} parent=1 // pred_fallthru
      _
    // Predicated region
    $region10: #{tpu_custom_call.1} parent=1 // pred_check
      _
    $region11: #{tpu_custom_call.1} parent=1 // pred_check_branch
      %30 = sbr.rel (0) target = $region13
    $region12: #{tpu_custom_call.1} parent=1 // pred_region
      _
    $region13: #{tpu_custom_call.1} parent=1 // pred_fallthru
      _
    // Predicated region
    $region14: #{tpu_custom_call.1} parent=1 // pred_check
      _
    $region15: #{tpu_custom_call.1} parent=1 // pred_check_branch
      %32 = sbr.rel (0) target = $region17
    $region16: #{tpu_custom_call.1} parent=1 // pred_region
      _
    $region17: #{tpu_custom_call.1} parent=1 // pred_fallthru
      _
    // Predicated region
    $region18: #{tpu_custom_call.1} parent=1 // pred_check
      _
    $region19: #{tpu_custom_call.1} parent=1 // pred_check_branch
      %34 = sbr.rel (0) target = $region21
    $region20: #{tpu_custom_call.1} parent=1 // pred_region
      _
    $region21: #{tpu_custom_call.1} parent=1 // pred_fallthru
      _
    // Predicated region
    $region22: #{tpu_custom_call.1} parent=1 // pred_check
      _
    $region23: #{tpu_custom_call.1} parent=1 // pred_check_branch
      %36 = sbr.rel (0) target = $region25
    $region24: #{tpu_custom_call.1} parent=1 // pred_region
      _
    $region25: #{tpu_custom_call.1} parent=1 // pred_fallthru
      _
    // Predicated region
    $region26: #{tpu_custom_call.1} parent=1 // pred_check
      _
    $region27: #{tpu_custom_call.1} parent=1 // pred_check_branch
      %38 = sbr.rel (0) target = $region29
    $region28: #{tpu_custom_call.1} parent=1 // pred_region
      _
    $region29: #{tpu_custom_call.1} parent=1 // pred_fallthru
      _
    // Predicated region
    $region30: #{tpu_custom_call.1} parent=1 // pred_check
      _
    $region31: #{tpu_custom_call.1} parent=1 // pred_check_branch
      %40 = sbr.rel (0) target = $region33
    $region32: #{tpu_custom_call.1} parent=1 // pred_region
      %42 = dma.done [#allocation7], 17920
    $region33: #{tpu_custom_call.1} parent=1 // pred_fallthru
      _
    %p44 = scmp.eq.s32.totalorder 0, 0
    // Predicated region
    $region34: #{tpu_custom_call.1} parent=1 // pred_check
      %p45 = pneg %p44
    $region35: #{tpu_custom_call.1} parent=1 // pred_check_branch
      %47 = sbr.rel (%p45) target = $region37
    $region36: #{tpu_custom_call.1} parent=1 // pred_region
      %vm48 = vcmask 244736
      %49 = vst.msk [vmem:[#allocation2] sm:$0xff] %vm48, 0.0
      %vm50 = vcmask 39936
      %51 = vst.msk [vmem:[#allocation3] sm:$0xff] %vm50, 0.0
      %52 = vst.msk [vmem:[#allocation4] sm:$0xff] %vm50, 0.0
      %53 = vst.msk [vmem:[#allocation4 + $0x8] sm:$0xff] %vm50, 0.0
    $region37: #{tpu_custom_call.1} parent=1 // pred_fallthru
      _
    %v54 = vld [vmem:[%s0] sm:$0xff]
    %v55 = vld [vmem:[%s0 + $0x8] sm:$0xff]
    %v56 = vld [vmem:[%s0 + $0x10] sm:$0xff]
    %v57 = vld [vmem:[%s0 + $0x18] sm:$0xff]
    %v58 = vld [vmem:[%s0 + $0x20] sm:$0xff]
    %v59 = vld [vmem:[%s0 + $0x28] sm:$0xff]
    %v60 = vld [vmem:[%s0 + $0x30] sm:$0xff]
    %v61 = vld [vmem:[#allocation6] sm:$0xff]
    %v62 = vld [vmem:[#allocation6 + $0x8] sm:$0xff]
    %v63 = vld [vmem:[#allocation6 + $0x10] sm:$0xff]
    %v64 = vld [vmem:[#allocation6 + $0x18] sm:$0xff]
    %v65 = vld [vmem:[#allocation6 + $0x20] sm:$0xff]
    %v66 = vld [vmem:[#allocation6 + $0x28] sm:$0xff]
    %v67 = vld [vmem:[#allocation6 + $0x30] sm:$0xff]
    %v68 = vld [vmem:[#allocation6 + $0x38] sm:$0xff]
    %v69 = vld [vmem:[#allocation6 + $0x40] sm:$0xff]
    %v70 = vld [vmem:[#allocation6 + $0x48] sm:$0xff]
    %v71 = vld [vmem:[#allocation6 + $0x50] sm:$0xff]
    %v72 = vld [vmem:[#allocation6 + $0x58] sm:$0xff]
    %v73 = vld [vmem:[#allocation6 + $0x60] sm:$0xff]
    %v74 = vld [vmem:[#allocation6 + $0x68] sm:$0xff]
    %v75 = vld [vmem:[#allocation6 + $0x70] sm:$0xff]
    %v76 = vld [vmem:[#allocation6 + $0x78] sm:$0xff]
    %v77 = vld [vmem:[#allocation6 + $0x80] sm:$0xff]
    %v78 = vld [vmem:[#allocation6 + $0x88] sm:$0xff]
    %v79 = vld [vmem:[#allocation6 + $0x90] sm:$0xff]
    %v80 = vld [vmem:[#allocation6 + $0x98] sm:$0xff]
    %v81 = vld [vmem:[#allocation6 + $0xa0] sm:$0xff]
    %v82 = vld [vmem:[#allocation6 + $0xa8] sm:$0xff]
    %v83 = vld [vmem:[#allocation6 + $0xb0] sm:$0xff]
    %v84 = vld [vmem:[#allocation6 + $0xb8] sm:$0xff]
    %v85 = vld [vmem:[#allocation6 + $0xc0] sm:$0xff]
    %v86 = vld [vmem:[#allocation6 + $0xc8] sm:$0xff]
    %v87 = vld [vmem:[#allocation6 + $0xd0] sm:$0xff]
    %v88 = vld [vmem:[#allocation6 + $0xd8] sm:$0xff]
    %v89 = vld [vmem:[#allocation6 + $0xe0] sm:$0xff]
    %v90 = vld [vmem:[#allocation6 + $0xe8] sm:$0xff]
    %v91 = vld [vmem:[#allocation6 + $0xf0] sm:$0xff]
    %v92 = vld [vmem:[#allocation6 + $0xf8] sm:$0xff]
    %v93 = vld [vmem:[#allocation6 + $0x100] sm:$0xff]
    %v94 = vld [vmem:[#allocation6 + $0x108] sm:$0xff]
    %v95 = vld [vmem:[#allocation6 + $0x110] sm:$0xff]
    %v96 = vld [vmem:[#allocation6 + $0x118] sm:$0xff]
    %v97 = vld [vmem:[#allocation6 + $0x120] sm:$0xff]
    %v98 = vld [vmem:[#allocation6 + $0x128] sm:$0xff]
    %v99 = vld [vmem:[#allocation6 + $0x130] sm:$0xff]
    %v100 = vld [vmem:[#allocation6 + $0x138] sm:$0xff]
    %v101 = vld [vmem:[#allocation6 + $0x140] sm:$0xff]
    %v102 = vld [vmem:[#allocation6 + $0x148] sm:$0xff]
    %v103 = vld [vmem:[#allocation6 + $0x150] sm:$0xff]
    %v104 = vld [vmem:[#allocation6 + $0x158] sm:$0xff]
    %v105 = vld [vmem:[#allocation6 + $0x160] sm:$0xff]
    %v106 = vld [vmem:[#allocation6 + $0x168] sm:$0xff]
    %v107 = vld [vmem:[#allocation6 + $0x170] sm:$0xff]
    %v108 = vld [vmem:[#allocation6 + $0x178] sm:$0xff]
    %v109 = vld [vmem:[#allocation6 + $0x180] sm:$0xff]
    %v110 = vld [vmem:[#allocation6 + $0x188] sm:$0xff]
    %v111 = vld [vmem:[#allocation6 + $0x190] sm:$0xff]
    %v112 = vld [vmem:[#allocation6 + $0x198] sm:$0xff]
    %v113 = vld [vmem:[#allocation6 + $0x1a0] sm:$0xff]
    %v114 = vld [vmem:[#allocation6 + $0x1a8] sm:$0xff]
    %v115 = vld [vmem:[#allocation6 + $0x1b0] sm:$0xff]
    %v116 = vld [vmem:[#allocation6 + $0x1b8] sm:$0xff]
    %v117 = vld [vmem:[#allocation6 + $0x1c0] sm:$0xff]
    %v118 = vld [vmem:[#allocation6 + $0x1c8] sm:$0xff]
    %v119 = vld [vmem:[#allocation6 + $0x1d0] sm:$0xff]
    %v120 = vld [vmem:[#allocation6 + $0x1d8] sm:$0xff]
    %v121 = vld [vmem:[#allocation6 + $0x1e0] sm:$0xff]
    %v122 = vld [vmem:[#allocation6 + $0x1e8] sm:$0xff]
    %v123 = vld [vmem:[#allocation6 + $0x1f0] sm:$0xff]
    %v124 = vld [vmem:[#allocation6 + $0x1f8] sm:$0xff]
    %v125 = vld [vmem:[#allocation6 + $0x200] sm:$0xff]
    %v126 = vld [vmem:[#allocation6 + $0x208] sm:$0xff]
    %v127 = vld [vmem:[#allocation6 + $0x210] sm:$0xff]
    %v128 = vld [vmem:[#allocation6 + $0x218] sm:$0xff]
    %v129 = vld [vmem:[#allocation6 + $0x220] sm:$0xff]
    %v130 = vld [vmem:[#allocation6 + $0x228] sm:$0xff]
    %v131 = vld [vmem:[#allocation6 + $0x230] sm:$0xff]
    %v132 = vld [vmem:[#allocation6 + $0x238] sm:$0xff]
    %v133 = vld [vmem:[#allocation6 + $0x240] sm:$0xff]
    %v134 = vld [vmem:[#allocation6 + $0x248] sm:$0xff]
    %v135 = vld [vmem:[#allocation6 + $0x250] sm:$0xff]
    %v136 = vld [vmem:[#allocation6 + $0x258] sm:$0xff]
    %v137 = vld [vmem:[#allocation6 + $0x260] sm:$0xff]
    %v138 = vld [vmem:[#allocation6 + $0x268] sm:$0xff]
    %v139 = vld [vmem:[#allocation6 + $0x270] sm:$0xff]
    %v140 = vld [vmem:[#allocation6 + $0x278] sm:$0xff]
    %v141 = vld [vmem:[#allocation6 + $0x280] sm:$0xff]
    %v142 = vld [vmem:[#allocation6 + $0x288] sm:$0xff]
    %v143 = vld [vmem:[#allocation6 + $0x290] sm:$0xff]
    %v144 = vld [vmem:[#allocation6 + $0x298] sm:$0xff]
    %v145 = vld [vmem:[#allocation6 + $0x2a0] sm:$0xff]
    %v146 = vld [vmem:[#allocation6 + $0x2a8] sm:$0xff]
    %v147 = vld [vmem:[#allocation6 + $0x2b0] sm:$0xff]
    %v148 = vld [vmem:[#allocation6 + $0x2b8] sm:$0xff]
    %v149 = vld [vmem:[#allocation6 + $0x2c0] sm:$0xff]
    %v150 = vld [vmem:[#allocation6 + $0x2c8] sm:$0xff]
    %v151 = vld [vmem:[#allocation6 + $0x2d0] sm:$0xff]
    %v152 = vld [vmem:[#allocation6 + $0x2d8] sm:$0xff]
    %v153 = vld [vmem:[#allocation6 + $0x2e0] sm:$0xff]
    %v154 = vld [vmem:[#allocation6 + $0x2e8] sm:$0xff]
    %v155 = vld [vmem:[#allocation6 + $0x2f0] sm:$0xff]
    %v156 = vld [vmem:[#allocation6 + $0x2f8] sm:$0xff]
    %v157 = vld [vmem:[#allocation6 + $0x300] sm:$0xff]
    %v158 = vld [vmem:[#allocation6 + $0x308] sm:$0xff]
    %v159 = vld [vmem:[#allocation6 + $0x310] sm:$0xff]
    %v160 = vld [vmem:[#allocation6 + $0x318] sm:$0xff]
    %v161 = vld [vmem:[#allocation6 + $0x320] sm:$0xff]
    %v162 = vld [vmem:[#allocation6 + $0x328] sm:$0xff]
    %v163 = vld [vmem:[#allocation6 + $0x330] sm:$0xff]
    %v164 = vld [vmem:[#allocation6 + $0x338] sm:$0xff]
    %v165 = vld [vmem:[#allocation6 + $0x340] sm:$0xff]
    %v166 = vld [vmem:[#allocation6 + $0x348] sm:$0xff]
    %v167 = vld [vmem:[#allocation6 + $0x350] sm:$0xff]
    %v168 = vld [vmem:[#allocation6 + $0x358] sm:$0xff]
    %v169 = vld [vmem:[#allocation6 + $0x360] sm:$0xff]
    %v170 = vld [vmem:[#allocation6 + $0x368] sm:$0xff]
    %v171 = vld [vmem:[#allocation6 + $0x370] sm:$0xff]
    %v172 = vld [vmem:[#allocation6 + $0x378] sm:$0xff]
    %v173 = vld [vmem:[#allocation6 + $0x380] sm:$0xff]
    %v174 = vld [vmem:[#allocation6 + $0x388] sm:$0xff]
    %v175 = vld [vmem:[#allocation6 + $0x390] sm:$0xff]
    %v176 = vld [vmem:[#allocation6 + $0x398] sm:$0xff]
    %v177 = vld [vmem:[#allocation6 + $0x3a0] sm:$0xff]
    %v178 = vld [vmem:[#allocation6 + $0x3a8] sm:$0xff]
    %v179 = vld [vmem:[#allocation6 + $0x3b0] sm:$0xff]
    %v180 = vld [vmem:[#allocation6 + $0x3b8] sm:$0xff]
    %v181 = vld [vmem:[#allocation6 + $0x3c0] sm:$0xff]
    %v182 = vld [vmem:[#allocation6 + $0x3c8] sm:$0xff]
    %v183 = vld [vmem:[#allocation6 + $0x3d0] sm:$0xff]
    %v184 = vld [vmem:[#allocation6 + $0x3d8] sm:$0xff]
    %v185 = vld [vmem:[#allocation6 + $0x3e0] sm:$0xff]
    %v186 = vld [vmem:[#allocation6 + $0x3e8] sm:$0xff]
    %v187 = vld [vmem:[#allocation6 + $0x3f0] sm:$0xff]
    %v188 = vld [vmem:[#allocation6 + $0x3f8] sm:$0xff]
    %v189 = vld [vmem:[#allocation6 + $0x400] sm:$0xff]
    %v190 = vld [vmem:[#allocation6 + $0x408] sm:$0xff]
    %v191 = vld [vmem:[#allocation6 + $0x410] sm:$0xff]
    %v192 = vld [vmem:[#allocation6 + $0x418] sm:$0xff]
    %v193 = vld [vmem:[#allocation6 + $0x420] sm:$0xff]
    %v194 = vld [vmem:[#allocation6 + $0x428] sm:$0xff]
    %v195 = vld [vmem:[#allocation6 + $0x430] sm:$0xff]
    %v196 = vld [vmem:[#allocation6 + $0x438] sm:$0xff]
    %v197 = vld [vmem:[#allocation6 + $0x440] sm:$0xff]
    %v198 = vld [vmem:[#allocation6 + $0x448] sm:$0xff]
    %v199 = vld [vmem:[#allocation6 + $0x450] sm:$0xff]
    %v200 = vld [vmem:[#allocation6 + $0x458] sm:$0xff]
    %vm201 = vcmp.gt.f32.partialorder %v54, %v61
    %vm202 = vcmp.gt.f32.partialorder %v55, %v62
    %vm203 = vcmp.gt.f32.partialorder %v56, %v63
    %vm204 = vcmp.gt.f32.partialorder %v57, %v64
    %vm205 = vcmp.gt.f32.partialorder %v58, %v65
    %vm206 = vcmp.gt.f32.partialorder %v59, %v66
    %vm207 = vcmp.gt.f32.partialorder %v60, %v67
    %vm208 = vcmp.gt.f32.partialorder %v54, %v68
    %vm209 = vcmp.gt.f32.partialorder %v55, %v69
    %vm210 = vcmp.gt.f32.partialorder %v56, %v70
    %vm211 = vcmp.gt.f32.partialorder %v57, %v71
    %vm212 = vcmp.gt.f32.partialorder %v58, %v72
    %vm213 = vcmp.gt.f32.partialorder %v59, %v73
    %vm214 = vcmp.gt.f32.partialorder %v60, %v74
    %vm215 = vcmp.gt.f32.partialorder %v54, %v75
    %vm216 = vcmp.gt.f32.partialorder %v55, %v76
    %vm217 = vcmp.gt.f32.partialorder %v56, %v77
    %vm218 = vcmp.gt.f32.partialorder %v57, %v78
    %vm219 = vcmp.gt.f32.partialorder %v58, %v79
    %vm220 = vcmp.gt.f32.partialorder %v59, %v80
    %vm221 = vcmp.gt.f32.partialorder %v60, %v81
    %vm222 = vcmp.gt.f32.partialorder %v54, %v82
    %vm223 = vcmp.gt.f32.partialorder %v55, %v83
    %vm224 = vcmp.gt.f32.partialorder %v56, %v84
    %vm225 = vcmp.gt.f32.partialorder %v57, %v85
    %vm226 = vcmp.gt.f32.partialorder %v58, %v86
    %vm227 = vcmp.gt.f32.partialorder %v59, %v87
    %vm228 = vcmp.gt.f32.partialorder %v60, %v88
    %vm229 = vcmp.gt.f32.partialorder %v54, %v89
    %vm230 = vcmp.gt.f32.partialorder %v55, %v90
    %vm231 = vcmp.gt.f32.partialorder %v56, %v91
    %vm232 = vcmp.gt.f32.partialorder %v57, %v92
    %vm233 = vcmp.gt.f32.partialorder %v58, %v93
    %vm234 = vcmp.gt.f32.partialorder %v59, %v94
    %vm235 = vcmp.gt.f32.partialorder %v60, %v95
    %vm236 = vcmp.gt.f32.partialorder %v54, %v96
    %vm237 = vcmp.gt.f32.partialorder %v55, %v97
    %vm238 = vcmp.gt.f32.partialorder %v56, %v98
    %vm239 = vcmp.gt.f32.partialorder %v57, %v99
    %vm240 = vcmp.gt.f32.partialorder %v58, %v100
    %vm241 = vcmp.gt.f32.partialorder %v59, %v101
    %vm242 = vcmp.gt.f32.partialorder %v60, %v102
    %vm243 = vcmp.gt.f32.partialorder %v54, %v103
    %vm244 = vcmp.gt.f32.partialorder %v55, %v104
    %vm245 = vcmp.gt.f32.partialorder %v56, %v105
    %vm246 = vcmp.gt.f32.partialorder %v57, %v106
    %vm247 = vcmp.gt.f32.partialorder %v58, %v107
    %vm248 = vcmp.gt.f32.partialorder %v59, %v108
    %vm249 = vcmp.gt.f32.partialorder %v60, %v109
    %vm250 = vcmp.gt.f32.partialorder %v54, %v110
    %vm251 = vcmp.gt.f32.partialorder %v55, %v111
    %vm252 = vcmp.gt.f32.partialorder %v56, %v112
    %vm253 = vcmp.gt.f32.partialorder %v57, %v113
    %vm254 = vcmp.gt.f32.partialorder %v58, %v114
    %vm255 = vcmp.gt.f32.partialorder %v59, %v115
    %vm256 = vcmp.gt.f32.partialorder %v60, %v116
    %vm257 = vcmp.gt.f32.partialorder %v54, %v117
    %vm258 = vcmp.gt.f32.partialorder %v55, %v118
    %vm259 = vcmp.gt.f32.partialorder %v56, %v119
    %vm260 = vcmp.gt.f32.partialorder %v57, %v120
    %vm261 = vcmp.gt.f32.partialorder %v58, %v121
    %vm262 = vcmp.gt.f32.partialorder %v59, %v122
    %vm263 = vcmp.gt.f32.partialorder %v60, %v123
    %vm264 = vcmp.gt.f32.partialorder %v54, %v124
    %vm265 = vcmp.gt.f32.partialorder %v55, %v125
    %vm266 = vcmp.gt.f32.partialorder %v56, %v126
    %vm267 = vcmp.gt.f32.partialorder %v57, %v127
    %vm268 = vcmp.gt.f32.partialorder %v58, %v128
    %vm269 = vcmp.gt.f32.partialorder %v59, %v129
    %vm270 = vcmp.gt.f32.partialorder %v60, %v130
    %vm271 = vcmp.gt.f32.partialorder %v54, %v131
    %vm272 = vcmp.gt.f32.partialorder %v55, %v132
    %vm273 = vcmp.gt.f32.partialorder %v56, %v133
    %vm274 = vcmp.gt.f32.partialorder %v57, %v134
    %vm275 = vcmp.gt.f32.partialorder %v58, %v135
    %vm276 = vcmp.gt.f32.partialorder %v59, %v136
    %vm277 = vcmp.gt.f32.partialorder %v60, %v137
    %vm278 = vcmp.gt.f32.partialorder %v54, %v138
    %vm279 = vcmp.gt.f32.partialorder %v55, %v139
    %vm280 = vcmp.gt.f32.partialorder %v56, %v140
    %vm281 = vcmp.gt.f32.partialorder %v57, %v141
    %vm282 = vcmp.gt.f32.partialorder %v58, %v142
    %vm283 = vcmp.gt.f32.partialorder %v59, %v143
    %vm284 = vcmp.gt.f32.partialorder %v60, %v144
    %vm285 = vcmp.gt.f32.partialorder %v54, %v145
    %vm286 = vcmp.gt.f32.partialorder %v55, %v146
    %vm287 = vcmp.gt.f32.partialorder %v56, %v147
    %vm288 = vcmp.gt.f32.partialorder %v57, %v148
    %vm289 = vcmp.gt.f32.partialorder %v58, %v149
    %vm290 = vcmp.gt.f32.partialorder %v59, %v150
    %vm291 = vcmp.gt.f32.partialorder %v60, %v151
    %vm292 = vcmp.gt.f32.partialorder %v54, %v152
    %vm293 = vcmp.gt.f32.partialorder %v55, %v153
    %vm294 = vcmp.gt.f32.partialorder %v56, %v154
    %vm295 = vcmp.gt.f32.partialorder %v57, %v155
    %vm296 = vcmp.gt.f32.partialorder %v58, %v156
    %vm297 = vcmp.gt.f32.partialorder %v59, %v157
    %vm298 = vcmp.gt.f32.partialorder %v60, %v158
    %vm299 = vcmp.gt.f32.partialorder %v54, %v159
    %vm300 = vcmp.gt.f32.partialorder %v55, %v160
    %vm301 = vcmp.gt.f32.partialorder %v56, %v161
    %vm302 = vcmp.gt.f32.partialorder %v57, %v162
    %vm303 = vcmp.gt.f32.partialorder %v58, %v163
    %vm304 = vcmp.gt.f32.partialorder %v59, %v164
    %vm305 = vcmp.gt.f32.partialorder %v60, %v165
    %vm306 = vcmp.gt.f32.partialorder %v54, %v166
    %vm307 = vcmp.gt.f32.partialorder %v55, %v167
    %vm308 = vcmp.gt.f32.partialorder %v56, %v168
    %vm309 = vcmp.gt.f32.partialorder %v57, %v169
    %vm310 = vcmp.gt.f32.partialorder %v58, %v170
    %vm311 = vcmp.gt.f32.partialorder %v59, %v171
    %vm312 = vcmp.gt.f32.partialorder %v60, %v172
    %vm313 = vcmp.gt.f32.partialorder %v54, %v173
    %vm314 = vcmp.gt.f32.partialorder %v55, %v174
    %vm315 = vcmp.gt.f32.partialorder %v56, %v175
    %vm316 = vcmp.gt.f32.partialorder %v57, %v176
    %vm317 = vcmp.gt.f32.partialorder %v58, %v177
    %vm318 = vcmp.gt.f32.partialorder %v59, %v178
    %vm319 = vcmp.gt.f32.partialorder %v60, %v179
    %vm320 = vcmp.gt.f32.partialorder %v54, %v180
    %vm321 = vcmp.gt.f32.partialorder %v55, %v181
    %vm322 = vcmp.gt.f32.partialorder %v56, %v182
    %vm323 = vcmp.gt.f32.partialorder %v57, %v183
    %vm324 = vcmp.gt.f32.partialorder %v58, %v184
    %vm325 = vcmp.gt.f32.partialorder %v59, %v185
    %vm326 = vcmp.gt.f32.partialorder %v60, %v186
    %vm327 = vcmp.gt.f32.partialorder %v54, %v187
    %vm328 = vcmp.gt.f32.partialorder %v55, %v188
    %vm329 = vcmp.gt.f32.partialorder %v56, %v189
    %vm330 = vcmp.gt.f32.partialorder %v57, %v190
    %vm331 = vcmp.gt.f32.partialorder %v58, %v191
    %vm332 = vcmp.gt.f32.partialorder %v59, %v192
    %vm333 = vcmp.gt.f32.partialorder %v60, %v193
    %vm334 = vcmp.gt.f32.partialorder %v54, %v194
    %vm335 = vcmp.gt.f32.partialorder %v55, %v195
    %vm336 = vcmp.gt.f32.partialorder %v56, %v196
    %vm337 = vcmp.gt.f32.partialorder %v57, %v197
    %vm338 = vcmp.gt.f32.partialorder %v58, %v198
    %vm339 = vcmp.gt.f32.partialorder %v59, %v199
    %vm340 = vcmp.gt.f32.partialorder %v60, %v200
    %v341 = vsel %vm201, 1, 0
    %v342 = vsel %vm202, 1, 0
    %v343 = vsel %vm203, 1, 0
    %v344 = vsel %vm204, 1, 0
    %v345 = vsel %vm205, 1, 0
    %v346 = vsel %vm206, 1, 0
    %v347 = vsel %vm207, 1, 0
    %v348 = vsel %vm208, 1, 0
    %v349 = vsel %vm209, 1, 0
    %v350 = vsel %vm210, 1, 0
    %v351 = vsel %vm211, 1, 0
    %v352 = vsel %vm212, 1, 0
    %v353 = vsel %vm213, 1, 0
    %v354 = vsel %vm214, 1, 0
    %v355 = vsel %vm215, 1, 0
    %v356 = vsel %vm216, 1, 0
    %v357 = vsel %vm217, 1, 0
    %v358 = vsel %vm218, 1, 0
    %v359 = vsel %vm219, 1, 0
    %v360 = vsel %vm220, 1, 0
    %v361 = vsel %vm221, 1, 0
    %v362 = vsel %vm222, 1, 0
    %v363 = vsel %vm223, 1, 0
    %v364 = vsel %vm224, 1, 0
    %v365 = vsel %vm225, 1, 0
    %v366 = vsel %vm226, 1, 0
    %v367 = vsel %vm227, 1, 0
    %v368 = vsel %vm228, 1, 0
    %v369 = vsel %vm229, 1, 0
    %v370 = vsel %vm230, 1, 0
    %v371 = vsel %vm231, 1, 0
    %v372 = vsel %vm232, 1, 0
    %v373 = vsel %vm233, 1, 0
    %v374 = vsel %vm234, 1, 0
    %v375 = vsel %vm235, 1, 0
    %v376 = vsel %vm236, 1, 0
    %v377 = vsel %vm237, 1, 0
    %v378 = vsel %vm238, 1, 0
    %v379 = vsel %vm239, 1, 0
    %v380 = vsel %vm240, 1, 0
    %v381 = vsel %vm241, 1, 0
    %v382 = vsel %vm242, 1, 0
    %v383 = vsel %vm243, 1, 0
    %v384 = vsel %vm244, 1, 0
    %v385 = vsel %vm245, 1, 0
    %v386 = vsel %vm246, 1, 0
    %v387 = vsel %vm247, 1, 0
    %v388 = vsel %vm248, 1, 0
    %v389 = vsel %vm249, 1, 0
    %v390 = vsel %vm250, 1, 0
    %v391 = vsel %vm251, 1, 0
    %v392 = vsel %vm252, 1, 0
    %v393 = vsel %vm253, 1, 0
    %v394 = vsel %vm254, 1, 0
    %v395 = vsel %vm255, 1, 0
    %v396 = vsel %vm256, 1, 0
    %v397 = vsel %vm257, 1, 0
    %v398 = vsel %vm258, 1, 0
    %v399 = vsel %vm259, 1, 0
    %v400 = vsel %vm260, 1, 0
    %v401 = vsel %vm261, 1, 0
    %v402 = vsel %vm262, 1, 0
    %v403 = vsel %vm263, 1, 0
    %v404 = vsel %vm264, 1, 0
    %v405 = vsel %vm265, 1, 0
    %v406 = vsel %vm266, 1, 0
    %v407 = vsel %vm267, 1, 0
    %v408 = vsel %vm268, 1, 0
    %v409 = vsel %vm269, 1, 0
    %v410 = vsel %vm270, 1, 0
    %v411 = vsel %vm271, 1, 0
    %v412 = vsel %vm272, 1, 0
    %v413 = vsel %vm273, 1, 0
    %v414 = vsel %vm274, 1, 0
    %v415 = vsel %vm275, 1, 0
    %v416 = vsel %vm276, 1, 0
    %v417 = vsel %vm277, 1, 0
    %v418 = vsel %vm278, 1, 0
    %v419 = vsel %vm279, 1, 0
    %v420 = vsel %vm280, 1, 0
    %v421 = vsel %vm281, 1, 0
    %v422 = vsel %vm282, 1, 0
    %v423 = vsel %vm283, 1, 0
    %v424 = vsel %vm284, 1, 0
    %v425 = vsel %vm285, 1, 0
    %v426 = vsel %vm286, 1, 0
    %v427 = vsel %vm287, 1, 0
    %v428 = vsel %vm288, 1, 0
    %v429 = vsel %vm289, 1, 0
    %v430 = vsel %vm290, 1, 0
    %v431 = vsel %vm291, 1, 0
    %v432 = vsel %vm292, 1, 0
    %v433 = vsel %vm293, 1, 0
    %v434 = vsel %vm294, 1, 0
    %v435 = vsel %vm295, 1, 0
    %v436 = vsel %vm296, 1, 0
    %v437 = vsel %vm297, 1, 0
    %v438 = vsel %vm298, 1, 0
    %v439 = vsel %vm299, 1, 0
    %v440 = vsel %vm300, 1, 0
    %v441 = vsel %vm301, 1, 0
    %v442 = vsel %vm302, 1, 0
    %v443 = vsel %vm303, 1, 0
    %v444 = vsel %vm304, 1, 0
    %v445 = vsel %vm305, 1, 0
    %v446 = vsel %vm306, 1, 0
    %v447 = vsel %vm307, 1, 0
    %v448 = vsel %vm308, 1, 0
    %v449 = vsel %vm309, 1, 0
    %v450 = vsel %vm310, 1, 0
    %v451 = vsel %vm311, 1, 0
    %v452 = vsel %vm312, 1, 0
    %v453 = vsel %vm313, 1, 0
    %v454 = vsel %vm314, 1, 0
    %v455 = vsel %vm315, 1, 0
    %v456 = vsel %vm316, 1, 0
    %v457 = vsel %vm317, 1, 0
    %v458 = vsel %vm318, 1, 0
    %v459 = vsel %vm319, 1, 0
    %v460 = vsel %vm320, 1, 0
    %v461 = vsel %vm321, 1, 0
    %v462 = vsel %vm322, 1, 0
    %v463 = vsel %vm323, 1, 0
    %v464 = vsel %vm324, 1, 0
    %v465 = vsel %vm325, 1, 0
    %v466 = vsel %vm326, 1, 0
    %v467 = vsel %vm327, 1, 0
    %v468 = vsel %vm328, 1, 0
    %v469 = vsel %vm329, 1, 0
    %v470 = vsel %vm330, 1, 0
    %v471 = vsel %vm331, 1, 0
    %v472 = vsel %vm332, 1, 0
    %v473 = vsel %vm333, 1, 0
    %v474 = vsel %vm334, 1, 0
    %v475 = vsel %vm335, 1, 0
    %v476 = vsel %vm336, 1, 0
    %v477 = vsel %vm337, 1, 0
    %v478 = vsel %vm338, 1, 0
    %v479 = vsel %vm339, 1, 0
    %v480 = vsel %vm340, 1, 0
    %v481 = vcvt.s32.f32 %v341
    %v482 = vcvt.s32.f32 %v342
    %v483 = vcvt.s32.f32 %v343
    %v484 = vcvt.s32.f32 %v344
    %v485 = vcvt.s32.f32 %v345
    %v486 = vcvt.s32.f32 %v346
    %v487 = vcvt.s32.f32 %v347
    %v488 = vcvt.s32.f32 %v348
    %v489 = vcvt.s32.f32 %v349
    %v490 = vcvt.s32.f32 %v350
    %v491 = vcvt.s32.f32 %v351
    %v492 = vcvt.s32.f32 %v352
    %v493 = vcvt.s32.f32 %v353
    %v494 = vcvt.s32.f32 %v354
    %v495 = vcvt.s32.f32 %v355
    %v496 = vcvt.s32.f32 %v356
    %v497 = vcvt.s32.f32 %v357
    %v498 = vcvt.s32.f32 %v358
    %v499 = vcvt.s32.f32 %v359
    %v500 = vcvt.s32.f32 %v360
    %v501 = vcvt.s32.f32 %v361
    %v502 = vcvt.s32.f32 %v362
    %v503 = vcvt.s32.f32 %v363
    %v504 = vcvt.s32.f32 %v364
    %v505 = vcvt.s32.f32 %v365
    %v506 = vcvt.s32.f32 %v366
    %v507 = vcvt.s32.f32 %v367
    %v508 = vcvt.s32.f32 %v368
    %v509 = vcvt.s32.f32 %v369
    %v510 = vcvt.s32.f32 %v370
    %v511 = vcvt.s32.f32 %v371
    %v512 = vcvt.s32.f32 %v372
    %v513 = vcvt.s32.f32 %v373
    %v514 = vcvt.s32.f32 %v374
    %v515 = vcvt.s32.f32 %v375
    %v516 = vcvt.s32.f32 %v376
    %v517 = vcvt.s32.f32 %v377
    %v518 = vcvt.s32.f32 %v378
    %v519 = vcvt.s32.f32 %v379
    %v520 = vcvt.s32.f32 %v380
    %v521 = vcvt.s32.f32 %v381
    %v522 = vcvt.s32.f32 %v382
    %v523 = vcvt.s32.f32 %v383
    %v524 = vcvt.s32.f32 %v384
    %v525 = vcvt.s32.f32 %v385
    %v526 = vcvt.s32.f32 %v386
    %v527 = vcvt.s32.f32 %v387
    %v528 = vcvt.s32.f32 %v388
    %v529 = vcvt.s32.f32 %v389
    %v530 = vcvt.s32.f32 %v390
    %v531 = vcvt.s32.f32 %v391
    %v532 = vcvt.s32.f32 %v392
    %v533 = vcvt.s32.f32 %v393
    %v534 = vcvt.s32.f32 %v394
    %v535 = vcvt.s32.f32 %v395
    %v536 = vcvt.s32.f32 %v396
    %v537 = vcvt.s32.f32 %v397
    %v538 = vcvt.s32.f32 %v398
    %v539 = vcvt.s32.f32 %v399
    %v540 = vcvt.s32.f32 %v400
    %v541 = vcvt.s32.f32 %v401
    %v542 = vcvt.s32.f32 %v402
    %v543 = vcvt.s32.f32 %v403
    %v544 = vcvt.s32.f32 %v404
    %v545 = vcvt.s32.f32 %v405
    %v546 = vcvt.s32.f32 %v406
    %v547 = vcvt.s32.f32 %v407
    %v548 = vcvt.s32.f32 %v408
    %v549 = vcvt.s32.f32 %v409
    %v550 = vcvt.s32.f32 %v410
    %v551 = vcvt.s32.f32 %v411
    %v552 = vcvt.s32.f32 %v412
    %v553 = vcvt.s32.f32 %v413
    %v554 = vcvt.s32.f32 %v414
    %v555 = vcvt.s32.f32 %v415
    %v556 = vcvt.s32.f32 %v416
    %v557 = vcvt.s32.f32 %v417
    %v558 = vcvt.s32.f32 %v418
    %v559 = vcvt.s32.f32 %v419
    %v560 = vcvt.s32.f32 %v420
    %v561 = vcvt.s32.f32 %v421
    %v562 = vcvt.s32.f32 %v422
    %v563 = vcvt.s32.f32 %v423
    %v564 = vcvt.s32.f32 %v424
    %v565 = vcvt.s32.f32 %v425
    %v566 = vcvt.s32.f32 %v426
    %v567 = vcvt.s32.f32 %v427
    %v568 = vcvt.s32.f32 %v428
    %v569 = vcvt.s32.f32 %v429
    %v570 = vcvt.s32.f32 %v430
    %v571 = vcvt.s32.f32 %v431
    %v572 = vcvt.s32.f32 %v432
    %v573 = vcvt.s32.f32 %v433
    %v574 = vcvt.s32.f32 %v434
    %v575 = vcvt.s32.f32 %v435
    %v576 = vcvt.s32.f32 %v436
    %v577 = vcvt.s32.f32 %v437
    %v578 = vcvt.s32.f32 %v438
    %v579 = vcvt.s32.f32 %v439
    %v580 = vcvt.s32.f32 %v440
    %v581 = vcvt.s32.f32 %v441
    %v582 = vcvt.s32.f32 %v442
    %v583 = vcvt.s32.f32 %v443
    %v584 = vcvt.s32.f32 %v444
    %v585 = vcvt.s32.f32 %v445
    %v586 = vcvt.s32.f32 %v446
    %v587 = vcvt.s32.f32 %v447
    %v588 = vcvt.s32.f32 %v448
    %v589 = vcvt.s32.f32 %v449
    %v590 = vcvt.s32.f32 %v450
    %v591 = vcvt.s32.f32 %v451
    %v592 = vcvt.s32.f32 %v452
    %v593 = vcvt.s32.f32 %v453
    %v594 = vcvt.s32.f32 %v454
    %v595 = vcvt.s32.f32 %v455
    %v596 = vcvt.s32.f32 %v456
    %v597 = vcvt.s32.f32 %v457
    %v598 = vcvt.s32.f32 %v458
    %v599 = vcvt.s32.f32 %v459
    %v600 = vcvt.s32.f32 %v460
    %v601 = vcvt.s32.f32 %v461
    %v602 = vcvt.s32.f32 %v462
    %v603 = vcvt.s32.f32 %v463
    %v604 = vcvt.s32.f32 %v464
    %v605 = vcvt.s32.f32 %v465
    %v606 = vcvt.s32.f32 %v466
    %v607 = vcvt.s32.f32 %v467
    %v608 = vcvt.s32.f32 %v468
    %v609 = vcvt.s32.f32 %v469
    %v610 = vcvt.s32.f32 %v470
    %v611 = vcvt.s32.f32 %v471
    %v612 = vcvt.s32.f32 %v472
    %v613 = vcvt.s32.f32 %v473
    %v614 = vcvt.s32.f32 %v474
    %v615 = vcvt.s32.f32 %v475
    %v616 = vcvt.s32.f32 %v476
    %v617 = vcvt.s32.f32 %v477
    %v618 = vcvt.s32.f32 %v478
    %v619 = vcvt.s32.f32 %v479
    %v620 = vcvt.s32.f32 %v480
    %v621 = vpack.c.bf16 %v488, %v481
    %v622 = vpack.c.bf16 %v489, %v482
    %v623 = vpack.c.bf16 %v490, %v483
    %v624 = vpack.c.bf16 %v491, %v484
    %v625 = vpack.c.bf16 %v492, %v485
    %v626 = vpack.c.bf16 %v493, %v486
    %v627 = vpack.c.bf16 %v494, %v487
    %v628 = vpack.c.bf16 %v502, %v495
    %v629 = vpack.c.bf16 %v503, %v496
    %v630 = vpack.c.bf16 %v504, %v497
    %v631 = vpack.c.bf16 %v505, %v498
    %v632 = vpack.c.bf16 %v506, %v499
    %v633 = vpack.c.bf16 %v507, %v500
    %v634 = vpack.c.bf16 %v508, %v501
    %v635 = vpack.c.bf16 %v516, %v509
    %v636 = vpack.c.bf16 %v517, %v510
    %v637 = vpack.c.bf16 %v518, %v511
    %v638 = vpack.c.bf16 %v519, %v512
    %v639 = vpack.c.bf16 %v520, %v513
    %v640 = vpack.c.bf16 %v521, %v514
    %v641 = vpack.c.bf16 %v522, %v515
    %v642 = vpack.c.bf16 %v530, %v523
    %v643 = vpack.c.bf16 %v531, %v524
    %v644 = vpack.c.bf16 %v532, %v525
    %v645 = vpack.c.bf16 %v533, %v526
    %v646 = vpack.c.bf16 %v534, %v527
    %v647 = vpack.c.bf16 %v535, %v528
    %v648 = vpack.c.bf16 %v536, %v529
    %v649 = vpack.c.bf16 %v544, %v537
    %v650 = vpack.c.bf16 %v545, %v538
    %v651 = vpack.c.bf16 %v546, %v539
    %v652 = vpack.c.bf16 %v547, %v540
    %v653 = vpack.c.bf16 %v548, %v541
    %v654 = vpack.c.bf16 %v549, %v542
    %v655 = vpack.c.bf16 %v550, %v543
    %v656 = vpack.c.bf16 %v558, %v551
    %v657 = vpack.c.bf16 %v559, %v552
    %v658 = vpack.c.bf16 %v560, %v553
    %v659 = vpack.c.bf16 %v561, %v554
    %v660 = vpack.c.bf16 %v562, %v555
    %v661 = vpack.c.bf16 %v563, %v556
    %v662 = vpack.c.bf16 %v564, %v557
    %v663 = vpack.c.bf16 %v572, %v565
    %v664 = vpack.c.bf16 %v573, %v566
    %v665 = vpack.c.bf16 %v574, %v567
    %v666 = vpack.c.bf16 %v575, %v568
    %v667 = vpack.c.bf16 %v576, %v569
    %v668 = vpack.c.bf16 %v577, %v570
    %v669 = vpack.c.bf16 %v578, %v571
    %v670 = vpack.c.bf16 %v586, %v579
    %v671 = vpack.c.bf16 %v587, %v580
    %v672 = vpack.c.bf16 %v588, %v581
    %v673 = vpack.c.bf16 %v589, %v582
    %v674 = vpack.c.bf16 %v590, %v583
    %v675 = vpack.c.bf16 %v591, %v584
    %v676 = vpack.c.bf16 %v592, %v585
    %v677 = vpack.c.bf16 %v600, %v593
    %v678 = vpack.c.bf16 %v601, %v594
    %v679 = vpack.c.bf16 %v602, %v595
    %v680 = vpack.c.bf16 %v603, %v596
    %v681 = vpack.c.bf16 %v604, %v597
    %v682 = vpack.c.bf16 %v605, %v598
    %v683 = vpack.c.bf16 %v606, %v599
    %v684 = vpack.c.bf16 %v614, %v607
    %v685 = vpack.c.bf16 %v615, %v608
    %v686 = vpack.c.bf16 %v616, %v609
    %v687 = vpack.c.bf16 %v617, %v610
    %v688 = vpack.c.bf16 %v618, %v611
    %v689 = vpack.c.bf16 %v619, %v612
    %v690 = vpack.c.bf16 %v620, %v613
    %v691 = vld [vmem:[%s2] sm:$0xf]
    %v692 = vld [vmem:[%s2 + $0x4] sm:$0xf]
    %v693 = vld [vmem:[%s2 + $0x8] sm:$0xf]
    %v694 = vld [vmem:[%s2 + $0xc] sm:$0xf]
    %v695 = vld [vmem:[%s2 + $0x10] sm:$0xf]
    %v696 = vld [vmem:[%s2 + $0x14] sm:$0xf]
    %v697 = vld [vmem:[%s2 + $0x18] sm:$0xf]
    %v698 = vld [vmem:[%s2 + $0x1c] sm:$0xf]
    %v699 = vld [vmem:[%s2 + $0x20] sm:$0xf]
    %v700 = vld [vmem:[%s2 + $0x24] sm:$0xf]
    %v701 = vld [vmem:[%s2 + $0x28] sm:$0xf]
    %v702 = vld [vmem:[%s2 + $0x2c] sm:$0xf]
    %v703 = vld [vmem:[%s2 + $0x30] sm:$0xf]
    %v704 = vld [vmem:[%s2 + $0x34] sm:$0xf]
    %v705 = vld [vmem:[%s2 + $0x38] sm:$0xf]
    %v706 = vld [vmem:[%s2 + $0x3c] sm:$0xf]
    %v707 = vld [vmem:[%s2 + $0x40] sm:$0xf]
    %v708 = vld [vmem:[%s2 + $0x44] sm:$0xf]
    %v709 = vld [vmem:[%s2 + $0x48] sm:$0xf]
    %v710 = vld [vmem:[%s2 + $0x4c] sm:$0xf]
    %v711 = vld [vmem:[%s2 + $0x50] sm:$0xf]
    %v712 = vld [vmem:[%s2 + $0x54] sm:$0xf]
    %v713 = vld [vmem:[%s2 + $0x58] sm:$0xf]
    %v714 = vld [vmem:[%s2 + $0x5c] sm:$0xf]
    %v715 = vld [vmem:[%s2 + $0x60] sm:$0xf]
    %v716 = vld [vmem:[%s2 + $0x64] sm:$0xf]
    %v717 = vld [vmem:[%s2 + $0x68] sm:$0xf]
    %v718 = vld [vmem:[%s2 + $0x6c] sm:$0xf]
    %v719 = vld [vmem:[%s2 + $0x70] sm:$0xf]
    %v720 = vld [vmem:[%s2 + $0x74] sm:$0xf]
    %v721 = vld [vmem:[%s2 + $0x78] sm:$0xf]
    %v722 = vld [vmem:[%s2 + $0x7c] sm:$0xf]
    %v723 = vld [vmem:[%s2 + $0x80] sm:$0xf]
    %v724 = vld [vmem:[%s2 + $0x84] sm:$0xf]
    %v725 = vld [vmem:[%s2 + $0x88] sm:$0xf]
    %v726 = vld [vmem:[%s2 + $0x8c] sm:$0xf]
    %v727 = vld [vmem:[%s2 + $0x90] sm:$0xf]
    %v728 = vld [vmem:[%s2 + $0x94] sm:$0xf]
    %v729 = vld [vmem:[%s2 + $0x98] sm:$0xf]
    %v730 = vld [vmem:[%s2 + $0x9c] sm:$0xf]
    %v731 = vld [vmem:[%s2 + $0xa0] sm:$0xf]
    %v732 = vld [vmem:[%s2 + $0xa4] sm:$0xf]
    %v733 = vld [vmem:[%s2 + $0xa8] sm:$0xf]
    %v734 = vld [vmem:[%s2 + $0xac] sm:$0xf]
    %v735 = vld [vmem:[%s2 + $0xb0] sm:$0xf]
    %v736 = vld [vmem:[%s2 + $0xb4] sm:$0xf]
    %v737 = vld [vmem:[%s2 + $0xb8] sm:$0xf]
    %v738 = vld [vmem:[%s2 + $0xbc] sm:$0xf]
    %v739 = vld [vmem:[%s2 + $0xc0] sm:$0xf]
    %v740 = vld [vmem:[%s2 + $0xc4] sm:$0xf]
    %v741 = vld [vmem:[%s2 + $0xc8] sm:$0xf]
    %v742 = vld [vmem:[%s2 + $0xcc] sm:$0xf]
    %v743 = vld [vmem:[%s2 + $0xd0] sm:$0xf]
    %v744 = vld [vmem:[%s2 + $0xd4] sm:$0xf]
    %v745 = vld [vmem:[%s2 + $0xd8] sm:$0xf]
    %v746 = vld [vmem:[%s2 + $0xdc] sm:$0xf]
    %v747 = vld [vmem:[%s2 + $0xe0] sm:$0xf]
    %v748 = vld [vmem:[%s2 + $0xe4] sm:$0xf]
    %v749 = vld [vmem:[%s2 + $0xe8] sm:$0xf]
    %v750 = vld [vmem:[%s2 + $0xec] sm:$0xf]
    %v751 = vld [vmem:[%s2 + $0xf0] sm:$0xf]
    %v752 = vld [vmem:[%s2 + $0xf4] sm:$0xf]
    %v753 = vld [vmem:[%s2 + $0xf8] sm:$0xf]
    %v754 = vld [vmem:[%s2 + $0xfc] sm:$0xf]
    %v755 = vld [vmem:[%s2 + $0x100] sm:$0xf]
    %v756 = vld [vmem:[%s2 + $0x104] sm:$0xf]
    %v757 = vld [vmem:[%s2 + $0x108] sm:$0xf]
    %v758 = vld [vmem:[%s2 + $0x10c] sm:$0xf]
    %v759 = vld [vmem:[%s2 + $0x110] sm:$0xf]
    %v760 = vld [vmem:[%s2 + $0x114] sm:$0xf]
    %v761 = vld [vmem:[%s2 + $0x118] sm:$0xf]
    %v762 = vld [vmem:[%s2 + $0x11c] sm:$0xf]
    %v763 = vld [vmem:[%s2 + $0x120] sm:$0xf]
    %v764 = vld [vmem:[%s2 + $0x124] sm:$0xf]
    %v765 = vld [vmem:[%s2 + $0x128] sm:$0xf]
    %v766 = vld [vmem:[%s2 + $0x12c] sm:$0xf]
    %v767 = vld [vmem:[%s2 + $0x130] sm:$0xf]
    %v768 = vld [vmem:[%s2 + $0x134] sm:$0xf]
    %v769 = vld [vmem:[%s2 + $0x138] sm:$0xf]
    %v770 = vld [vmem:[%s2 + $0x13c] sm:$0xf]
    %v771 = vld [vmem:[%s2 + $0x140] sm:$0xf]
    %v772 = vld [vmem:[%s2 + $0x144] sm:$0xf]
    %v773 = vld [vmem:[%s2 + $0x148] sm:$0xf]
    %v774 = vld [vmem:[%s2 + $0x14c] sm:$0xf]
    %v775 = vld [vmem:[%s2 + $0x150] sm:$0xf]
    %v776 = vld [vmem:[%s2 + $0x154] sm:$0xf]
    %v777 = vld [vmem:[%s2 + $0x158] sm:$0xf]
    %v778 = vld [vmem:[%s2 + $0x15c] sm:$0xf]
    %v779 = vld [vmem:[%s2 + $0x160] sm:$0xf]
    %v780 = vld [vmem:[%s2 + $0x164] sm:$0xf]
    %v781 = vld [vmem:[%s2 + $0x168] sm:$0xf]
    %v782 = vld [vmem:[%s2 + $0x16c] sm:$0xf]
    %v783 = vld [vmem:[%s2 + $0x170] sm:$0xf]
    %v784 = vld [vmem:[%s2 + $0x174] sm:$0xf]
    %v785 = vld [vmem:[%s2 + $0x178] sm:$0xf]
    %v786 = vld [vmem:[%s2 + $0x17c] sm:$0xf]
    %v787 = vld [vmem:[%s2 + $0x180] sm:$0xf]
    %v788 = vld [vmem:[%s2 + $0x184] sm:$0xf]
    %v789 = vld [vmem:[%s3] sm:$0x1]
    %v791 = vperm.slane %v789, 0
    %v891 = vunpack.c.l.b16 %v691
    %v892 = vunpack.c.l.b16 %v692
    %v893 = vunpack.c.l.b16 %v693
    %v894 = vunpack.c.l.b16 %v694
    %v895 = vunpack.c.l.b16 %v695
    %v896 = vunpack.c.l.b16 %v696
    %v897 = vunpack.c.l.b16 %v697
    %v898 = vunpack.c.l.b16 %v698
    %v899 = vunpack.c.l.b16 %v699
    %v900 = vunpack.c.l.b16 %v700
    %v901 = vunpack.c.l.b16 %v701
    %v902 = vunpack.c.l.b16 %v702
    %v903 = vunpack.c.l.b16 %v703
    %v904 = vunpack.c.l.b16 %v704
    %v905 = vunpack.c.l.b16 %v705
    %v906 = vunpack.c.l.b16 %v706
    %v907 = vunpack.c.l.b16 %v707
    %v908 = vunpack.c.l.b16 %v708
    %v909 = vunpack.c.l.b16 %v709
    %v910 = vunpack.c.l.b16 %v710
    %v911 = vunpack.c.l.b16 %v711
    %v912 = vunpack.c.l.b16 %v712
    %v913 = vunpack.c.l.b16 %v713
    %v914 = vunpack.c.l.b16 %v714
    %v915 = vunpack.c.l.b16 %v715
    %v916 = vunpack.c.l.b16 %v716
    %v917 = vunpack.c.l.b16 %v717
    %v918 = vunpack.c.l.b16 %v718
    %v919 = vunpack.c.l.b16 %v719
    %v920 = vunpack.c.l.b16 %v720
    %v921 = vunpack.c.l.b16 %v721
    %v922 = vunpack.c.l.b16 %v722
    %v923 = vunpack.c.l.b16 %v723
    %v924 = vunpack.c.l.b16 %v724
    %v925 = vunpack.c.l.b16 %v725
    %v926 = vunpack.c.l.b16 %v726
    %v927 = vunpack.c.l.b16 %v727
    %v928 = vunpack.c.l.b16 %v728
    %v929 = vunpack.c.l.b16 %v729
    %v930 = vunpack.c.l.b16 %v730
    %v931 = vunpack.c.l.b16 %v731
    %v932 = vunpack.c.l.b16 %v732
    %v933 = vunpack.c.l.b16 %v733
    %v934 = vunpack.c.l.b16 %v734
    %v935 = vunpack.c.l.b16 %v735
    %v936 = vunpack.c.l.b16 %v736
    %v937 = vunpack.c.l.b16 %v737
    %v938 = vunpack.c.l.b16 %v738
    %v939 = vunpack.c.l.b16 %v739
    %v940 = vunpack.c.l.b16 %v740
    %v941 = vunpack.c.l.b16 %v741
    %v942 = vunpack.c.l.b16 %v742
    %v943 = vunpack.c.l.b16 %v743
    %v944 = vunpack.c.l.b16 %v744
    %v945 = vunpack.c.l.b16 %v745
    %v946 = vunpack.c.l.b16 %v746
    %v947 = vunpack.c.l.b16 %v747
    %v948 = vunpack.c.l.b16 %v748
    %v949 = vunpack.c.l.b16 %v749
    %v950 = vunpack.c.l.b16 %v750
    %v951 = vunpack.c.l.b16 %v751
    %v952 = vunpack.c.l.b16 %v752
    %v953 = vunpack.c.l.b16 %v753
    %v954 = vunpack.c.l.b16 %v754
    %v955 = vunpack.c.l.b16 %v755
    %v956 = vunpack.c.l.b16 %v756
    %v957 = vunpack.c.l.b16 %v757
    %v958 = vunpack.c.l.b16 %v758
    %v959 = vunpack.c.l.b16 %v759
    %v960 = vunpack.c.l.b16 %v760
    %v961 = vunpack.c.l.b16 %v761
    %v962 = vunpack.c.l.b16 %v762
    %v963 = vunpack.c.l.b16 %v763
    %v964 = vunpack.c.l.b16 %v764
    %v965 = vunpack.c.l.b16 %v765
    %v966 = vunpack.c.l.b16 %v766
    %v967 = vunpack.c.l.b16 %v767
    %v968 = vunpack.c.l.b16 %v768
    %v969 = vunpack.c.l.b16 %v769
    %v970 = vunpack.c.l.b16 %v770
    %v971 = vunpack.c.l.b16 %v771
    %v972 = vunpack.c.l.b16 %v772
    %v973 = vunpack.c.l.b16 %v773
    %v974 = vunpack.c.l.b16 %v774
    %v975 = vunpack.c.l.b16 %v775
    %v976 = vunpack.c.l.b16 %v776
    %v977 = vunpack.c.l.b16 %v777
    %v978 = vunpack.c.l.b16 %v778
    %v979 = vunpack.c.l.b16 %v779
    %v980 = vunpack.c.l.b16 %v780
    %v981 = vunpack.c.l.b16 %v781
    %v982 = vunpack.c.l.b16 %v782
    %v983 = vunpack.c.l.b16 %v783
    %v984 = vunpack.c.l.b16 %v784
    %v985 = vunpack.c.l.b16 %v785
    %v986 = vunpack.c.l.b16 %v786
    %v987 = vunpack.c.l.b16 %v787
    %v988 = vunpack.c.l.b16 %v788
    %v989 = vpack.c.b16 %v892, %v891
    %v990 = vpack.c.b16 %v894, %v893
    %v991 = vpack.c.b16 %v896, %v895
    %v992 = vpack.c.b16 %v898, %v897
    %v993 = vpack.c.b16 %v900, %v899
    %v994 = vpack.c.b16 %v902, %v901
    %v995 = vpack.c.b16 %v904, %v903
    %v996 = vpack.c.b16 %v906, %v905
    %v997 = vpack.c.b16 %v908, %v907
    %v998 = vpack.c.b16 %v910, %v909
    %v999 = vpack.c.b16 %v912, %v911
    %v1000 = vpack.c.b16 %v914, %v913
    %v1001 = vpack.c.b16 %v916, %v915
    %v1002 = vpack.c.b16 %v918, %v917
    %v1003 = vpack.c.b16 %v920, %v919
    %v1004 = vpack.c.b16 %v922, %v921
    %v1005 = vpack.c.b16 %v924, %v923
    %v1006 = vpack.c.b16 %v926, %v925
    %v1007 = vpack.c.b16 %v928, %v927
    %v1008 = vpack.c.b16 %v930, %v929
    %v1009 = vpack.c.b16 %v932, %v931
    %v1010 = vpack.c.b16 %v934, %v933
    %v1011 = vpack.c.b16 %v936, %v935
    %v1012 = vpack.c.b16 %v938, %v937
    %v1013 = vpack.c.b16 %v940, %v939
    %v1014 = vpack.c.b16 %v942, %v941
    %v1015 = vpack.c.b16 %v944, %v943
    %v1016 = vpack.c.b16 %v946, %v945
    %v1017 = vpack.c.b16 %v948, %v947
    %v1018 = vpack.c.b16 %v950, %v949
    %v1019 = vpack.c.b16 %v952, %v951
    %v1020 = vpack.c.b16 %v954, %v953
    %v1021 = vpack.c.b16 %v956, %v955
    %v1022 = vpack.c.b16 %v958, %v957
    %v1023 = vpack.c.b16 %v960, %v959
    %v1024 = vpack.c.b16 %v962, %v961
    %v1025 = vpack.c.b16 %v964, %v963
    %v1026 = vpack.c.b16 %v966, %v965
    %v1027 = vpack.c.b16 %v968, %v967
    %v1028 = vpack.c.b16 %v970, %v969
    %v1029 = vpack.c.b16 %v972, %v971
    %v1030 = vpack.c.b16 %v974, %v973
    %v1031 = vpack.c.b16 %v976, %v975
    %v1032 = vpack.c.b16 %v978, %v977
    %v1033 = vpack.c.b16 %v980, %v979
    %v1034 = vpack.c.b16 %v982, %v981
    %v1035 = vpack.c.b16 %v984, %v983
    %v1036 = vpack.c.b16 %v986, %v985
    %v1037 = vpack.c.b16 %v988, %v987
    %vm1087 = vcmask 130048
    %v1089 = vsel %vm1087, %v627, 0
    %v1092 = vsel %vm1087, %v634, 0
    %v1095 = vsel %vm1087, %v641, 0
    %v1098 = vsel %vm1087, %v648, 0
    %v1101 = vsel %vm1087, %v655, 0
    %v1104 = vsel %vm1087, %v662, 0
    %v1107 = vsel %vm1087, %v669, 0
    %v1110 = vsel %vm1087, %v676, 0
    %v1113 = vsel %vm1087, %v683, 0
    %v1116 = vsel %vm1087, %v690, 0
    %1118 = vmatpush.bf16.msra.mxu0 %v996
    %1119 = vmatpush.bf16.msra.mxu0 %v995
    %1120 = vmatpush.bf16.msra.mxu0 %v994
    %1121 = vmatpush.bf16.msra.mxu0 %v993
    %1122 = vmatpush.bf16.msra.mxu0 %v992
    %1123 = vmatpush.bf16.msra.mxu0 %v991
    %1124 = vmatpush.bf16.msra.mxu0 %v990
    %1125 = vmatpush.bf16.msra.mxu0 %v989
    %1126 = vmatmul.bf16.gmra.mxu0 %v621
    %v1127 = vpop.f32.mrf.mxu0
    %v1128 = vadd.f32 %v791, %v1127
    %v1129 = vpop.f32.mrf.mxu0
    %v1130 = vadd.f32 %v791, %v1129
    %1131 = vmatmul.bf16.gmra.mxu0 %v628
    %v1132 = vpop.f32.mrf.mxu0
    %v1133 = vadd.f32 %v791, %v1132
    %v1134 = vpop.f32.mrf.mxu0
    %v1135 = vadd.f32 %v791, %v1134
    %1136 = vmatmul.bf16.gmra.mxu0 %v635
    %v1137 = vpop.f32.mrf.mxu0
    %v1138 = vadd.f32 %v791, %v1137
    %v1139 = vpop.f32.mrf.mxu0
    %v1140 = vadd.f32 %v791, %v1139
    %1141 = vmatmul.bf16.gmra.mxu0 %v642
    %v1142 = vpop.f32.mrf.mxu0
    %v1143 = vadd.f32 %v791, %v1142
    %v1144 = vpop.f32.mrf.mxu0
    %v1145 = vadd.f32 %v791, %v1144
    %1146 = vmatmul.bf16.gmra.mxu0 %v649
    %v1147 = vpop.f32.mrf.mxu0
    %v1148 = vadd.f32 %v791, %v1147
    %v1149 = vpop.f32.mrf.mxu0
    %v1150 = vadd.f32 %v791, %v1149
    %1151 = vmatmul.bf16.gmra.mxu0 %v656
    %v1152 = vpop.f32.mrf.mxu0
    %v1153 = vadd.f32 %v791, %v1152
    %v1154 = vpop.f32.mrf.mxu0
    %v1155 = vadd.f32 %v791, %v1154
    %1156 = vmatmul.bf16.gmra.mxu0 %v663
    %v1157 = vpop.f32.mrf.mxu0
    %v1158 = vadd.f32 %v791, %v1157
    %v1159 = vpop.f32.mrf.mxu0
    %v1160 = vadd.f32 %v791, %v1159
    %1161 = vmatmul.bf16.gmra.mxu0 %v670
    %v1162 = vpop.f32.mrf.mxu0
    %v1163 = vadd.f32 %v791, %v1162
    %v1164 = vpop.f32.mrf.mxu0
    %v1165 = vadd.f32 %v791, %v1164
    %1166 = vmatmul.bf16.gmra.mxu0 %v677
    %v1167 = vpop.f32.mrf.mxu0
    %v1168 = vadd.f32 %v791, %v1167
    %v1169 = vpop.f32.mrf.mxu0
    %v1170 = vadd.f32 %v791, %v1169
    %1171 = vmatmul.bf16.gmra.mxu0 %v684
    %v1172 = vpop.f32.mrf.mxu0
    %v1173 = vadd.f32 %v791, %v1172
    %v1174 = vpop.f32.mrf.mxu0
    %v1175 = vadd.f32 %v791, %v1174
    %1176 = vdwg.mxu0
    %1177 = vmatpush.bf16.msra.mxu0 %v1004
    %1178 = vmatpush.bf16.msra.mxu0 %v1003
    %1179 = vmatpush.bf16.msra.mxu0 %v1002
    %1180 = vmatpush.bf16.msra.mxu0 %v1001
    %1181 = vmatpush.bf16.msra.mxu0 %v1000
    %1182 = vmatpush.bf16.msra.mxu0 %v999
    %1183 = vmatpush.bf16.msra.mxu0 %v998
    %1184 = vmatpush.bf16.msra.mxu0 %v997
    %1185 = vmatmul.bf16.gmra.mxu0 %v622
    %v1186 = vpop.f32.mrf.mxu0
    %v1187 = vadd.f32 %v1128, %v1186
    %v1188 = vpop.f32.mrf.mxu0
    %v1189 = vadd.f32 %v1130, %v1188
    %1190 = vmatmul.bf16.gmra.mxu0 %v629
    %v1191 = vpop.f32.mrf.mxu0
    %v1192 = vadd.f32 %v1133, %v1191
    %v1193 = vpop.f32.mrf.mxu0
    %v1194 = vadd.f32 %v1135, %v1193
    %1195 = vmatmul.bf16.gmra.mxu0 %v636
    %v1196 = vpop.f32.mrf.mxu0
    %v1197 = vadd.f32 %v1138, %v1196
    %v1198 = vpop.f32.mrf.mxu0
    %v1199 = vadd.f32 %v1140, %v1198
    %1200 = vmatmul.bf16.gmra.mxu0 %v643
    %v1201 = vpop.f32.mrf.mxu0
    %v1202 = vadd.f32 %v1143, %v1201
    %v1203 = vpop.f32.mrf.mxu0
    %v1204 = vadd.f32 %v1145, %v1203
    %1205 = vmatmul.bf16.gmra.mxu0 %v650
    %v1206 = vpop.f32.mrf.mxu0
    %v1207 = vadd.f32 %v1148, %v1206
    %v1208 = vpop.f32.mrf.mxu0
    %v1209 = vadd.f32 %v1150, %v1208
    %1210 = vmatmul.bf16.gmra.mxu0 %v657
    %v1211 = vpop.f32.mrf.mxu0
    %v1212 = vadd.f32 %v1153, %v1211
    %v1213 = vpop.f32.mrf.mxu0
    %v1214 = vadd.f32 %v1155, %v1213
    %1215 = vmatmul.bf16.gmra.mxu0 %v664
    %v1216 = vpop.f32.mrf.mxu0
    %v1217 = vadd.f32 %v1158, %v1216
    %v1218 = vpop.f32.mrf.mxu0
    %v1219 = vadd.f32 %v1160, %v1218
    %1220 = vmatmul.bf16.gmra.mxu0 %v671
    %v1221 = vpop.f32.mrf.mxu0
    %v1222 = vadd.f32 %v1163, %v1221
    %v1223 = vpop.f32.mrf.mxu0
    %v1224 = vadd.f32 %v1165, %v1223
    %1225 = vmatmul.bf16.gmra.mxu0 %v678
    %v1226 = vpop.f32.mrf.mxu0
    %v1227 = vadd.f32 %v1168, %v1226
    %v1228 = vpop.f32.mrf.mxu0
    %v1229 = vadd.f32 %v1170, %v1228
    %1230 = vmatmul.bf16.gmra.mxu0 %v685
    %v1231 = vpop.f32.mrf.mxu0
    %v1232 = vadd.f32 %v1173, %v1231
    %v1233 = vpop.f32.mrf.mxu0
    %v1234 = vadd.f32 %v1175, %v1233
    %1235 = vdwg.mxu0
    %1236 = vmatpush.bf16.msra.mxu0 %v1012
    %1237 = vmatpush.bf16.msra.mxu0 %v1011
    %1238 = vmatpush.bf16.msra.mxu0 %v1010
    %1239 = vmatpush.bf16.msra.mxu0 %v1009
    %1240 = vmatpush.bf16.msra.mxu0 %v1008
    %1241 = vmatpush.bf16.msra.mxu0 %v1007
    %1242 = vmatpush.bf16.msra.mxu0 %v1006
    %1243 = vmatpush.bf16.msra.mxu0 %v1005
    %1244 = vmatmul.bf16.gmra.mxu0 %v623
    %v1245 = vpop.f32.mrf.mxu0
    %v1246 = vadd.f32 %v1187, %v1245
    %v1247 = vpop.f32.mrf.mxu0
    %v1248 = vadd.f32 %v1189, %v1247
    %1249 = vmatmul.bf16.gmra.mxu0 %v630
    %v1250 = vpop.f32.mrf.mxu0
    %v1251 = vadd.f32 %v1192, %v1250
    %v1252 = vpop.f32.mrf.mxu0
    %v1253 = vadd.f32 %v1194, %v1252
    %1254 = vmatmul.bf16.gmra.mxu0 %v637
    %v1255 = vpop.f32.mrf.mxu0
    %v1256 = vadd.f32 %v1197, %v1255
    %v1257 = vpop.f32.mrf.mxu0
    %v1258 = vadd.f32 %v1199, %v1257
    %1259 = vmatmul.bf16.gmra.mxu0 %v644
    %v1260 = vpop.f32.mrf.mxu0
    %v1261 = vadd.f32 %v1202, %v1260
    %v1262 = vpop.f32.mrf.mxu0
    %v1263 = vadd.f32 %v1204, %v1262
    %1264 = vmatmul.bf16.gmra.mxu0 %v651
    %v1265 = vpop.f32.mrf.mxu0
    %v1266 = vadd.f32 %v1207, %v1265
    %v1267 = vpop.f32.mrf.mxu0
    %v1268 = vadd.f32 %v1209, %v1267
    %1269 = vmatmul.bf16.gmra.mxu0 %v658
    %v1270 = vpop.f32.mrf.mxu0
    %v1271 = vadd.f32 %v1212, %v1270
    %v1272 = vpop.f32.mrf.mxu0
    %v1273 = vadd.f32 %v1214, %v1272
    %1274 = vmatmul.bf16.gmra.mxu0 %v665
    %v1275 = vpop.f32.mrf.mxu0
    %v1276 = vadd.f32 %v1217, %v1275
    %v1277 = vpop.f32.mrf.mxu0
    %v1278 = vadd.f32 %v1219, %v1277
    %1279 = vmatmul.bf16.gmra.mxu0 %v672
    %v1280 = vpop.f32.mrf.mxu0
    %v1281 = vadd.f32 %v1222, %v1280
    %v1282 = vpop.f32.mrf.mxu0
    %v1283 = vadd.f32 %v1224, %v1282
    %1284 = vmatmul.bf16.gmra.mxu0 %v679
    %v1285 = vpop.f32.mrf.mxu0
    %v1286 = vadd.f32 %v1227, %v1285
    %v1287 = vpop.f32.mrf.mxu0
    %v1288 = vadd.f32 %v1229, %v1287
    %1289 = vmatmul.bf16.gmra.mxu0 %v686
    %v1290 = vpop.f32.mrf.mxu0
    %v1291 = vadd.f32 %v1232, %v1290
    %v1292 = vpop.f32.mrf.mxu0
    %v1293 = vadd.f32 %v1234, %v1292
    %1294 = vdwg.mxu0
    %1295 = vmatpush.bf16.msra.mxu0 %v1020
    %1296 = vmatpush.bf16.msra.mxu0 %v1019
    %1297 = vmatpush.bf16.msra.mxu0 %v1018
    %1298 = vmatpush.bf16.msra.mxu0 %v1017
    %1299 = vmatpush.bf16.msra.mxu0 %v1016
    %1300 = vmatpush.bf16.msra.mxu0 %v1015
    %1301 = vmatpush.bf16.msra.mxu0 %v1014
    %1302 = vmatpush.bf16.msra.mxu0 %v1013
    %1303 = vmatmul.bf16.gmra.mxu0 %v624
    %v1304 = vpop.f32.mrf.mxu0
    %v1305 = vadd.f32 %v1246, %v1304
    %v1306 = vpop.f32.mrf.mxu0
    %v1307 = vadd.f32 %v1248, %v1306
    %1308 = vmatmul.bf16.gmra.mxu0 %v631
    %v1309 = vpop.f32.mrf.mxu0
    %v1310 = vadd.f32 %v1251, %v1309
    %v1311 = vpop.f32.mrf.mxu0
    %v1312 = vadd.f32 %v1253, %v1311
    %1313 = vmatmul.bf16.gmra.mxu0 %v638
    %v1314 = vpop.f32.mrf.mxu0
    %v1315 = vadd.f32 %v1256, %v1314
    %v1316 = vpop.f32.mrf.mxu0
    %v1317 = vadd.f32 %v1258, %v1316
    %1318 = vmatmul.bf16.gmra.mxu0 %v645
    %v1319 = vpop.f32.mrf.mxu0
    %v1320 = vadd.f32 %v1261, %v1319
    %v1321 = vpop.f32.mrf.mxu0
    %v1322 = vadd.f32 %v1263, %v1321
    %1323 = vmatmul.bf16.gmra.mxu0 %v652
    %v1324 = vpop.f32.mrf.mxu0
    %v1325 = vadd.f32 %v1266, %v1324
    %v1326 = vpop.f32.mrf.mxu0
    %v1327 = vadd.f32 %v1268, %v1326
    %1328 = vmatmul.bf16.gmra.mxu0 %v659
    %v1329 = vpop.f32.mrf.mxu0
    %v1330 = vadd.f32 %v1271, %v1329
    %v1331 = vpop.f32.mrf.mxu0
    %v1332 = vadd.f32 %v1273, %v1331
    %1333 = vmatmul.bf16.gmra.mxu0 %v666
    %v1334 = vpop.f32.mrf.mxu0
    %v1335 = vadd.f32 %v1276, %v1334
    %v1336 = vpop.f32.mrf.mxu0
    %v1337 = vadd.f32 %v1278, %v1336
    %1338 = vmatmul.bf16.gmra.mxu0 %v673
    %v1339 = vpop.f32.mrf.mxu0
    %v1340 = vadd.f32 %v1281, %v1339
    %v1341 = vpop.f32.mrf.mxu0
    %v1342 = vadd.f32 %v1283, %v1341
    %1343 = vmatmul.bf16.gmra.mxu0 %v680
    %v1344 = vpop.f32.mrf.mxu0
    %v1345 = vadd.f32 %v1286, %v1344
    %v1346 = vpop.f32.mrf.mxu0
    %v1347 = vadd.f32 %v1288, %v1346
    %1348 = vmatmul.bf16.gmra.mxu0 %v687
    %v1349 = vpop.f32.mrf.mxu0
    %v1350 = vadd.f32 %v1291, %v1349
    %v1351 = vpop.f32.mrf.mxu0
    %v1352 = vadd.f32 %v1293, %v1351
    %1353 = vdwg.mxu0
    %1354 = vmatpush.bf16.msra.mxu0 %v1028
    %1355 = vmatpush.bf16.msra.mxu0 %v1027
    %1356 = vmatpush.bf16.msra.mxu0 %v1026
    %1357 = vmatpush.bf16.msra.mxu0 %v1025
    %1358 = vmatpush.bf16.msra.mxu0 %v1024
    %1359 = vmatpush.bf16.msra.mxu0 %v1023
    %1360 = vmatpush.bf16.msra.mxu0 %v1022
    %1361 = vmatpush.bf16.msra.mxu0 %v1021
    %1362 = vmatmul.bf16.gmra.mxu0 %v625
    %v1363 = vpop.f32.mrf.mxu0
    %v1364 = vadd.f32 %v1305, %v1363
    %v1365 = vpop.f32.mrf.mxu0
    %v1366 = vadd.f32 %v1307, %v1365
    %1367 = vmatmul.bf16.gmra.mxu0 %v632
    %v1368 = vpop.f32.mrf.mxu0
    %v1369 = vadd.f32 %v1310, %v1368
    %v1370 = vpop.f32.mrf.mxu0
    %v1371 = vadd.f32 %v1312, %v1370
    %1372 = vmatmul.bf16.gmra.mxu0 %v639
    %v1373 = vpop.f32.mrf.mxu0
    %v1374 = vadd.f32 %v1315, %v1373
    %v1375 = vpop.f32.mrf.mxu0
    %v1376 = vadd.f32 %v1317, %v1375
    %1377 = vmatmul.bf16.gmra.mxu0 %v646
    %v1378 = vpop.f32.mrf.mxu0
    %v1379 = vadd.f32 %v1320, %v1378
    %v1380 = vpop.f32.mrf.mxu0
    %v1381 = vadd.f32 %v1322, %v1380
    %1382 = vmatmul.bf16.gmra.mxu0 %v653
    %v1383 = vpop.f32.mrf.mxu0
    %v1384 = vadd.f32 %v1325, %v1383
    %v1385 = vpop.f32.mrf.mxu0
    %v1386 = vadd.f32 %v1327, %v1385
    %1387 = vmatmul.bf16.gmra.mxu0 %v660
    %v1388 = vpop.f32.mrf.mxu0
    %v1389 = vadd.f32 %v1330, %v1388
    %v1390 = vpop.f32.mrf.mxu0
    %v1391 = vadd.f32 %v1332, %v1390
    %1392 = vmatmul.bf16.gmra.mxu0 %v667
    %v1393 = vpop.f32.mrf.mxu0
    %v1394 = vadd.f32 %v1335, %v1393
    %v1395 = vpop.f32.mrf.mxu0
    %v1396 = vadd.f32 %v1337, %v1395
    %1397 = vmatmul.bf16.gmra.mxu0 %v674
    %v1398 = vpop.f32.mrf.mxu0
    %v1399 = vadd.f32 %v1340, %v1398
    %v1400 = vpop.f32.mrf.mxu0
    %v1401 = vadd.f32 %v1342, %v1400
    %1402 = vmatmul.bf16.gmra.mxu0 %v681
    %v1403 = vpop.f32.mrf.mxu0
    %v1404 = vadd.f32 %v1345, %v1403
    %v1405 = vpop.f32.mrf.mxu0
    %v1406 = vadd.f32 %v1347, %v1405
    %1407 = vmatmul.bf16.gmra.mxu0 %v688
    %v1408 = vpop.f32.mrf.mxu0
    %v1409 = vadd.f32 %v1350, %v1408
    %v1410 = vpop.f32.mrf.mxu0
    %v1411 = vadd.f32 %v1352, %v1410
    %1412 = vdwg.mxu0
    %1413 = vmatpush.bf16.msra.mxu0 %v1036
    %1414 = vmatpush.bf16.msra.mxu0 %v1035
    %1415 = vmatpush.bf16.msra.mxu0 %v1034
    %1416 = vmatpush.bf16.msra.mxu0 %v1033
    %1417 = vmatpush.bf16.msra.mxu0 %v1032
    %1418 = vmatpush.bf16.msra.mxu0 %v1031
    %1419 = vmatpush.bf16.msra.mxu0 %v1030
    %1420 = vmatpush.bf16.msra.mxu0 %v1029
    %1421 = vmatmul.bf16.gmra.mxu0 %v626
    %v1422 = vpop.f32.mrf.mxu0
    %v1423 = vadd.f32 %v1364, %v1422
    %v1424 = vpop.f32.mrf.mxu0
    %v1425 = vadd.f32 %v1366, %v1424
    %1426 = vmatmul.bf16.gmra.mxu0 %v633
    %v1427 = vpop.f32.mrf.mxu0
    %v1428 = vadd.f32 %v1369, %v1427
    %v1429 = vpop.f32.mrf.mxu0
    %v1430 = vadd.f32 %v1371, %v1429
    %1431 = vmatmul.bf16.gmra.mxu0 %v640
    %v1432 = vpop.f32.mrf.mxu0
    %v1433 = vadd.f32 %v1374, %v1432
    %v1434 = vpop.f32.mrf.mxu0
    %v1435 = vadd.f32 %v1376, %v1434
    %1436 = vmatmul.bf16.gmra.mxu0 %v647
    %v1437 = vpop.f32.mrf.mxu0
    %v1438 = vadd.f32 %v1379, %v1437
    %v1439 = vpop.f32.mrf.mxu0
    %v1440 = vadd.f32 %v1381, %v1439
    %1441 = vmatmul.bf16.gmra.mxu0 %v654
    %v1442 = vpop.f32.mrf.mxu0
    %v1443 = vadd.f32 %v1384, %v1442
    %v1444 = vpop.f32.mrf.mxu0
    %v1445 = vadd.f32 %v1386, %v1444
    %1446 = vmatmul.bf16.gmra.mxu0 %v661
    %v1447 = vpop.f32.mrf.mxu0
    %v1448 = vadd.f32 %v1389, %v1447
    %v1449 = vpop.f32.mrf.mxu0
    %v1450 = vadd.f32 %v1391, %v1449
    %1451 = vmatmul.bf16.gmra.mxu0 %v668
    %v1452 = vpop.f32.mrf.mxu0
    %v1453 = vadd.f32 %v1394, %v1452
    %v1454 = vpop.f32.mrf.mxu0
    %v1455 = vadd.f32 %v1396, %v1454
    %1456 = vmatmul.bf16.gmra.mxu0 %v675
    %v1457 = vpop.f32.mrf.mxu0
    %v1458 = vadd.f32 %v1399, %v1457
    %v1459 = vpop.f32.mrf.mxu0
    %v1460 = vadd.f32 %v1401, %v1459
    %1461 = vmatmul.bf16.gmra.mxu0 %v682
    %v1462 = vpop.f32.mrf.mxu0
    %v1463 = vadd.f32 %v1404, %v1462
    %v1464 = vpop.f32.mrf.mxu0
    %v1465 = vadd.f32 %v1406, %v1464
    %1466 = vmatmul.bf16.gmra.mxu0 %v689
    %v1467 = vpop.f32.mrf.mxu0
    %v1468 = vadd.f32 %v1409, %v1467
    %v1469 = vpop.f32.mrf.mxu0
    %v1470 = vadd.f32 %v1411, %v1469
    %1471 = vdwg.mxu0
    %1472 = vmatpush.bf16.msra.mxu0 0
    %1473 = vmatpush.bf16.msra.mxu0 0
    %1474 = vmatpush.bf16.msra.mxu0 0
    %1475 = vmatpush.bf16.msra.mxu0 0
    %1476 = vmatpush.bf16.msra.mxu0 0
    %1477 = vmatpush.bf16.msra.mxu0 0
    %1478 = vmatpush.bf16.msra.mxu0 0
    %1479 = vmatpush.bf16.msra.mxu0 %v1037
    %1480 = vmatmul.bf16.gmra.mxu0 %v1089
    %v1481 = vpop.f32.mrf.mxu0
    %v1482 = vadd.f32 %v1423, %v1481
    %v1483 = vpop.f32.mrf.mxu0
    %v1484 = vadd.f32 %v1425, %v1483
    %1485 = vmatmul.bf16.gmra.mxu0 %v1092
    %v1486 = vpop.f32.mrf.mxu0
    %v1487 = vadd.f32 %v1428, %v1486
    %v1488 = vpop.f32.mrf.mxu0
    %v1489 = vadd.f32 %v1430, %v1488
    %1490 = vmatmul.bf16.gmra.mxu0 %v1095
    %v1491 = vpop.f32.mrf.mxu0
    %v1492 = vadd.f32 %v1433, %v1491
    %v1493 = vpop.f32.mrf.mxu0
    %v1494 = vadd.f32 %v1435, %v1493
    %1495 = vmatmul.bf16.gmra.mxu0 %v1098
    %v1496 = vpop.f32.mrf.mxu0
    %v1497 = vadd.f32 %v1438, %v1496
    %v1498 = vpop.f32.mrf.mxu0
    %v1499 = vadd.f32 %v1440, %v1498
    %1500 = vmatmul.bf16.gmra.mxu0 %v1101
    %v1501 = vpop.f32.mrf.mxu0
    %v1502 = vadd.f32 %v1443, %v1501
    %v1503 = vpop.f32.mrf.mxu0
    %v1504 = vadd.f32 %v1445, %v1503
    %1505 = vmatmul.bf16.gmra.mxu0 %v1104
    %v1506 = vpop.f32.mrf.mxu0
    %v1507 = vadd.f32 %v1448, %v1506
    %v1508 = vpop.f32.mrf.mxu0
    %v1509 = vadd.f32 %v1450, %v1508
    %1510 = vmatmul.bf16.gmra.mxu0 %v1107
    %v1511 = vpop.f32.mrf.mxu0
    %v1512 = vadd.f32 %v1453, %v1511
    %v1513 = vpop.f32.mrf.mxu0
    %v1514 = vadd.f32 %v1455, %v1513
    %1515 = vmatmul.bf16.gmra.mxu0 %v1110
    %v1516 = vpop.f32.mrf.mxu0
    %v1517 = vadd.f32 %v1458, %v1516
    %v1518 = vpop.f32.mrf.mxu0
    %v1519 = vadd.f32 %v1460, %v1518
    %1520 = vmatmul.bf16.gmra.mxu0 %v1113
    %v1521 = vpop.f32.mrf.mxu0
    %v1522 = vadd.f32 %v1463, %v1521
    %v1523 = vpop.f32.mrf.mxu0
    %v1524 = vadd.f32 %v1465, %v1523
    %1525 = vmatmul.bf16.gmra.mxu0 %v1116
    %v1526 = vpop.f32.mrf.mxu0
    %v1527 = vadd.f32 %v1468, %v1526
    %v1528 = vpop.f32.mrf.mxu0
    %v1529 = vadd.f32 %v1470, %v1528
    %1530 = vdwg.mxu0
    %v1531 = vld [vmem:[#allocation2] sm:$0xff]
    %v1532 = vmul.f32 %v1531, 0.2
    %v1533 = vadd.f32 %v1532, %v1482
    %vm1534 = vcmask 244736
    %1535 = vst.msk [vmem:[#allocation2] sm:$0xff] %vm1534, %v1533
    %vm1536 = vcmp.gt.f32.partialorder %v1533, 0.5
    %v1537 = vsel %vm1536, 1, 0
    %v1538 = vcvt.s32.f32 %v1537
    %1539 = vst.msk [vmem:[#allocation5] sm:$0xff] %vm1534, %v1538
    %v1540 = vld [vmem:[#allocation2] sm:$0xff]
    %v1541 = vmul.f32 %v1540, 0.2
    %1543 = vrot.lane.b32.xlu0 %v1484, 98
    %v1544 = vpop.permute.xlu0 %1543
    %v1546 = vadd.f32 %v1541, %v1544
    %1547 = vst.msk [vmem:[#allocation2] sm:$0xff] %vm1534, %v1546
    %vm1548 = vcmp.gt.f32.partialorder %v1546, 0.5
    %v1549 = vsel %vm1548, 1, 0
    %v1550 = vcvt.s32.f32 %v1549
    %1551 = vst.msk [vmem:[#allocation5 + $0x8] sm:$0xff] %vm1534, %v1550
    %v1552 = vld [vmem:[#allocation2] sm:$0xff]
    %v1553 = vmul.f32 %v1552, 0.2
    %v1554 = vadd.f32 %v1553, %v1487
    %1555 = vst.msk [vmem:[#allocation2] sm:$0xff] %vm1534, %v1554
    %vm1556 = vcmp.gt.f32.partialorder %v1554, 0.5
    %v1557 = vsel %vm1556, 1, 0
    %v1558 = vcvt.s32.f32 %v1557
    %1559 = vst.msk [vmem:[#allocation5 + $0x10] sm:$0xff] %vm1534, %v1558
    %v1560 = vld [vmem:[#allocation2] sm:$0xff]
    %v1561 = vmul.f32 %v1560, 0.2
    %1563 = vrot.lane.b32.xlu0 %v1489, 98
    %v1564 = vpop.permute.xlu0 %1563
    %v1566 = vadd.f32 %v1561, %v1564
    %1567 = vst.msk [vmem:[#allocation2] sm:$0xff] %vm1534, %v1566
    %vm1568 = vcmp.gt.f32.partialorder %v1566, 0.5
    %v1569 = vsel %vm1568, 1, 0
    %v1570 = vcvt.s32.f32 %v1569
    %1571 = vst.msk [vmem:[#allocation5 + $0x18] sm:$0xff] %vm1534, %v1570
    %v1572 = vld [vmem:[#allocation2] sm:$0xff]
    %v1573 = vmul.f32 %v1572, 0.2
    %v1574 = vadd.f32 %v1573, %v1492
    %1575 = vst.msk [vmem:[#allocation2] sm:$0xff] %vm1534, %v1574
    %vm1576 = vcmp.gt.f32.partialorder %v1574, 0.5
    %v1577 = vsel %vm1576, 1, 0
    %v1578 = vcvt.s32.f32 %v1577
    %1579 = vst.msk [vmem:[#allocation5 + $0x20] sm:$0xff] %vm1534, %v1578
    %v1580 = vld [vmem:[#allocation2] sm:$0xff]
    %v1581 = vmul.f32 %v1580, 0.2
    %1583 = vrot.lane.b32.xlu0 %v1494, 98
    %v1584 = vpop.permute.xlu0 %1583
    %v1586 = vadd.f32 %v1581, %v1584
    %1587 = vst.msk [vmem:[#allocation2] sm:$0xff] %vm1534, %v1586
    %vm1588 = vcmp.gt.f32.partialorder %v1586, 0.5
    %v1589 = vsel %vm1588, 1, 0
    %v1590 = vcvt.s32.f32 %v1589
    %1591 = vst.msk [vmem:[#allocation5 + $0x28] sm:$0xff] %vm1534, %v1590
    %v1592 = vld [vmem:[#allocation2] sm:$0xff]
    %v1593 = vmul.f32 %v1592, 0.2
    %v1594 = vadd.f32 %v1593, %v1497
    %1595 = vst.msk [vmem:[#allocation2] sm:$0xff] %vm1534, %v1594
    %vm1596 = vcmp.gt.f32.partialorder %v1594, 0.5
    %v1597 = vsel %vm1596, 1, 0
    %v1598 = vcvt.s32.f32 %v1597
    %1599 = vst.msk [vmem:[#allocation5 + $0x30] sm:$0xff] %vm1534, %v1598
    %v1600 = vld [vmem:[#allocation2] sm:$0xff]
    %v1601 = vmul.f32 %v1600, 0.2
    %1603 = vrot.lane.b32.xlu0 %v1499, 98
    %v1604 = vpop.permute.xlu0 %1603
    %v1606 = vadd.f32 %v1601, %v1604
    %1607 = vst.msk [vmem:[#allocation2] sm:$0xff] %vm1534, %v1606
    %vm1608 = vcmp.gt.f32.partialorder %v1606, 0.5
    %v1609 = vsel %vm1608, 1, 0
    %v1610 = vcvt.s32.f32 %v1609
    %1611 = vst.msk [vmem:[#allocation5 + $0x38] sm:$0xff] %vm1534, %v1610
    %v1612 = vld [vmem:[#allocation2] sm:$0xff]
    %v1613 = vmul.f32 %v1612, 0.2
    %v1614 = vadd.f32 %v1613, %v1502
    %1615 = vst.msk [vmem:[#allocation2] sm:$0xff] %vm1534, %v1614
    %vm1616 = vcmp.gt.f32.partialorder %v1614, 0.5
    %v1617 = vsel %vm1616, 1, 0
    %v1618 = vcvt.s32.f32 %v1617
    %1619 = vst.msk [vmem:[#allocation5 + $0x40] sm:$0xff] %vm1534, %v1618
    %v1620 = vld [vmem:[#allocation2] sm:$0xff]
    %v1621 = vmul.f32 %v1620, 0.2
    %1623 = vrot.lane.b32.xlu0 %v1504, 98
    %v1624 = vpop.permute.xlu0 %1623
    %v1626 = vadd.f32 %v1621, %v1624
    %1627 = vst.msk [vmem:[#allocation2] sm:$0xff] %vm1534, %v1626
    %vm1628 = vcmp.gt.f32.partialorder %v1626, 0.5
    %v1629 = vsel %vm1628, 1, 0
    %v1630 = vcvt.s32.f32 %v1629
    %1631 = vst.msk [vmem:[#allocation5 + $0x48] sm:$0xff] %vm1534, %v1630
    %v1632 = vld [vmem:[#allocation2] sm:$0xff]
    %v1633 = vmul.f32 %v1632, 0.2
    %v1634 = vadd.f32 %v1633, %v1507
    %1635 = vst.msk [vmem:[#allocation2] sm:$0xff] %vm1534, %v1634
    %vm1636 = vcmp.gt.f32.partialorder %v1634, 0.5
    %v1637 = vsel %vm1636, 1, 0
    %v1638 = vcvt.s32.f32 %v1637
    %1639 = vst.msk [vmem:[#allocation5 + $0x50] sm:$0xff] %vm1534, %v1638
    %v1640 = vld [vmem:[#allocation2] sm:$0xff]
    %v1641 = vmul.f32 %v1640, 0.2
    %1643 = vrot.lane.b32.xlu0 %v1509, 98
    %v1644 = vpop.permute.xlu0 %1643
    %v1646 = vadd.f32 %v1641, %v1644
    %1647 = vst.msk [vmem:[#allocation2] sm:$0xff] %vm1534, %v1646
    %vm1648 = vcmp.gt.f32.partialorder %v1646, 0.5
    %v1649 = vsel %vm1648, 1, 0
    %v1650 = vcvt.s32.f32 %v1649
    %1651 = vst.msk [vmem:[#allocation5 + $0x58] sm:$0xff] %vm1534, %v1650
    %v1652 = vld [vmem:[#allocation2] sm:$0xff]
    %v1653 = vmul.f32 %v1652, 0.2
    %v1654 = vadd.f32 %v1653, %v1512
    %1655 = vst.msk [vmem:[#allocation2] sm:$0xff] %vm1534, %v1654
    %vm1656 = vcmp.gt.f32.partialorder %v1654, 0.5
    %v1657 = vsel %vm1656, 1, 0
    %v1658 = vcvt.s32.f32 %v1657
    %1659 = vst.msk [vmem:[#allocation5 + $0x60] sm:$0xff] %vm1534, %v1658
    %v1660 = vld [vmem:[#allocation2] sm:$0xff]
    %v1661 = vmul.f32 %v1660, 0.2
    %1663 = vrot.lane.b32.xlu0 %v1514, 98
    %v1664 = vpop.permute.xlu0 %1663
    %v1666 = vadd.f32 %v1661, %v1664
    %1667 = vst.msk [vmem:[#allocation2] sm:$0xff] %vm1534, %v1666
    %vm1668 = vcmp.gt.f32.partialorder %v1666, 0.5
    %v1669 = vsel %vm1668, 1, 0
    %v1670 = vcvt.s32.f32 %v1669
    %1671 = vst.msk [vmem:[#allocation5 + $0x68] sm:$0xff] %vm1534, %v1670
    %v1672 = vld [vmem:[#allocation2] sm:$0xff]
    %v1673 = vmul.f32 %v1672, 0.2
    %v1674 = vadd.f32 %v1673, %v1517
    %1675 = vst.msk [vmem:[#allocation2] sm:$0xff] %vm1534, %v1674
    %vm1676 = vcmp.gt.f32.partialorder %v1674, 0.5
    %v1677 = vsel %vm1676, 1, 0
    %v1678 = vcvt.s32.f32 %v1677
    %1679 = vst.msk [vmem:[#allocation5 + $0x70] sm:$0xff] %vm1534, %v1678
    %v1680 = vld [vmem:[#allocation2] sm:$0xff]
    %v1681 = vmul.f32 %v1680, 0.2
    %1683 = vrot.lane.b32.xlu0 %v1519, 98
    %v1684 = vpop.permute.xlu0 %1683
    %v1686 = vadd.f32 %v1681, %v1684
    %1687 = vst.msk [vmem:[#allocation2] sm:$0xff] %vm1534, %v1686
    %vm1688 = vcmp.gt.f32.partialorder %v1686, 0.5
    %v1689 = vsel %vm1688, 1, 0
    %v1690 = vcvt.s32.f32 %v1689
    %1691 = vst.msk [vmem:[#allocation5 + $0x78] sm:$0xff] %vm1534, %v1690
    %v1692 = vld [vmem:[#allocation2] sm:$0xff]
    %v1693 = vmul.f32 %v1692, 0.2
    %v1694 = vadd.f32 %v1693, %v1522
    %1695 = vst.msk [vmem:[#allocation2] sm:$0xff] %vm1534, %v1694
    %vm1696 = vcmp.gt.f32.partialorder %v1694, 0.5
    %v1697 = vsel %vm1696, 1, 0
    %v1698 = vcvt.s32.f32 %v1697
    %1699 = vst.msk [vmem:[#allocation5 + $0x80] sm:$0xff] %vm1534, %v1698
    %v1700 = vld [vmem:[#allocation2] sm:$0xff]
    %v1701 = vmul.f32 %v1700, 0.2
    %1703 = vrot.lane.b32.xlu0 %v1524, 98
    %v1704 = vpop.permute.xlu0 %1703
    %v1706 = vadd.f32 %v1701, %v1704
    %1707 = vst.msk [vmem:[#allocation2] sm:$0xff] %vm1534, %v1706
    %vm1708 = vcmp.gt.f32.partialorder %v1706, 0.5
    %v1709 = vsel %vm1708, 1, 0
    %v1710 = vcvt.s32.f32 %v1709
    %1711 = vst.msk [vmem:[#allocation5 + $0x88] sm:$0xff] %vm1534, %v1710
    %v1712 = vld [vmem:[#allocation2] sm:$0xff]
    %v1713 = vmul.f32 %v1712, 0.2
    %v1714 = vadd.f32 %v1713, %v1527
    %1715 = vst.msk [vmem:[#allocation2] sm:$0xff] %vm1534, %v1714
    %vm1716 = vcmp.gt.f32.partialorder %v1714, 0.5
    %v1717 = vsel %vm1716, 1, 0
    %v1718 = vcvt.s32.f32 %v1717
    %1719 = vst.msk [vmem:[#allocation5 + $0x90] sm:$0xff] %vm1534, %v1718
    %v1720 = vld [vmem:[#allocation2] sm:$0xff]
    %v1721 = vmul.f32 %v1720, 0.2
    %1723 = vrot.lane.b32.xlu0 %v1529, 98
    %v1724 = vpop.permute.xlu0 %1723
    %v1726 = vadd.f32 %v1721, %v1724
    %1727 = vst.msk [vmem:[#allocation2] sm:$0xff] %vm1534, %v1726
    %vm1728 = vcmp.gt.f32.partialorder %v1726, 0.5
    %v1729 = vsel %vm1728, 1, 0
    %v1730 = vcvt.s32.f32 %v1729
    %1731 = vst.msk [vmem:[#allocation5 + $0x98] sm:$0xff] %vm1534, %v1730
    %v1732 = vld [vmem:[#allocation5] sm:$0xff]
    %v1733 = vld [vmem:[#allocation5 + $0x8] sm:$0xff]
    %v1734 = vld [vmem:[#allocation5 + $0x10] sm:$0xff]
    %v1735 = vld [vmem:[#allocation5 + $0x18] sm:$0xff]
    %v1736 = vld [vmem:[#allocation5 + $0x20] sm:$0xff]
    %v1737 = vld [vmem:[#allocation5 + $0x28] sm:$0xff]
    %v1738 = vld [vmem:[#allocation5 + $0x30] sm:$0xff]
    %v1739 = vld [vmem:[#allocation5 + $0x38] sm:$0xff]
    %v1740 = vld [vmem:[#allocation5 + $0x40] sm:$0xff]
    %v1741 = vld [vmem:[#allocation5 + $0x48] sm:$0xff]
    %v1742 = vld [vmem:[#allocation5 + $0x50] sm:$0xff]
    %v1743 = vld [vmem:[#allocation5 + $0x58] sm:$0xff]
    %v1744 = vld [vmem:[#allocation5 + $0x60] sm:$0xff]
    %v1745 = vld [vmem:[#allocation5 + $0x68] sm:$0xff]
    %v1746 = vld [vmem:[#allocation5 + $0x70] sm:$0xff]
    %v1747 = vld [vmem:[#allocation5 + $0x78] sm:$0xff]
    %v1748 = vld [vmem:[#allocation5 + $0x80] sm:$0xff]
    %v1749 = vld [vmem:[#allocation5 + $0x88] sm:$0xff]
    %v1750 = vld [vmem:[#allocation5 + $0x90] sm:$0xff]
    %v1751 = vld [vmem:[#allocation5 + $0x98] sm:$0xff]
    %v1752 = vpack.c.bf16 %v1733, %v1732
    %v1753 = vpack.c.bf16 %v1735, %v1734
    %v1754 = vpack.c.bf16 %v1737, %v1736
    %v1755 = vpack.c.bf16 %v1739, %v1738
    %v1756 = vpack.c.bf16 %v1741, %v1740
    %v1757 = vpack.c.bf16 %v1743, %v1742
    %v1758 = vpack.c.bf16 %v1745, %v1744
    %v1759 = vpack.c.bf16 %v1747, %v1746
    %v1760 = vpack.c.bf16 %v1749, %v1748
    %v1761 = vpack.c.bf16 %v1751, %v1750
    %v1762 = vld [vmem:[%s4] sm:$0xf]
    %v1763 = vld [vmem:[%s4 + $0x4] sm:$0xf]
    %v1764 = vld [vmem:[%s4 + $0x8] sm:$0xf]
    %v1765 = vld [vmem:[%s4 + $0xc] sm:$0x7]
    %v1766 = vld [vmem:[%s5] sm:$0x1]
    %v1768 = vperm.slane %v1766, 0
    %v1774 = vunpack.c.l.b16 %v1762
    %v1775 = vunpack.c.l.b16 %v1763
    %v1776 = vunpack.c.l.b16 %v1764
    %v1777 = vunpack.c.l.b16 %v1765
    %v1778 = vpack.c.b16 %v1775, %v1774
    %v1779 = vpack.c.b16 %v1777, %v1776
    %v1782 = vsel %vm1534, %v1752, 0
    %v1785 = vsel %vm1534, %v1753, 0
    %v1788 = vsel %vm1534, %v1754, 0
    %v1791 = vsel %vm1534, %v1755, 0
    %v1794 = vsel %vm1534, %v1756, 0
    %v1797 = vsel %vm1534, %v1757, 0
    %v1800 = vsel %vm1534, %v1758, 0
    %v1803 = vsel %vm1534, %v1759, 0
    %v1806 = vsel %vm1534, %v1760, 0
    %v1809 = vsel %vm1534, %v1761, 0
    %vm1811 = vcmask 1046528
    %v1813 = vsel %vm1811, %v1779, 0
    %1815 = vmatpush.bf16.msra.mxu0 0
    %1816 = vmatpush.bf16.msra.mxu0 0
    %1817 = vmatpush.bf16.msra.mxu0 0
    %1818 = vmatpush.bf16.msra.mxu0 0
    %1819 = vmatpush.bf16.msra.mxu0 0
    %1820 = vmatpush.bf16.msra.mxu0 0
    %1821 = vmatpush.bf16.msra.mxu0 %v1813
    %1822 = vmatpush.bf16.msra.mxu0 %v1778
    %1823 = vmatmul.bf16.gmra.mxu0 %v1782
    %v1824 = vpop.f32.mrf.mxu0
    %v1825 = vadd.f32 %v1768, %v1824
    %v1826 = vpop.f32.mrf.mxu0
    %v1827 = vadd.f32 %v1768, %v1826
    %1828 = vmatmul.bf16.gmra.mxu0 %v1785
    %v1829 = vpop.f32.mrf.mxu0
    %v1830 = vadd.f32 %v1768, %v1829
    %v1831 = vpop.f32.mrf.mxu0
    %v1832 = vadd.f32 %v1768, %v1831
    %1833 = vmatmul.bf16.gmra.mxu0 %v1788
    %v1834 = vpop.f32.mrf.mxu0
    %v1835 = vadd.f32 %v1768, %v1834
    %v1836 = vpop.f32.mrf.mxu0
    %v1837 = vadd.f32 %v1768, %v1836
    %1838 = vmatmul.bf16.gmra.mxu0 %v1791
    %v1839 = vpop.f32.mrf.mxu0
    %v1840 = vadd.f32 %v1768, %v1839
    %v1841 = vpop.f32.mrf.mxu0
    %v1842 = vadd.f32 %v1768, %v1841
    %1843 = vmatmul.bf16.gmra.mxu0 %v1794
    %v1844 = vpop.f32.mrf.mxu0
    %v1845 = vadd.f32 %v1768, %v1844
    %v1846 = vpop.f32.mrf.mxu0
    %v1847 = vadd.f32 %v1768, %v1846
    %1848 = vmatmul.bf16.gmra.mxu0 %v1797
    %v1849 = vpop.f32.mrf.mxu0
    %v1850 = vadd.f32 %v1768, %v1849
    %v1851 = vpop.f32.mrf.mxu0
    %v1852 = vadd.f32 %v1768, %v1851
    %1853 = vmatmul.bf16.gmra.mxu0 %v1800
    %v1854 = vpop.f32.mrf.mxu0
    %v1855 = vadd.f32 %v1768, %v1854
    %v1856 = vpop.f32.mrf.mxu0
    %v1857 = vadd.f32 %v1768, %v1856
    %1858 = vmatmul.bf16.gmra.mxu0 %v1803
    %v1859 = vpop.f32.mrf.mxu0
    %v1860 = vadd.f32 %v1768, %v1859
    %v1861 = vpop.f32.mrf.mxu0
    %v1862 = vadd.f32 %v1768, %v1861
    %1863 = vmatmul.bf16.gmra.mxu0 %v1806
    %v1864 = vpop.f32.mrf.mxu0
    %v1865 = vadd.f32 %v1768, %v1864
    %v1866 = vpop.f32.mrf.mxu0
    %v1867 = vadd.f32 %v1768, %v1866
    %1868 = vmatmul.bf16.gmra.mxu0 %v1809
    %v1869 = vpop.f32.mrf.mxu0
    %v1870 = vadd.f32 %v1768, %v1869
    %v1871 = vpop.f32.mrf.mxu0
    %v1872 = vadd.f32 %v1768, %v1871
    %1873 = vdwg.mxu0
    %v1874 = vld [vmem:[#allocation3] sm:$0xff]
    %v1875 = vmul.f32 %v1874, 0.2
    %v1876 = vadd.f32 %v1875, %v1825
    %vm1877 = vcmask 39936
    %1878 = vst.msk [vmem:[#allocation3] sm:$0xff] %vm1877, %v1876
    %v1879 = vld [vmem:[#allocation4] sm:$0xff]
    %vm1880 = vcmp.gt.f32.partialorder %v1876, 0.5
    %v1881 = vsel %vm1880, 1, 0
    %v1882 = vcvt.s32.f32 %v1881
    %v1883 = vadd.f32 %v1879, %v1882
    %1884 = vst.msk [vmem:[#allocation4] sm:$0xff] %vm1877, %v1883
    %v1885 = vld [vmem:[#allocation3] sm:$0xff]
    %v1886 = vmul.f32 %v1885, 0.2
    %1888 = vrot.lane.b32.xlu0 %v1827, 123
    %v1889 = vpop.permute.xlu0 %1888
    %v1891 = vadd.f32 %v1886, %v1889
    %1892 = vst.msk [vmem:[#allocation3] sm:$0xff] %vm1877, %v1891
    %s1893 = scalar_lea.vmem [#allocation4], 8
    %v1894 = vld [vmem:[%s1893] sm:$0xff]
    %vm1895 = vcmp.gt.f32.partialorder %v1891, 0.5
    %v1896 = vsel %vm1895, 1, 0
    %v1897 = vcvt.s32.f32 %v1896
    %v1898 = vadd.f32 %v1894, %v1897
    %1899 = vst.msk [vmem:[%s1893] sm:$0xff] %vm1877, %v1898
    %v1900 = vld [vmem:[#allocation3] sm:$0xff]
    %v1901 = vmul.f32 %v1900, 0.2
    %v1902 = vadd.f32 %v1901, %v1830
    %1903 = vst.msk [vmem:[#allocation3] sm:$0xff] %vm1877, %v1902
    %v1904 = vld [vmem:[#allocation4] sm:$0xff]
    %vm1905 = vcmp.gt.f32.partialorder %v1902, 0.5
    %v1906 = vsel %vm1905, 1, 0
    %v1907 = vcvt.s32.f32 %v1906
    %v1908 = vadd.f32 %v1904, %v1907
    %1909 = vst.msk [vmem:[#allocation4] sm:$0xff] %vm1877, %v1908
    %v1910 = vld [vmem:[#allocation3] sm:$0xff]
    %v1911 = vmul.f32 %v1910, 0.2
    %1913 = vrot.lane.b32.xlu0 %v1832, 123
    %v1914 = vpop.permute.xlu0 %1913
    %v1916 = vadd.f32 %v1911, %v1914
    %1917 = vst.msk [vmem:[#allocation3] sm:$0xff] %vm1877, %v1916
    %v1918 = vld [vmem:[%s1893] sm:$0xff]
    %vm1919 = vcmp.gt.f32.partialorder %v1916, 0.5
    %v1920 = vsel %vm1919, 1, 0
    %v1921 = vcvt.s32.f32 %v1920
    %v1922 = vadd.f32 %v1918, %v1921
    %1923 = vst.msk [vmem:[%s1893] sm:$0xff] %vm1877, %v1922
    %v1924 = vld [vmem:[#allocation3] sm:$0xff]
    %v1925 = vmul.f32 %v1924, 0.2
    %v1926 = vadd.f32 %v1925, %v1835
    %1927 = vst.msk [vmem:[#allocation3] sm:$0xff] %vm1877, %v1926
    %v1928 = vld [vmem:[#allocation4] sm:$0xff]
    %vm1929 = vcmp.gt.f32.partialorder %v1926, 0.5
    %v1930 = vsel %vm1929, 1, 0
    %v1931 = vcvt.s32.f32 %v1930
    %v1932 = vadd.f32 %v1928, %v1931
    %1933 = vst.msk [vmem:[#allocation4] sm:$0xff] %vm1877, %v1932
    %v1934 = vld [vmem:[#allocation3] sm:$0xff]
    %v1935 = vmul.f32 %v1934, 0.2
    %1937 = vrot.lane.b32.xlu0 %v1837, 123
    %v1938 = vpop.permute.xlu0 %1937
    %v1940 = vadd.f32 %v1935, %v1938
    %1941 = vst.msk [vmem:[#allocation3] sm:$0xff] %vm1877, %v1940
    %v1942 = vld [vmem:[%s1893] sm:$0xff]
    %vm1943 = vcmp.gt.f32.partialorder %v1940, 0.5
    %v1944 = vsel %vm1943, 1, 0
    %v1945 = vcvt.s32.f32 %v1944
    %v1946 = vadd.f32 %v1942, %v1945
    %1947 = vst.msk [vmem:[%s1893] sm:$0xff] %vm1877, %v1946
    %v1948 = vld [vmem:[#allocation3] sm:$0xff]
    %v1949 = vmul.f32 %v1948, 0.2
    %v1950 = vadd.f32 %v1949, %v1840
    %1951 = vst.msk [vmem:[#allocation3] sm:$0xff] %vm1877, %v1950
    %v1952 = vld [vmem:[#allocation4] sm:$0xff]
    %vm1953 = vcmp.gt.f32.partialorder %v1950, 0.5
    %v1954 = vsel %vm1953, 1, 0
    %v1955 = vcvt.s32.f32 %v1954
    %v1956 = vadd.f32 %v1952, %v1955
    %1957 = vst.msk [vmem:[#allocation4] sm:$0xff] %vm1877, %v1956
    %v1958 = vld [vmem:[#allocation3] sm:$0xff]
    %v1959 = vmul.f32 %v1958, 0.2
    %1961 = vrot.lane.b32.xlu0 %v1842, 123
    %v1962 = vpop.permute.xlu0 %1961
    %v1964 = vadd.f32 %v1959, %v1962
    %1965 = vst.msk [vmem:[#allocation3] sm:$0xff] %vm1877, %v1964
    %v1966 = vld [vmem:[%s1893] sm:$0xff]
    %vm1967 = vcmp.gt.f32.partialorder %v1964, 0.5
    %v1968 = vsel %vm1967, 1, 0
    %v1969 = vcvt.s32.f32 %v1968
    %v1970 = vadd.f32 %v1966, %v1969
    %1971 = vst.msk [vmem:[%s1893] sm:$0xff] %vm1877, %v1970
    %v1972 = vld [vmem:[#allocation3] sm:$0xff]
    %v1973 = vmul.f32 %v1972, 0.2
    %v1974 = vadd.f32 %v1973, %v1845
    %1975 = vst.msk [vmem:[#allocation3] sm:$0xff] %vm1877, %v1974
    %v1976 = vld [vmem:[#allocation4] sm:$0xff]
    %vm1977 = vcmp.gt.f32.partialorder %v1974, 0.5
    %v1978 = vsel %vm1977, 1, 0
    %v1979 = vcvt.s32.f32 %v1978
    %v1980 = vadd.f32 %v1976, %v1979
    %1981 = vst.msk [vmem:[#allocation4] sm:$0xff] %vm1877, %v1980
    %v1982 = vld [vmem:[#allocation3] sm:$0xff]
    %v1983 = vmul.f32 %v1982, 0.2
    %1985 = vrot.lane.b32.xlu0 %v1847, 123
    %v1986 = vpop.permute.xlu0 %1985
    %v1988 = vadd.f32 %v1983, %v1986
    %1989 = vst.msk [vmem:[#allocation3] sm:$0xff] %vm1877, %v1988
    %v1990 = vld [vmem:[%s1893] sm:$0xff]
    %vm1991 = vcmp.gt.f32.partialorder %v1988, 0.5
    %v1992 = vsel %vm1991, 1, 0
    %v1993 = vcvt.s32.f32 %v1992
    %v1994 = vadd.f32 %v1990, %v1993
    %1995 = vst.msk [vmem:[%s1893] sm:$0xff] %vm1877, %v1994
    %v1996 = vld [vmem:[#allocation3] sm:$0xff]
    %v1997 = vmul.f32 %v1996, 0.2
    %v1998 = vadd.f32 %v1997, %v1850
    %1999 = vst.msk [vmem:[#allocation3] sm:$0xff] %vm1877, %v1998
    %v2000 = vld [vmem:[#allocation4] sm:$0xff]
    %vm2001 = vcmp.gt.f32.partialorder %v1998, 0.5
    %v2002 = vsel %vm2001, 1, 0
    %v2003 = vcvt.s32.f32 %v2002
    %v2004 = vadd.f32 %v2000, %v2003
    %2005 = vst.msk [vmem:[#allocation4] sm:$0xff] %vm1877, %v2004
    %v2006 = vld [vmem:[#allocation3] sm:$0xff]
    %v2007 = vmul.f32 %v2006, 0.2
    %2009 = vrot.lane.b32.xlu0 %v1852, 123
    %v2010 = vpop.permute.xlu0 %2009
    %v2012 = vadd.f32 %v2007, %v2010
    %2013 = vst.msk [vmem:[#allocation3] sm:$0xff] %vm1877, %v2012
    %v2014 = vld [vmem:[%s1893] sm:$0xff]
    %vm2015 = vcmp.gt.f32.partialorder %v2012, 0.5
    %v2016 = vsel %vm2015, 1, 0
    %v2017 = vcvt.s32.f32 %v2016
    %v2018 = vadd.f32 %v2014, %v2017
    %2019 = vst.msk [vmem:[%s1893] sm:$0xff] %vm1877, %v2018
    %v2020 = vld [vmem:[#allocation3] sm:$0xff]
    %v2021 = vmul.f32 %v2020, 0.2
    %v2022 = vadd.f32 %v2021, %v1855
    %2023 = vst.msk [vmem:[#allocation3] sm:$0xff] %vm1877, %v2022
    %v2024 = vld [vmem:[#allocation4] sm:$0xff]
    %vm2025 = vcmp.gt.f32.partialorder %v2022, 0.5
    %v2026 = vsel %vm2025, 1, 0
    %v2027 = vcvt.s32.f32 %v2026
    %v2028 = vadd.f32 %v2024, %v2027
    %2029 = vst.msk [vmem:[#allocation4] sm:$0xff] %vm1877, %v2028
    %v2030 = vld [vmem:[#allocation3] sm:$0xff]
    %v2031 = vmul.f32 %v2030, 0.2
    %2033 = vrot.lane.b32.xlu0 %v1857, 123
    %v2034 = vpop.permute.xlu0 %2033
    %v2036 = vadd.f32 %v2031, %v2034
    %2037 = vst.msk [vmem:[#allocation3] sm:$0xff] %vm1877, %v2036
    %v2038 = vld [vmem:[%s1893] sm:$0xff]
    %vm2039 = vcmp.gt.f32.partialorder %v2036, 0.5
    %v2040 = vsel %vm2039, 1, 0
    %v2041 = vcvt.s32.f32 %v2040
    %v2042 = vadd.f32 %v2038, %v2041
    %2043 = vst.msk [vmem:[%s1893] sm:$0xff] %vm1877, %v2042
    %v2044 = vld [vmem:[#allocation3] sm:$0xff]
    %v2045 = vmul.f32 %v2044, 0.2
    %v2046 = vadd.f32 %v2045, %v1860
    %2047 = vst.msk [vmem:[#allocation3] sm:$0xff] %vm1877, %v2046
    %v2048 = vld [vmem:[#allocation4] sm:$0xff]
    %vm2049 = vcmp.gt.f32.partialorder %v2046, 0.5
    %v2050 = vsel %vm2049, 1, 0
    %v2051 = vcvt.s32.f32 %v2050
    %v2052 = vadd.f32 %v2048, %v2051
    %2053 = vst.msk [vmem:[#allocation4] sm:$0xff] %vm1877, %v2052
    %v2054 = vld [vmem:[#allocation3] sm:$0xff]
    %v2055 = vmul.f32 %v2054, 0.2
    %2057 = vrot.lane.b32.xlu0 %v1862, 123
    %v2058 = vpop.permute.xlu0 %2057
    %v2060 = vadd.f32 %v2055, %v2058
    %2061 = vst.msk [vmem:[#allocation3] sm:$0xff] %vm1877, %v2060
    %v2062 = vld [vmem:[%s1893] sm:$0xff]
    %vm2063 = vcmp.gt.f32.partialorder %v2060, 0.5
    %v2064 = vsel %vm2063, 1, 0
    %v2065 = vcvt.s32.f32 %v2064
    %v2066 = vadd.f32 %v2062, %v2065
    %2067 = vst.msk [vmem:[%s1893] sm:$0xff] %vm1877, %v2066
    %v2068 = vld [vmem:[#allocation3] sm:$0xff]
    %v2069 = vmul.f32 %v2068, 0.2
    %v2070 = vadd.f32 %v2069, %v1865
    %2071 = vst.msk [vmem:[#allocation3] sm:$0xff] %vm1877, %v2070
    %v2072 = vld [vmem:[#allocation4] sm:$0xff]
    %vm2073 = vcmp.gt.f32.partialorder %v2070, 0.5
    %v2074 = vsel %vm2073, 1, 0
    %v2075 = vcvt.s32.f32 %v2074
    %v2076 = vadd.f32 %v2072, %v2075
    %2077 = vst.msk [vmem:[#allocation4] sm:$0xff] %vm1877, %v2076
    %v2078 = vld [vmem:[#allocation3] sm:$0xff]
    %v2079 = vmul.f32 %v2078, 0.2
    %2081 = vrot.lane.b32.xlu0 %v1867, 123
    %v2082 = vpop.permute.xlu0 %2081
    %v2084 = vadd.f32 %v2079, %v2082
    %2085 = vst.msk [vmem:[#allocation3] sm:$0xff] %vm1877, %v2084
    %v2086 = vld [vmem:[%s1893] sm:$0xff]
    %vm2087 = vcmp.gt.f32.partialorder %v2084, 0.5
    %v2088 = vsel %vm2087, 1, 0
    %v2089 = vcvt.s32.f32 %v2088
    %v2090 = vadd.f32 %v2086, %v2089
    %2091 = vst.msk [vmem:[%s1893] sm:$0xff] %vm1877, %v2090
    %v2092 = vld [vmem:[#allocation3] sm:$0xff]
    %v2093 = vmul.f32 %v2092, 0.2
    %v2094 = vadd.f32 %v2093, %v1870
    %2095 = vst.msk [vmem:[#allocation3] sm:$0xff] %vm1877, %v2094
    %v2096 = vld [vmem:[#allocation4] sm:$0xff]
    %vm2097 = vcmp.gt.f32.partialorder %v2094, 0.5
    %v2098 = vsel %vm2097, 1, 0
    %v2099 = vcvt.s32.f32 %v2098
    %v2100 = vadd.f32 %v2096, %v2099
    %2101 = vst.msk [vmem:[#allocation4] sm:$0xff] %vm1877, %v2100
    %v2102 = vld [vmem:[#allocation3] sm:$0xff]
    %v2103 = vmul.f32 %v2102, 0.2
    %2105 = vrot.lane.b32.xlu0 %v1872, 123
    %v2106 = vpop.permute.xlu0 %2105
    %v2108 = vadd.f32 %v2103, %v2106
    %2109 = vst.msk [vmem:[#allocation3] sm:$0xff] %vm1877, %v2108
    %v2110 = vld [vmem:[%s1893] sm:$0xff]
    %vm2111 = vcmp.gt.f32.partialorder %v2108, 0.5
    %v2112 = vsel %vm2111, 1, 0
    %v2113 = vcvt.s32.f32 %v2112
    %v2114 = vadd.f32 %v2110, %v2113
    %2115 = vst.msk [vmem:[%s1893] sm:$0xff] %vm1877, %v2114
    // Predicated region
    $region38: #{tpu_custom_call.1} parent=1 // pred_check
      %p2116 = pneg %p44
    $region39: #{tpu_custom_call.1} parent=1 // pred_check_branch
      %2118 = sbr.rel (%p2116) target = $region41
    $region40: #{tpu_custom_call.1} parent=1 // pred_region
      %v2119 = vld [vmem:[#allocation4] sm:$0xff]
      %v2120 = vld [vmem:[%s6] sm:$0x1f]
      %v2121 = vld [vmem:[%s1893] sm:$0xff]
      %s2122 = scalar_lea.vmem %s6, 8
      %v2123 = vld [vmem:[%s2122] sm:$0x1f]
      %v2125 = vsel %vm1877, %v2121, 0
      %vm2127 = vcmask 1044480
      %v2129 = vsel %vm2127, %v2123, 0
      %2131 = vmatpush.msra.mxu0 0.0
      %2132 = vmatpush.msra.mxu0 0.0
      %2133 = vmatpush.msra.mxu0 0.0
      %2134 = vmatpush.msra.mxu0 0.0
      %2135 = vmatpush.msra.mxu0 0.0
      %2136 = vmatpush.msra.mxu0 0.0
      %2137 = vmatpush.msra.mxu0 0.0
      %2138 = vmatpush.msra.mxu0 0.0
      %2139 = vmatpush.msra.mxu0 0.0
      %2140 = vmatpush.msra.mxu0 0.0
      %2141 = vmatpush.msra.mxu0 0.0
      %2142 = vmatpush.msra.mxu0 0.0
      %2143 = vmatpush.msra.mxu0 0.0
      %2144 = vmatpush.msra.mxu0 0.0
      %2145 = vmatpush.msra.mxu0 0.0
      %2146 = vmatpush.msra.mxu0 %v2129
      %2147 = vmatmul.f32.gmra.mxu0 %v2125
      %v2148 = vpop.f32.mrf.mxu0
      %v2149 = vadd.f32 0.0, %v2148
      %2150 = vdwg.mxu0
      %v2152 = vsel %vm1877, %v2119, 0
      %v2155 = vsel %vm2127, %v2120, 0
      %2157 = vmatpush.msra.mxu0 0.0
      %2158 = vmatpush.msra.mxu0 0.0
      %2159 = vmatpush.msra.mxu0 0.0
      %2160 = vmatpush.msra.mxu0 0.0
      %2161 = vmatpush.msra.mxu0 0.0
      %2162 = vmatpush.msra.mxu0 0.0
      %2163 = vmatpush.msra.mxu0 0.0
      %2164 = vmatpush.msra.mxu0 0.0
      %2165 = vmatpush.msra.mxu0 0.0
      %2166 = vmatpush.msra.mxu0 0.0
      %2167 = vmatpush.msra.mxu0 0.0
      %2168 = vmatpush.msra.mxu0 0.0
      %2169 = vmatpush.msra.mxu0 0.0
      %2170 = vmatpush.msra.mxu0 0.0
      %2171 = vmatpush.msra.mxu0 0.0
      %2172 = vmatpush.msra.mxu0 %v2155
      %2173 = vmatmul.f32.gmra.mxu0 %v2152
      %v2174 = vpop.f32.mrf.mxu0
      %v2175 = vadd.f32 %v2149, %v2174
      %2176 = vdwg.mxu0
      %v2177 = vrcp.pop 20.0
      %v2178 = vmul.f32 20.0, %v2177
      %v2179 = vsub.f32 1.0, %v2178
      %v2180 = vmul.f32 %v2177, %v2179
      %v2181 = vadd.f32 %v2177, %v2180
      %vm2182 = vweird.f32 %v2177
      %v2183 = vsel %vm2182, %v2177, %v2181
      %v2184 = vmul.f32 %v2175, %v2183
      %vm2185 = vcmask 80896
      %2186 = vst.msk [vmem:[#allocation9] sm:$0xff] %vm2185, %v2184
    $region41: #{tpu_custom_call.1} parent=1 // pred_fallthru
      _
    // Predicated region
    $region42: #{tpu_custom_call.1} parent=1 // pred_check
      _
    $region43: #{tpu_custom_call.1} parent=1 // pred_check_branch
      %2188 = sbr.rel (0) target = $region45
    $region44: #{tpu_custom_call.1} parent=1 // pred_region
      %2190 = vsyncadd [#allocation8], 0
      %s2192 = sshll.u32 [#allocation9], 4
      %s2193 = int_to_ptr.vmem [resolvable:$true] %s2192
      %s2194 = sshll.u32 %s7, 4
      %s2195 = int_to_ptr.hbm [resolvable:$true] %s2194
      %2197 = dma.vmem_to_hbm [thread:$0]  %s2193, 128, %s2195, [#allocation8]
    $region45: #{tpu_custom_call.1} parent=1 // pred_fallthru
      _
    // Predicated region
    $region46: #{tpu_custom_call.1} parent=1 // pred_check
      _
    $region47: #{tpu_custom_call.1} parent=1 // pred_check_branch
      %2199 = sbr.rel (0) target = $region49
    $region48: #{tpu_custom_call.1} parent=1 // pred_region
      %2201 = dma.done [#allocation8], 128
    $region49: #{tpu_custom_call.1} parent=1 // pred_fallthru
      _
    %2202 = vsyncpa [#allocation7], 1
    %2203 = vsyncpa [#allocation8], 1

</llo_original>
